<compile_context>
chip_gen: v5e
topology: v5e:2x2
jax: 0.10.0
libtpu: 0.0.40
codegen_flags: <defaults>
</compile_context>

<pallas_src>
import jax
import jax.numpy as jnp
import numpy as np
from jax.experimental import pallas as pl
from jax.experimental.pallas import tpu as pltpu


# ---------------------------------------------------------------- small helpers

def _round_up(x, m):
    return ((x + m - 1) // m) * m


def _row_tiles(M, tm_target=512):
    """Pick a row-tile TM (multiple of 8) and the padded row count."""
    if M <= tm_target:
        tm = _round_up(M, 8)
    else:
        tm = tm_target
    return tm, _round_up(M, tm)


def _full_spec(shape):
    # whole-array block (block_shape == array shape -> no (8,128) constraint)
    return pl.BlockSpec(shape, lambda: (0,) * len(shape))


# ---------------------------------------------------------------- Pallas kernels

def _matmul_bias_relu_kernel(x_ref, w_ref, b_ref, o_ref):
    # x: [TM, Kp]  w: [Kp, Np]  b: [1, Np]  o: [TM, Np]   (Kp, Np multiples of 128)
    y = jnp.dot(x_ref[...], w_ref[...], preferred_element_type=jnp.float32)
    o_ref[...] = jnp.maximum(y + b_ref[...], 0.0)


def _max_halves_kernel(x_ref, o_ref):
    # x: [TM, 2L] -> o: [TM, L], elementwise max of the two lane halves
    L = x_ref.shape[1] // 2
    o_ref[...] = jnp.maximum(x_ref[:, :L], x_ref[:, L:])


def _fc_tail_kernel(x_ref, w1_ref, b1_ref, w2_ref, b2_ref, o_ref):
    # fused: fc1 + ReLU + fc2 + bias + log_softmax   (intermediate stays in VMEM)
    h = jnp.dot(x_ref[...], w1_ref[...], preferred_element_type=jnp.float32)
    h = jnp.maximum(h + b1_ref[...], 0.0)
    y = jnp.dot(h, w2_ref[...], preferred_element_type=jnp.float32) + b2_ref[...]
    m = jnp.max(y, axis=1, keepdims=True)
    z = y - m
    o_ref[...] = z - jnp.log(jnp.sum(jnp.exp(z), axis=1, keepdims=True))


# ---------------------------------------------------------------- Pallas wrappers

def matmul_bias_relu(x, w, b, tm_target=512):
    """x:[M,Kp] @ w:[Kp,Np] + b, ReLU.  Row-tiled over M, weights resident."""
    M, K = x.shape
    Kw, N = w.shape
    assert K == Kw and K % 128 == 0 and N % 128 == 0
    tm, Mp = _row_tiles(M, tm_target)
    if Mp != M:
        x = jnp.pad(x, ((0, Mp - M), (0, 0)))
    out = pl.pallas_call(
        _matmul_bias_relu_kernel,
        out_shape=jax.ShapeDtypeStruct((Mp, N), jnp.float32),
        grid=(Mp // tm,),
        in_specs=[pl.BlockSpec((tm, K), lambda i: (i, 0)),
                  pl.BlockSpec((K, N), lambda i: (0, 0)),
                  pl.BlockSpec((1, N), lambda i: (0, 0))],
        out_specs=pl.BlockSpec((tm, N), lambda i: (i, 0)),
        compiler_params=pltpu.CompilerParams(dimension_semantics=("parallel",)),
    )(x, w, b.reshape(1, N))
    return out[:M] if Mp != M else out


def _max_lane_halves(x, tm_target=512):
    """x:[M, 2L] -> [M, L], rowwise max of the two lane halves (L mult. of 128)."""
    M, twoL = x.shape
    L = twoL // 2
    tm, Mp = _row_tiles(M, tm_target)
    if Mp != M:
        x = jnp.pad(x, ((0, Mp - M), (0, 0)))
    out = pl.pallas_call(
        _max_halves_kernel,
        out_shape=jax.ShapeDtypeStruct((Mp, L), x.dtype),
        grid=(Mp // tm,),
        in_specs=[pl.BlockSpec((tm, twoL), lambda i: (i, 0))],
        out_specs=pl.BlockSpec((tm, L), lambda i: (i, 0)),
        compiler_params=pltpu.CompilerParams(dimension_semantics=("parallel",)),
    )(x)
    return out[:M] if Mp != M else out


def maxpool2x2(x):
    """2x2/stride-2 max pool on channel-padded NHWC [B,H,W,Cp] (Cp mult. of 128).

    Done as two lane-dense Pallas kernels; the reshapes are free (row-major)."""
    B, H, W, C = x.shape
    y = _max_lane_halves(x.reshape(B * H * (W // 2), 2 * C))          # pool over W
    y = _max_lane_halves(y.reshape(B * (H // 2), 2 * (W // 2) * C))   # pool over H
    return y.reshape(B, H // 2, W // 2, C)


def fc_tail(x, w1, b1, w2, b2):
    """Fused fc1(784->512) + ReLU + fc2(512->10) + log_softmax."""
    B, K = x.shape
    D = w1.shape[1]
    N = w2.shape[1]
    return pl.pallas_call(
        _fc_tail_kernel,
        out_shape=jax.ShapeDtypeStruct((B, N), jnp.float32),
        in_specs=[_full_spec((B, K)), _full_spec((K, D)), _full_spec((1, D)),
                  _full_spec((D, N)), _full_spec((1, N))],
        out_specs=_full_spec((B, N)),
    )(x, w1, b1.reshape(1, D), w2, b2.reshape(1, N))


# ---------------------------------------------------------------- conv via im2col

def _im2col(x, k, pad):
    # x: [B, H, W, C] -> [B*H*W, k*k*C], patch ordering (kh, kw, cin)
    B, H, W, C = x.shape
    xp = jnp.pad(x, ((0, 0), (pad, pad), (pad, pad), (0, 0)))
    cols = []
    for di in range(k):
        for dj in range(k):
            cols.append(xp[:, di:di + H, dj:dj + W, :])
    patches = jnp.stack(cols, axis=3)          # [B, H, W, k*k, C]
    return patches.reshape(B * H * W, k * k * C)


def conv2d_relu(x_nhwc, w_mat, b_pad, k=5):
    """'same' conv as im2col + fused Pallas matmul/bias/ReLU.

    w_mat: [Kp, 128] pre-padded weight matrix; returns channel-padded NHWC."""
    B, H, W, Cin = x_nhwc.shape
    Kp, Np = w_mat.shape
    patches = _im2col(x_nhwc, k, k // 2)                    # [B*H*W, k*k*Cin]
    K = patches.shape[1]
    if Kp != K:
        patches = jnp.pad(patches, ((0, 0), (0, Kp - K)))   # lane-dense K
    y = matmul_bias_relu(patches, w_mat, b_pad)             # [B*H*W, 128]
    return y.reshape(B, H, W, Np)


# ---------------------------------------------------------------- forward pass

def convnet_forward(x_nchw, kp):
    x = jnp.transpose(x_nchw, (0, 2, 3, 1))                    # NCHW -> NHWC
    x = conv2d_relu(x, kp["conv1_wmat"], kp["conv1_b"])        # [B,28,28,128] (6 real)
    x = maxpool2x2(x)                                          # [B,14,14,128]
    x = x[..., :6]                                             # true channels for im2col
    x = conv2d_relu(x, kp["conv2_wmat"], kp["conv2_b"])        # [B,14,14,128] (16 real)
    x = maxpool2x2(x)                                          # [B,7,7,128]
    x = x[..., :16].reshape(x.shape[0], -1)                    # NHWC flatten -> [B,784]
    # fc1_wt was permuted to NHWC flatten order at param-prep time.
    return fc_tail(x, kp["fc1_wt"], kp["fc1_b"], kp["fc2_wt"], kp["fc2_b"])


# ---------------------------------------------------------------- params

def init_params(key):
    ks = jax.random.split(key, 8)

    def u(k, shape, fan_in):
        bound = 1.0 / np.sqrt(fan_in)
        return jax.random.uniform(k, shape, jnp.float32, -bound, bound)

    return dict(
        conv1_w=u(ks[0], (6, 1, 5, 5), 1 * 5 * 5),
        conv1_b=u(ks[1], (6,), 1 * 5 * 5),
        conv2_w=u(ks[2], (16, 6, 5, 5), 6 * 5 * 5),
        conv2_b=u(ks[3], (16,), 6 * 5 * 5),
        fc1_w=u(ks[4], (512, 16 * 7 * 7), 16 * 7 * 7),
        fc1_b=u(ks[5], (512,), 16 * 7 * 7),
        fc2_w=u(ks[6], (10, 512), 512),
        fc2_b=u(ks[7], (10,), 512),
    )


def prepare_params(p, cout_pad=128):
    """One-time (host-side) repack of PyTorch-layout params for the kernels."""
    def conv_wmat(w_oihw, b, kpad):
        Cout, Cin, kh, kw = w_oihw.shape
        K = kh * kw * Cin
        wm = jnp.transpose(w_oihw, (2, 3, 1, 0)).reshape(K, Cout)   # (kh,kw,cin) x cout
        wm = jnp.pad(wm, ((0, kpad - K), (0, cout_pad - Cout)))
        return wm, jnp.pad(b, (0, cout_pad - Cout))

    c1_w, c1_b = conv_wmat(p["conv1_w"], p["conv1_b"], 128)   # K: 25  -> 128
    c2_w, c2_b = conv_wmat(p["conv2_w"], p["conv2_b"], 256)   # K: 150 -> 256
    # Permute fc1_w's input dim from NCHW-flatten (c,h,w) to NHWC-flatten (h,w,c).
    fc1_w = p["fc1_w"].reshape(512, 16, 7, 7).transpose(0, 2, 3, 1).reshape(512, 784)
    return dict(
        conv1_wmat=c1_w, conv1_b=c1_b,
        conv2_wmat=c2_w, conv2_b=c2_b,
        fc1_wt=fc1_w.T, fc1_b=p["fc1_b"],
        fc2_wt=p["fc2_w"].T, fc2_b=p["fc2_b"],
    )


# ---------------------------------------------------------------- reference

def reference_forward(x_nchw, p):
    def conv(x, w, b):
        y = jax.lax.conv_general_dilated(
            x, w, (1, 1), ((2, 2), (2, 2)),
            dimension_numbers=("NCHW", "OIHW", "NCHW"))
        return jax.nn.relu(y + b[None, :, None, None])

    def pool(x):
        return jax.lax.reduce_window(x, -jnp.inf, jax.lax.max,
                                     (1, 1, 2, 2), (1, 1, 2, 2), "VALID")

    y = pool(conv(x_nchw, p["conv1_w"], p["conv1_b"]))
    y = pool(conv(y, p["conv2_w"], p["conv2_b"]))
    y = y.reshape(y.shape[0], -1)
    y = jax.nn.relu(y @ p["fc1_w"].T + p["fc1_b"])
    y = y @ p["fc2_w"].T + p["fc2_b"]
    return jax.nn.log_softmax(y, axis=1)


# ---------------------------------------------------------------- main

if __name__ == "__main__":
    key = jax.random.PRNGKey(0)
    kx, kp = jax.random.split(key)

    # Input must be 28x28 so that Flatten produces 16*7*7 features.
    x = jax.random.normal(kx, (2, 1, 28, 28), jnp.float32)
    params = init_params(kp)
    kparams = prepare_params(params)      # one-time weight repack

    fwd = jax.jit(convnet_forward)
    out = jax.block_until_ready(fwd(x, kparams))
    ref = jax.block_until_ready(reference_forward(x, params))

    assert out.shape == (2, 10)
    np.testing.assert_allclose(np.asarray(out), np.asarray(ref),
                               rtol=1e-2, atol=1e-2)
    print("KERNEL_OK")
</pallas_src>

<mosaic_0001>
module attributes {stable_mosaic.version = 11 : i64} {
  func.func @_matmul_bias_relu_kernel(%arg0: i32, %arg1: memref<512x128xf32, #tpu.memory_space<vmem>>, %arg2: memref<128x128xf32, #tpu.memory_space<vmem>>, %arg3: memref<1x128xf32, #tpu.memory_space<vmem>>, %arg4: memref<512x128xf32, #tpu.memory_space<vmem>>) attributes {dimension_semantics = [#tpu.dimension_semantics<parallel>], iteration_bounds = array<i64: 4>, scalar_prefetch = 0 : i64, scratch_operands = 0 : i64, tpu.core_type = #tpu.core_type<tc>, window_params = [{transform_indices = @transform_0, window_bounds = array<i64: 512, 128>}, {pipeline_mode = #tpu.pipeline_mode<synchronous>, transform_indices = @transform_1, window_bounds = array<i64: 128, 128>}, {pipeline_mode = #tpu.pipeline_mode<synchronous>, transform_indices = @transform_2, window_bounds = array<i64: 1, 128>}, {transform_indices = @transform_3, window_bounds = array<i64: 512, 128>}]} {
    %c0 = arith.constant 0 : index
    %c0_0 = arith.constant 0 : index
    %0 = vector.load %arg1[%c0, %c0_0] : memref<512x128xf32, #tpu.memory_space<vmem>>, vector<512x128xf32>
    %c0_1 = arith.constant 0 : index
    %c0_2 = arith.constant 0 : index
    %1 = vector.load %arg2[%c0_1, %c0_2] : memref<128x128xf32, #tpu.memory_space<vmem>>, vector<128x128xf32>
    %cst = arith.constant dense<0.000000e+00> : vector<512x128xf32>
    %2 = tpu.matmul %0, %1, %cst {dimension_numbers = #tpu.dot_dimension_numbers<[1], [0], [0], [1], [0, 0, 1, 1], [], []>} : vector<512x128xf32>, vector<128x128xf32>, vector<512x128xf32> -> vector<512x128xf32>
    %c0_3 = arith.constant 0 : index
    %c0_4 = arith.constant 0 : index
    %3 = vector.load %arg3[%c0_3, %c0_4] : memref<1x128xf32, #tpu.memory_space<vmem>>, vector<1x128xf32>
    %4 = vector.broadcast %3 : vector<1x128xf32> to vector<512x128xf32>
    %5 = arith.addf %2, %4 : vector<512x128xf32>
    %cst_5 = arith.constant 0.000000e+00 : f32
    %6 = vector.broadcast %cst_5 : f32 to vector<512x128xf32>
    %7 = arith.maximumf %5, %6 : vector<512x128xf32>
    %c0_6 = arith.constant 0 : index
    %c0_7 = arith.constant 0 : index
    %8 = vector.load %arg4[%c0_6, %c0_7] : memref<512x128xf32, #tpu.memory_space<vmem>>, vector<512x128xf32>
    tpu.vector_store %arg4[%c0_6, %c0_7], %7 {strides = array<i32>} : memref<512x128xf32, #tpu.memory_space<vmem>>, vector<512x128xf32>,
    return
  }
  func.func @transform_0(%arg0: i32) -> (i32, i32) {
    %c0_i32 = arith.constant 0 : i32
    %c0_i32_0 = arith.constant 0 : i32
    return %arg0, %c0_i32 : i32, i32
  }
  func.func @transform_1(%arg0: i32) -> (i32, i32) {
    %c0_i32 = arith.constant 0 : i32
    %c0_i32_0 = arith.constant 0 : i32
    %c0_i32_1 = arith.constant 0 : i32
    return %c0_i32, %c0_i32_0 : i32, i32
  }
  func.func @transform_2(%arg0: i32) -> (i32, i32) {
    %c0_i32 = arith.constant 0 : i32
    %c0_i32_0 = arith.constant 0 : i32
    %c0_i32_1 = arith.constant 0 : i32
    return %c0_i32, %c0_i32_0 : i32, i32
  }
  func.func @transform_3(%arg0: i32) -> (i32, i32) {
    %c0_i32 = arith.constant 0 : i32
    %c0_i32_0 = arith.constant 0 : i32
    return %arg0, %c0_i32 : i32, i32
  }
}

module attributes {stable_mosaic.version = 11 : i64} {
  func.func @_max_halves_kernel(%arg0: i32, %arg1: memref<512x256xf32, #tpu.memory_space<vmem>>, %arg2: memref<512x128xf32, #tpu.memory_space<vmem>>) attributes {dimension_semantics = [#tpu.dimension_semantics<parallel>], iteration_bounds = array<i64: 2>, scalar_prefetch = 0 : i64, scratch_operands = 0 : i64, tpu.core_type = #tpu.core_type<tc>, window_params = [{transform_indices = @transform_0, window_bounds = array<i64: 512, 256>}, {transform_indices = @transform_1, window_bounds = array<i64: 512, 128>}]} {
    %c0 = arith.constant 0 : index
    %c0_0 = arith.constant 0 : index
    %0 = vector.load %arg1[%c0, %c0_0] : memref<512x256xf32, #tpu.memory_space<vmem>>, vector<512x128xf32>
    %c0_1 = arith.constant 0 : index
    %c128 = arith.constant 128 : index
    %1 = vector.load %arg1[%c0_1, %c128] : memref<512x256xf32, #tpu.memory_space<vmem>>, vector<512x128xf32>
    %2 = arith.maximumf %0, %1 : vector<512x128xf32>
    %c0_2 = arith.constant 0 : index
    %c0_3 = arith.constant 0 : index
    %3 = vector.load %arg2[%c0_2, %c0_3] : memref<512x128xf32, #tpu.memory_space<vmem>>, vector<512x128xf32>
    tpu.vector_store %arg2[%c0_2, %c0_3], %2 {strides = array<i32>} : memref<512x128xf32, #tpu.memory_space<vmem>>, vector<512x128xf32>,
    return
  }
  func.func @transform_0(%arg0: i32) -> (i32, i32) {
    %c0_i32 = arith.constant 0 : i32
    %c0_i32_0 = arith.constant 0 : i32
    return %arg0, %c0_i32 : i32, i32
  }
  func.func @transform_1(%arg0: i32) -> (i32, i32) {
    %c0_i32 = arith.constant 0 : i32
    %c0_i32_0 = arith.constant 0 : i32
    return %arg0, %c0_i32 : i32, i32
  }
}

module attributes {stable_mosaic.version = 11 : i64} {
  func.func @_max_halves_kernel(%arg0: i32, %arg1: memref<32x3584xf32, #tpu.memory_space<vmem>>, %arg2: memref<32x1792xf32, #tpu.memory_space<vmem>>) attributes {dimension_semantics = [#tpu.dimension_semantics<parallel>], iteration_bounds = array<i64: 1>, scalar_prefetch = 0 : i64, scratch_operands = 0 : i64, tpu.core_type = #tpu.core_type<tc>, window_params = [{transform_indices = @transform_0, window_bounds = array<i64: 32, 3584>}, {transform_indices = @transform_1, window_bounds = array<i64: 32, 1792>}]} {
    %c0 = arith.constant 0 : index
    %c0_0 = arith.constant 0 : index
    %0 = vector.load %arg1[%c0, %c0_0] : memref<32x3584xf32, #tpu.memory_space<vmem>>, vector<32x1792xf32>
    %c0_1 = arith.constant 0 : index
    %c1792 = arith.constant 1792 : index
    %1 = vector.load %arg1[%c0_1, %c1792] : memref<32x3584xf32, #tpu.memory_space<vmem>>, vector<32x1792xf32>
    %2 = arith.maximumf %0, %1 : vector<32x1792xf32>
    %c0_2 = arith.constant 0 : index
    %c0_3 = arith.constant 0 : index
    %3 = vector.load %arg2[%c0_2, %c0_3] : memref<32x1792xf32, #tpu.memory_space<vmem>>, vector<32x1792xf32>
    tpu.vector_store %arg2[%c0_2, %c0_3], %2 {strides = array<i32>} : memref<32x1792xf32, #tpu.memory_space<vmem>>, vector<32x1792xf32>,
    return
  }
  func.func @transform_0(%arg0: i32) -> (i32, i32) {
    %c0_i32 = arith.constant 0 : i32
    %c0_i32_0 = arith.constant 0 : i32
    return %arg0, %c0_i32 : i32, i32
  }
  func.func @transform_1(%arg0: i32) -> (i32, i32) {
    %c0_i32 = arith.constant 0 : i32
    %c0_i32_0 = arith.constant 0 : i32
    return %arg0, %c0_i32 : i32, i32
  }
}

module attributes {stable_mosaic.version = 11 : i64} {
  func.func @_matmul_bias_relu_kernel(%arg0: i32, %arg1: memref<392x256xf32, #tpu.memory_space<vmem>>, %arg2: memref<256x128xf32, #tpu.memory_space<vmem>>, %arg3: memref<1x128xf32, #tpu.memory_space<vmem>>, %arg4: memref<392x128xf32, #tpu.memory_space<vmem>>) attributes {dimension_semantics = [#tpu.dimension_semantics<parallel>], iteration_bounds = array<i64: 1>, scalar_prefetch = 0 : i64, scratch_operands = 0 : i64, tpu.core_type = #tpu.core_type<tc>, window_params = [{transform_indices = @transform_0, window_bounds = array<i64: 392, 256>}, {pipeline_mode = #tpu.pipeline_mode<synchronous>, transform_indices = @transform_1, window_bounds = array<i64: 256, 128>}, {pipeline_mode = #tpu.pipeline_mode<synchronous>, transform_indices = @transform_2, window_bounds = array<i64: 1, 128>}, {transform_indices = @transform_3, window_bounds = array<i64: 392, 128>}]} {
    %c0 = arith.constant 0 : index
    %c0_0 = arith.constant 0 : index
    %0 = vector.load %arg1[%c0, %c0_0] : memref<392x256xf32, #tpu.memory_space<vmem>>, vector<392x256xf32>
    %c0_1 = arith.constant 0 : index
    %c0_2 = arith.constant 0 : index
    %1 = vector.load %arg2[%c0_1, %c0_2] : memref<256x128xf32, #tpu.memory_space<vmem>>, vector<256x128xf32>
    %cst = arith.constant dense<0.000000e+00> : vector<392x128xf32>
    %2 = tpu.matmul %0, %1, %cst {dimension_numbers = #tpu.dot_dimension_numbers<[1], [0], [0], [1], [0, 0, 1, 1], [], []>} : vector<392x256xf32>, vector<256x128xf32>, vector<392x128xf32> -> vector<392x128xf32>
    %c0_3 = arith.constant 0 : index
    %c0_4 = arith.constant 0 : index
    %3 = vector.load %arg3[%c0_3, %c0_4] : memref<1x128xf32, #tpu.memory_space<vmem>>, vector<1x128xf32>
    %4 = vector.broadcast %3 : vector<1x128xf32> to vector<392x128xf32>
    %5 = arith.addf %2, %4 : vector<392x128xf32>
    %cst_5 = arith.constant 0.000000e+00 : f32
    %6 = vector.broadcast %cst_5 : f32 to vector<392x128xf32>
    %7 = arith.maximumf %5, %6 : vector<392x128xf32>
    %c0_6 = arith.constant 0 : index
    %c0_7 = arith.constant 0 : index
    %8 = vector.load %arg4[%c0_6, %c0_7] : memref<392x128xf32, #tpu.memory_space<vmem>>, vector<392x128xf32>
    tpu.vector_store %arg4[%c0_6, %c0_7], %7 {strides = array<i32>} : memref<392x128xf32, #tpu.memory_space<vmem>>, vector<392x128xf32>,
    return
  }
  func.func @transform_0(%arg0: i32) -> (i32, i32) {
    %c0_i32 = arith.constant 0 : i32
    %c0_i32_0 = arith.constant 0 : i32
    return %arg0, %c0_i32 : i32, i32
  }
  func.func @transform_1(%arg0: i32) -> (i32, i32) {
    %c0_i32 = arith.constant 0 : i32
    %c0_i32_0 = arith.constant 0 : i32
    %c0_i32_1 = arith.constant 0 : i32
    return %c0_i32, %c0_i32_0 : i32, i32
  }
  func.func @transform_2(%arg0: i32) -> (i32, i32) {
    %c0_i32 = arith.constant 0 : i32
    %c0_i32_0 = arith.constant 0 : i32
    %c0_i32_1 = arith.constant 0 : i32
    return %c0_i32, %c0_i32_0 : i32, i32
  }
  func.func @transform_3(%arg0: i32) -> (i32, i32) {
    %c0_i32 = arith.constant 0 : i32
    %c0_i32_0 = arith.constant 0 : i32
    return %arg0, %c0_i32 : i32, i32
  }
}

module attributes {stable_mosaic.version = 11 : i64} {
  func.func @_max_halves_kernel(%arg0: i32, %arg1: memref<200x256xf32, #tpu.memory_space<vmem>>, %arg2: memref<200x128xf32, #tpu.memory_space<vmem>>) attributes {dimension_semantics = [#tpu.dimension_semantics<parallel>], iteration_bounds = array<i64: 1>, scalar_prefetch = 0 : i64, scratch_operands = 0 : i64, tpu.core_type = #tpu.core_type<tc>, window_params = [{transform_indices = @transform_0, window_bounds = array<i64: 200, 256>}, {transform_indices = @transform_1, window_bounds = array<i64: 200, 128>}]} {
    %c0 = arith.constant 0 : index
    %c0_0 = arith.constant 0 : index
    %0 = vector.load %arg1[%c0, %c0_0] : memref<200x256xf32, #tpu.memory_space<vmem>>, vector<200x128xf32>
    %c0_1 = arith.constant 0 : index
    %c128 = arith.constant 128 : index
    %1 = vector.load %arg1[%c0_1, %c128] : memref<200x256xf32, #tpu.memory_space<vmem>>, vector<200x128xf32>
    %2 = arith.maximumf %0, %1 : vector<200x128xf32>
    %c0_2 = arith.constant 0 : index
    %c0_3 = arith.constant 0 : index
    %3 = vector.load %arg2[%c0_2, %c0_3] : memref<200x128xf32, #tpu.memory_space<vmem>>, vector<200x128xf32>
    tpu.vector_store %arg2[%c0_2, %c0_3], %2 {strides = array<i32>} : memref<200x128xf32, #tpu.memory_space<vmem>>, vector<200x128xf32>,
    return
  }
  func.func @transform_0(%arg0: i32) -> (i32, i32) {
    %c0_i32 = arith.constant 0 : i32
    %c0_i32_0 = arith.constant 0 : i32
    return %arg0, %c0_i32 : i32, i32
  }
  func.func @transform_1(%arg0: i32) -> (i32, i32) {
    %c0_i32 = arith.constant 0 : i32
    %c0_i32_0 = arith.constant 0 : i32
    return %arg0, %c0_i32 : i32, i32
  }
}

module attributes {stable_mosaic.version = 11 : i64} {
  func.func @_max_halves_kernel(%arg0: i32, %arg1: memref<16x1792xf32, #tpu.memory_space<vmem>>, %arg2: memref<16x896xf32, #tpu.memory_space<vmem>>) attributes {dimension_semantics = [#tpu.dimension_semantics<parallel>], iteration_bounds = array<i64: 1>, scalar_prefetch = 0 : i64, scratch_operands = 0 : i64, tpu.core_type = #tpu.core_type<tc>, window_params = [{transform_indices = @transform_0, window_bounds = array<i64: 16, 1792>}, {transform_indices = @transform_1, window_bounds = array<i64: 16, 896>}]} {
    %c0 = arith.constant 0 : index
    %c0_0 = arith.constant 0 : index
    %0 = vector.load %arg1[%c0, %c0_0] : memref<16x1792xf32, #tpu.memory_space<vmem>>, vector<16x896xf32>
    %c0_1 = arith.constant 0 : index
    %c896 = arith.constant 896 : index
    %1 = vector.load %arg1[%c0_1, %c896] : memref<16x1792xf32, #tpu.memory_space<vmem>>, vector<16x896xf32>
    %2 = arith.maximumf %0, %1 : vector<16x896xf32>
    %c0_2 = arith.constant 0 : index
    %c0_3 = arith.constant 0 : index
    %3 = vector.load %arg2[%c0_2, %c0_3] : memref<16x896xf32, #tpu.memory_space<vmem>>, vector<16x896xf32>
    tpu.vector_store %arg2[%c0_2, %c0_3], %2 {strides = array<i32>} : memref<16x896xf32, #tpu.memory_space<vmem>>, vector<16x896xf32>,
    return
  }
  func.func @transform_0(%arg0: i32) -> (i32, i32) {
    %c0_i32 = arith.constant 0 : i32
    %c0_i32_0 = arith.constant 0 : i32
    return %arg0, %c0_i32 : i32, i32
  }
  func.func @transform_1(%arg0: i32) -> (i32, i32) {
    %c0_i32 = arith.constant 0 : i32
    %c0_i32_0 = arith.constant 0 : i32
    return %arg0, %c0_i32 : i32, i32
  }
}

module attributes {stable_mosaic.version = 11 : i64} {
  func.func @_fc_tail_kernel(%arg0: memref<2x784xf32, #tpu.memory_space<vmem>>, %arg1: memref<784x512xf32, #tpu.memory_space<vmem>>, %arg2: memref<1x512xf32, #tpu.memory_space<vmem>>, %arg3: memref<512x10xf32, #tpu.memory_space<vmem>>, %arg4: memref<1x10xf32, #tpu.memory_space<vmem>>, %arg5: memref<2x10xf32, #tpu.memory_space<vmem>>) attributes {dimension_semantics = [], scalar_prefetch = 0 : i64, scratch_operands = 0 : i64, tpu.core_type = #tpu.core_type<tc>} {
    %c0 = arith.constant 0 : index
    %c0_0 = arith.constant 0 : index
    %0 = vector.load %arg0[%c0, %c0_0] : memref<2x784xf32, #tpu.memory_space<vmem>>, vector<2x784xf32>
    %c0_1 = arith.constant 0 : index
    %c0_2 = arith.constant 0 : index
    %1 = vector.load %arg1[%c0_1, %c0_2] : memref<784x512xf32, #tpu.memory_space<vmem>>, vector<784x512xf32>
    %cst = arith.constant dense<0.000000e+00> : vector<2x512xf32>
    %2 = tpu.matmul %0, %1, %cst {dimension_numbers = #tpu.dot_dimension_numbers<[1], [0], [0], [1], [0, 0, 1, 1], [], []>} : vector<2x784xf32>, vector<784x512xf32>, vector<2x512xf32> -> vector<2x512xf32>
    %c0_3 = arith.constant 0 : index
    %c0_4 = arith.constant 0 : index
    %3 = vector.load %arg2[%c0_3, %c0_4] : memref<1x512xf32, #tpu.memory_space<vmem>>, vector<1x512xf32>
    %4 = vector.broadcast %3 : vector<1x512xf32> to vector<2x512xf32>
    %5 = arith.addf %2, %4 : vector<2x512xf32>
    %cst_5 = arith.constant 0.000000e+00 : f32
    %6 = vector.broadcast %cst_5 : f32 to vector<2x512xf32>
    %7 = arith.maximumf %5, %6 : vector<2x512xf32>
    %c0_6 = arith.constant 0 : index
    %c0_7 = arith.constant 0 : index
    %8 = vector.load %arg3[%c0_6, %c0_7] : memref<512x10xf32, #tpu.memory_space<vmem>>, vector<512x10xf32>
    %cst_8 = arith.constant dense<0.000000e+00> : vector<2x10xf32>
    %9 = tpu.matmul %7, %8, %cst_8 {dimension_numbers = #tpu.dot_dimension_numbers<[1], [0], [0], [1], [0, 0, 1, 1], [], []>} : vector<2x512xf32>, vector<512x10xf32>, vector<2x10xf32> -> vector<2x10xf32>
    %c0_9 = arith.constant 0 : index
    %c0_10 = arith.constant 0 : index
    %10 = vector.load %arg4[%c0_9, %c0_10] : memref<1x10xf32, #tpu.memory_space<vmem>>, vector<1x10xf32>
    %11 = vector.broadcast %10 : vector<1x10xf32> to vector<2x10xf32>
    %12 = arith.addf %9, %11 : vector<2x10xf32>
    %cst_11 = arith.constant dense<0xFF800000> : vector<2xf32>
    %13 = vector.multi_reduction <maximumf>, %12, %cst_11 [1] : vector<2x10xf32> to vector<2xf32>
    %14 = vector.shape_cast %13 : vector<2xf32> to vector<2x1xf32>
    %15 = vector.broadcast %14 : vector<2x1xf32> to vector<2x10xf32>
    %16 = arith.subf %12, %15 : vector<2x10xf32>
    %17 = math.exp %16 : vector<2x10xf32>
    %cst_12 = arith.constant dense<0.000000e+00> : vector<2xf32>
    %18 = vector.multi_reduction <add>, %17, %cst_12 [1] : vector<2x10xf32> to vector<2xf32>
    %19 = vector.shape_cast %18 : vector<2xf32> to vector<2x1xf32>
    %20 = math.log %19 : vector<2x1xf32>
    %21 = vector.broadcast %20 : vector<2x1xf32> to vector<2x10xf32>
    %22 = arith.subf %16, %21 : vector<2x10xf32>
    %c0_13 = arith.constant 0 : index
    %c0_14 = arith.constant 0 : index
    %23 = vector.load %arg5[%c0_13, %c0_14] : memref<2x10xf32, #tpu.memory_space<vmem>>, vector<2x10xf32>
    tpu.vector_store %arg5[%c0_13, %c0_14], %22 {strides = array<i32>} : memref<2x10xf32, #tpu.memory_space<vmem>>, vector<2x10xf32>,
    return
  }
}

</mosaic_0001>

<llo_original>
// kernel: convnet_forward.7
$region0: #{convnet_forward.7}
  #allocation0 [shape = 'u32[]', space=smem, size = 0x4, offset = 0x4, fixed_abs, tag = 'smem constant byte address 0x4 - core index']
  #allocation1 [shape = 'u32[72,128]{1,0:T(1,128)}', space=vmem, size = 0x9000, scoped, tag = 'internal scratch']
  %s0 = inlined_call_operand.vmem [shape: f32[2048,128], index: 0, kind: input, shape index: {}]
  %s1 = inlined_call_operand.hbm [shape: f32[128,128], index: 1, kind: input, shape index: {}]
  %s2 = inlined_call_operand.hbm [shape: f32[1,128], index: 2, kind: input, shape index: {}]
  %s3 = inlined_call_operand.vmem [shape: f32[2048,128], index: 3, kind: output, shape index: {}]
  %s4 = sld [smem:[#allocation0]]
  $region53: #{convnet_forward.7} parent=0
    _
  %s6 = ssub.s32 1, %s4
  %s7 = scalar_select 0, %s6, %s4
  $region1: #{convnet_forward.7} parent=0
    #allocation2 [shape = 'u8[65536]{0}', space=vmem, size = 0x10000, scoped, tag = 'input window, operand 1, single buffered']
    #allocation3 [shape = 's32[2]{0}', space=sflag, size = 0x8, scoped, tag = 'scoped memory for convnet_forward.7']
    #allocation4 [shape = 'u8[512]{0}', space=vmem, size = 0x400, scoped, tag = 'input window, operand 2, single buffered']
    #allocation5 [shape = 's32[1]{0}', space=sflag, size = 0x4, scoped, tag = 'scoped memory for convnet_forward.7']
    %8 = vsyncpa [#allocation3], 0
    %9 = vsyncpa [#allocation5], 0
    loop: start=0, step=1, limit=6
    $region2: #{convnet_forward.7} parent=1 // loop_pre_header
      _
    $region3: #{convnet_forward.7} parent=1 // loop_header
      %s11 = sphi 0, %s15
      %p12 = scmp.ge.s32.totalorder %s11, 6
      %s21 = sphi 0, %s23
      %s24 = sphi 0, %s21
      %s25 = sphi 0, %s24
      %s41 = sphi 0, %s25
      %s45 = sphi 0, %s45
      %s47 = sphi 0, %s45
      %s48 = sphi 0, %s47
      %s62 = sphi 0, %s48
      %s66 = sphi 0, %s66
      %s68 = sphi 0, %s66
      %s69 = sphi 0, %s68
      %s83 = sphi 0, %s69
      %s89 = sphi 0, %s91
      %s92 = sphi 0, %s89
      %s93 = sphi 0, %s92
      %s109 = sphi 0, %s93
    $region4: #{convnet_forward.7} parent=1 // loop_header_branch
      %14 = sbr.rel (%p12) target = $region8
    $region5: #{convnet_forward.7} parent=1 // loop_body
      %s16 = ssub.s32 %s11, 1
      %s17 = ssub.s32 %s11, 2
      %s18 = sadd.s32 %s11, 1
      %s19 = ssub.s32 %s11, %s18
      %p20 = scmp.eq.s32.totalorder %s19, 0
      %s22 = sadd.s32 %s21, 1
      %s23 = scalar_select %p20, %s21, %s22
      %p26 = pneg %p20
      %p27 = scmp.eq.s32.totalorder %s11, 3
      %p28 = por %p26, %p27
      %p29 = scmp.ne.s32.totalorder %s21, %s24
      %p30 = scmp.eq.s32.totalorder %s11, 0
      %p31 = por %p29, %p30
      %p32 = scmp.ne.s32.totalorder %s21, %s24
      %p33 = scmp.eq.s32.totalorder %s16, 3
      %p34 = por %p32, %p33
      %p35 = scmp.ne.s32.totalorder %s24, %s25
      %p36 = scmp.eq.s32.totalorder %s16, 0
      %p37 = por %p35, %p36
      %p38 = scmp.ne.s32.totalorder %s24, %s25
      %p39 = scmp.eq.s32.totalorder %s17, 3
      %p40 = por %p38, %p39
      %p42 = scmp.ne.s32.totalorder %s25, %s41
      %p43 = scmp.eq.s32.totalorder %s17, 0
      %p44 = por %p42, %p43
      %s46 = sadd.s32 %s45, 1
      %p49 = scmp.eq.s32.totalorder %s11, 3
      %p50 = scmp.ne.s32.totalorder %s45, %s47
      %p51 = scmp.eq.s32.totalorder %s11, 0
      %p52 = por %p50, %p51
      %p53 = scmp.ne.s32.totalorder %s45, %s47
      %p54 = scmp.eq.s32.totalorder %s16, 3
      %p55 = por %p53, %p54
      %p56 = scmp.ne.s32.totalorder %s47, %s48
      %p57 = scmp.eq.s32.totalorder %s16, 0
      %p58 = por %p56, %p57
      %p59 = scmp.ne.s32.totalorder %s47, %s48
      %p60 = scmp.eq.s32.totalorder %s17, 3
      %p61 = por %p59, %p60
      %p63 = scmp.ne.s32.totalorder %s48, %s62
      %p64 = scmp.eq.s32.totalorder %s17, 0
      %p65 = por %p63, %p64
      %s67 = sadd.s32 %s66, 1
      %p70 = scmp.eq.s32.totalorder %s11, 3
      %p71 = scmp.ne.s32.totalorder %s66, %s68
      %p72 = scmp.eq.s32.totalorder %s11, 0
      %p73 = por %p71, %p72
      %p74 = scmp.ne.s32.totalorder %s66, %s68
      %p75 = scmp.eq.s32.totalorder %s16, 3
      %p76 = por %p74, %p75
      %p77 = scmp.ne.s32.totalorder %s68, %s69
      %p78 = scmp.eq.s32.totalorder %s16, 0
      %p79 = por %p77, %p78
      %p80 = scmp.ne.s32.totalorder %s68, %s69
      %p81 = scmp.eq.s32.totalorder %s17, 3
      %p82 = por %p80, %p81
      %p84 = scmp.ne.s32.totalorder %s69, %s83
      %p85 = scmp.eq.s32.totalorder %s17, 0
      %p86 = por %p84, %p85
      %s87 = ssub.s32 %s11, %s18
      %p88 = scmp.eq.s32.totalorder %s87, 0
      %s90 = sadd.s32 %s89, 1
      %s91 = scalar_select %p88, %s89, %s90
      %p94 = pneg %p88
      %p95 = scmp.eq.s32.totalorder %s11, 3
      %p96 = por %p94, %p95
      %p97 = scmp.ne.s32.totalorder %s89, %s92
      %p98 = scmp.eq.s32.totalorder %s11, 0
      %p99 = por %p97, %p98
      %p100 = scmp.ne.s32.totalorder %s89, %s92
      %p101 = scmp.eq.s32.totalorder %s16, 3
      %p102 = por %p100, %p101
      %p103 = scmp.ne.s32.totalorder %s92, %s93
      %p104 = scmp.eq.s32.totalorder %s16, 0
      %p105 = por %p103, %p104
      %p106 = scmp.ne.s32.totalorder %s92, %s93
      %p107 = scmp.eq.s32.totalorder %s17, 3
      %p108 = por %p106, %p107
      %p110 = scmp.ne.s32.totalorder %s93, %s109
      %p111 = scmp.eq.s32.totalorder %s17, 0
      %p112 = por %p110, %p111
      %p113 = scmp.le.s32.totalorder 1, %s11
      %p114 = scmp.lt.s32.totalorder %s11, 5
      %p115 = pnand %p113, %p114
      %p116 = pneg %p115
      // Predicated region
      $region9: #{convnet_forward.7} parent=5 // pred_check
        _
      $region10: #{convnet_forward.7} parent=5 // pred_check_branch
        %118 = sbr.rel (%p115) target = $region12
      $region11: #{convnet_forward.7} parent=5 // pred_region
        %s119 = ssub.s32 %s11, 1
        // Predicated region
        $region13: #{convnet_forward.7} parent=11 // pred_check
          %p120 = pneg %p58
        $region14: #{convnet_forward.7} parent=11 // pred_check_branch
          %122 = sbr.rel (%p120) target = $region16
        $region15: #{convnet_forward.7} parent=11 // pred_region
          %124 = vsyncadd [#allocation3], 0
          %s125 = sshll.u32 %s1, 4
          %s126 = int_to_ptr.hbm [resolvable:$true] %s125
          %s127 = sshll.u32 [#allocation2], 4
          %s128 = int_to_ptr.vmem [resolvable:$true] %s127
          %133 = dma.hbm_to_vmem [thread:$0]  %s126, 2048, %s128, [#allocation3], 128, 128, 8
        $region16: #{convnet_forward.7} parent=11 // pred_fallthru
          _
        // Predicated region
        $region17: #{convnet_forward.7} parent=11 // pred_check
          %p134 = pneg %p79
        $region18: #{convnet_forward.7} parent=11 // pred_check_branch
          %136 = sbr.rel (%p134) target = $region20
        $region19: #{convnet_forward.7} parent=11 // pred_region
          %138 = vsyncadd [#allocation5], 0
          %s140 = sshll.u32 %s2, 4
          %s141 = int_to_ptr.hbm [resolvable:$true] %s140
          %s142 = sshll.u32 [#allocation4], 4
          %s143 = int_to_ptr.vmem [resolvable:$true] %s142
          %145 = dma.hbm_to_vmem [thread:$0]  %s141, 16, %s143, [#allocation5]
        $region20: #{convnet_forward.7} parent=11 // pred_fallthru
          _
      $region12: #{convnet_forward.7} parent=5 // pred_fallthru
        _
      %p146 = scmp.lt.s32.totalorder %s11, 4
      // Predicated region
      $region21: #{convnet_forward.7} parent=5 // pred_check
        %p147 = pneg %p146
      $region22: #{convnet_forward.7} parent=5 // pred_check_branch
        %149 = sbr.rel (%p147) target = $region24
      $region23: #{convnet_forward.7} parent=5 // pred_region
        // Predicated region
        $region25: #{convnet_forward.7} parent=23 // pred_check
          %p150 = pneg %p31
        $region26: #{convnet_forward.7} parent=23 // pred_check_branch
          %152 = sbr.rel (%p150) target = $region28
        $region27: #{convnet_forward.7} parent=23 // pred_region
          %s153 = smul.u32 64, %s11
          %p154 = scmp.lt.s32.totalorder %s153, 255
          %s155 = scalar_select %p154, %s153, 255
          %s156 = smul.addr %s155, 8
          %s157 = scalar_lea.vmem %s0, %s156
          %s158 = smul.u32 64, %s11
        $region28: #{convnet_forward.7} parent=23 // pred_fallthru
          _
      $region24: #{convnet_forward.7} parent=5 // pred_fallthru
        _
      %p159 = scmp.le.s32.totalorder 1, %s11
      %p160 = scmp.lt.s32.totalorder %s11, 5
      %p161 = pnand %p159, %p160
      %p162 = pneg %p161
      // Predicated region
      $region29: #{convnet_forward.7} parent=5 // pred_check
        _
      $region30: #{convnet_forward.7} parent=5 // pred_check_branch
        %164 = sbr.rel (%p161) target = $region32
      $region31: #{convnet_forward.7} parent=5 // pred_region
        %s165 = ssub.s32 %s11, 1
        // Predicated region
        $region33: #{convnet_forward.7} parent=31 // pred_check
          %p166 = pneg %p58
        $region34: #{convnet_forward.7} parent=31 // pred_check_branch
          %168 = sbr.rel (%p166) target = $region36
        $region35: #{convnet_forward.7} parent=31 // pred_region
          %170 = dma.done [#allocation3], 2048
        $region36: #{convnet_forward.7} parent=31 // pred_fallthru
          _
        // Predicated region
        $region37: #{convnet_forward.7} parent=31 // pred_check
          %p171 = pneg %p79
        $region38: #{convnet_forward.7} parent=31 // pred_check_branch
          %173 = sbr.rel (%p171) target = $region40
        $region39: #{convnet_forward.7} parent=31 // pred_region
          %175 = dma.done [#allocation5], 16
        $region40: #{convnet_forward.7} parent=31 // pred_fallthru
          _
        %s176 = smul.u32 64, %s16
        %p177 = scmp.lt.s32.totalorder %s176, 255
        %s178 = scalar_select %p177, %s176, 255
        %s179 = smul.addr %s178, 8
        %s180 = scalar_lea.vmem %s0, %s179
        %p181 = pneg %p37
        %p182 = pneg %p34
        %p183 = pneg %p58
        %p184 = pneg %p55
        %p185 = pneg %p79
        %p186 = pneg %p76
        %p187 = pneg %p105
        %p188 = pneg %p102
        %s189 = smul.u32 64, %s16
        %p190 = scmp.lt.s32.totalorder %s189, 255
        %s191 = scalar_select %p190, %s189, 255
        %s192 = smul.addr %s191, 8
        %s193 = scalar_lea.vmem %s3, %s192
        %s194 = smul.u32 64, %s16
        %p195 = scmp.lt.s32.totalorder %s194, 255
        %s196 = scalar_select %p195, %s194, 255
        %s197 = smul.addr %s196, 8
        %s198 = scalar_lea.vmem %s0, %s197
        %s199 = smul.u32 64, %s16
        %s200 = smul.u32 64, %s16
        %p201 = scmp.lt.s32.totalorder %s200, 255
        %s202 = scalar_select %p201, %s200, 255
        %s203 = smul.addr %s202, 8
        %s204 = scalar_lea.vmem %s3, %s203
        %s205 = smul.u32 64, %s16
        %v206 = vld [vmem:[%s198] sm:$0xff]
        %v207 = vld [vmem:[%s198 + $0x8] sm:$0xff]
        %v208 = vld [vmem:[%s198 + $0x10] sm:$0xff]
        %v209 = vld [vmem:[%s198 + $0x18] sm:$0xff]
        %v210 = vld [vmem:[%s198 + $0x20] sm:$0xff]
        %v211 = vld [vmem:[%s198 + $0x28] sm:$0xff]
        %v212 = vld [vmem:[%s198 + $0x30] sm:$0xff]
        %v213 = vld [vmem:[%s198 + $0x38] sm:$0xff]
        %v214 = vld [vmem:[%s198 + $0x40] sm:$0xff]
        %v215 = vld [vmem:[%s198 + $0x48] sm:$0xff]
        %v216 = vld [vmem:[%s198 + $0x50] sm:$0xff]
        %v217 = vld [vmem:[%s198 + $0x58] sm:$0xff]
        %v218 = vld [vmem:[%s198 + $0x60] sm:$0xff]
        %v219 = vld [vmem:[%s198 + $0x68] sm:$0xff]
        %v220 = vld [vmem:[%s198 + $0x70] sm:$0xff]
        %v221 = vld [vmem:[%s198 + $0x78] sm:$0xff]
        %v222 = vld [vmem:[%s198 + $0x80] sm:$0xff]
        %v223 = vld [vmem:[%s198 + $0x88] sm:$0xff]
        %v224 = vld [vmem:[%s198 + $0x90] sm:$0xff]
        %v225 = vld [vmem:[%s198 + $0x98] sm:$0xff]
        %v226 = vld [vmem:[%s198 + $0xa0] sm:$0xff]
        %v227 = vld [vmem:[%s198 + $0xa8] sm:$0xff]
        %v228 = vld [vmem:[%s198 + $0xb0] sm:$0xff]
        %v229 = vld [vmem:[%s198 + $0xb8] sm:$0xff]
        %v230 = vld [vmem:[%s198 + $0xc0] sm:$0xff]
        %v231 = vld [vmem:[%s198 + $0xc8] sm:$0xff]
        %v232 = vld [vmem:[%s198 + $0xd0] sm:$0xff]
        %v233 = vld [vmem:[%s198 + $0xd8] sm:$0xff]
        %v234 = vld [vmem:[%s198 + $0xe0] sm:$0xff]
        %v235 = vld [vmem:[%s198 + $0xe8] sm:$0xff]
        %v236 = vld [vmem:[%s198 + $0xf0] sm:$0xff]
        %v237 = vld [vmem:[%s198 + $0xf8] sm:$0xff]
        %v238 = vld [vmem:[%s198 + $0x100] sm:$0xff]
        %v239 = vld [vmem:[%s198 + $0x108] sm:$0xff]
        %v240 = vld [vmem:[%s198 + $0x110] sm:$0xff]
        %v241 = vld [vmem:[%s198 + $0x118] sm:$0xff]
        %v242 = vld [vmem:[%s198 + $0x120] sm:$0xff]
        %v243 = vld [vmem:[%s198 + $0x128] sm:$0xff]
        %v244 = vld [vmem:[%s198 + $0x130] sm:$0xff]
        %v245 = vld [vmem:[%s198 + $0x138] sm:$0xff]
        %v246 = vld [vmem:[%s198 + $0x140] sm:$0xff]
        %v247 = vld [vmem:[%s198 + $0x148] sm:$0xff]
        %v248 = vld [vmem:[%s198 + $0x150] sm:$0xff]
        %v249 = vld [vmem:[%s198 + $0x158] sm:$0xff]
        %v250 = vld [vmem:[%s198 + $0x160] sm:$0xff]
        %v251 = vld [vmem:[%s198 + $0x168] sm:$0xff]
        %v252 = vld [vmem:[%s198 + $0x170] sm:$0xff]
        %v253 = vld [vmem:[%s198 + $0x178] sm:$0xff]
        %v254 = vld [vmem:[%s198 + $0x180] sm:$0xff]
        %v255 = vld [vmem:[%s198 + $0x188] sm:$0xff]
        %v256 = vld [vmem:[%s198 + $0x190] sm:$0xff]
        %v257 = vld [vmem:[%s198 + $0x198] sm:$0xff]
        %v258 = vld [vmem:[%s198 + $0x1a0] sm:$0xff]
        %v259 = vld [vmem:[%s198 + $0x1a8] sm:$0xff]
        %v260 = vld [vmem:[%s198 + $0x1b0] sm:$0xff]
        %v261 = vld [vmem:[%s198 + $0x1b8] sm:$0xff]
        %v262 = vld [vmem:[%s198 + $0x1c0] sm:$0xff]
        %v263 = vld [vmem:[%s198 + $0x1c8] sm:$0xff]
        %v264 = vld [vmem:[%s198 + $0x1d0] sm:$0xff]
        %v265 = vld [vmem:[%s198 + $0x1d8] sm:$0xff]
        %v266 = vld [vmem:[%s198 + $0x1e0] sm:$0xff]
        %v267 = vld [vmem:[%s198 + $0x1e8] sm:$0xff]
        %v268 = vld [vmem:[%s198 + $0x1f0] sm:$0xff]
        %v269 = vld [vmem:[%s198 + $0x1f8] sm:$0xff]
        %v270 = vld [vmem:[#allocation2] sm:$0xff]
        %v271 = vld [vmem:[#allocation2 + $0x8] sm:$0xff]
        %v272 = vld [vmem:[#allocation2 + $0x10] sm:$0xff]
        %v273 = vld [vmem:[#allocation2 + $0x18] sm:$0xff]
        %v274 = vld [vmem:[#allocation2 + $0x20] sm:$0xff]
        %v275 = vld [vmem:[#allocation2 + $0x28] sm:$0xff]
        %v276 = vld [vmem:[#allocation2 + $0x30] sm:$0xff]
        %v277 = vld [vmem:[#allocation2 + $0x38] sm:$0xff]
        %v278 = vld [vmem:[#allocation2 + $0x40] sm:$0xff]
        %v279 = vld [vmem:[#allocation2 + $0x48] sm:$0xff]
        %v280 = vld [vmem:[#allocation2 + $0x50] sm:$0xff]
        %v281 = vld [vmem:[#allocation2 + $0x58] sm:$0xff]
        %v282 = vld [vmem:[#allocation2 + $0x60] sm:$0xff]
        %v283 = vld [vmem:[#allocation2 + $0x68] sm:$0xff]
        %v284 = vld [vmem:[#allocation2 + $0x70] sm:$0xff]
        %v285 = vld [vmem:[#allocation2 + $0x78] sm:$0xff]
        %v286 = vld [vmem:[#allocation4] sm:$0x1]
        %v288 = vperm.slane %v286, 0
        %290 = vmatpush.msra.mxu0 %v285
        %291 = vmatpush.msra.mxu0 %v284
        %292 = vmatpush.msra.mxu0 %v283
        %293 = vmatpush.msra.mxu0 %v282
        %294 = vmatpush.msra.mxu0 %v281
        %295 = vmatpush.msra.mxu0 %v280
        %296 = vmatpush.msra.mxu0 %v279
        %297 = vmatpush.msra.mxu0 %v278
        %298 = vmatpush.msra.mxu0 %v277
        %299 = vmatpush.msra.mxu0 %v276
        %300 = vmatpush.msra.mxu0 %v275
        %301 = vmatpush.msra.mxu0 %v274
        %302 = vmatpush.msra.mxu0 %v273
        %303 = vmatpush.msra.mxu0 %v272
        %304 = vmatpush.msra.mxu0 %v271
        %305 = vmatpush.msra.mxu0 %v270
        %306 = vmatmul.f32.gmra.mxu0 %v206
        %v307 = vpop.f32.mrf.mxu0
        %v308 = vadd.f32 %v288, %v307
        %309 = vmatmul.f32.gmra.mxu0 %v207
        %v310 = vpop.f32.mrf.mxu0
        %v311 = vadd.f32 %v288, %v310
        %312 = vmatmul.f32.gmra.mxu0 %v208
        %v313 = vpop.f32.mrf.mxu0
        %v314 = vadd.f32 %v288, %v313
        %315 = vmatmul.f32.gmra.mxu0 %v209
        %v316 = vpop.f32.mrf.mxu0
        %v317 = vadd.f32 %v288, %v316
        %318 = vmatmul.f32.gmra.mxu0 %v210
        %v319 = vpop.f32.mrf.mxu0
        %v320 = vadd.f32 %v288, %v319
        %321 = vmatmul.f32.gmra.mxu0 %v211
        %v322 = vpop.f32.mrf.mxu0
        %v323 = vadd.f32 %v288, %v322
        %324 = vmatmul.f32.gmra.mxu0 %v212
        %v325 = vpop.f32.mrf.mxu0
        %v326 = vadd.f32 %v288, %v325
        %327 = vmatmul.f32.gmra.mxu0 %v213
        %v328 = vpop.f32.mrf.mxu0
        %v329 = vadd.f32 %v288, %v328
        %330 = vmatmul.f32.gmra.mxu0 %v214
        %v331 = vpop.f32.mrf.mxu0
        %v332 = vadd.f32 %v288, %v331
        %333 = vmatmul.f32.gmra.mxu0 %v215
        %v334 = vpop.f32.mrf.mxu0
        %v335 = vadd.f32 %v288, %v334
        %336 = vmatmul.f32.gmra.mxu0 %v216
        %v337 = vpop.f32.mrf.mxu0
        %v338 = vadd.f32 %v288, %v337
        %339 = vmatmul.f32.gmra.mxu0 %v217
        %v340 = vpop.f32.mrf.mxu0
        %v341 = vadd.f32 %v288, %v340
        %342 = vmatmul.f32.gmra.mxu0 %v218
        %v343 = vpop.f32.mrf.mxu0
        %v344 = vadd.f32 %v288, %v343
        %345 = vmatmul.f32.gmra.mxu0 %v219
        %v346 = vpop.f32.mrf.mxu0
        %v347 = vadd.f32 %v288, %v346
        %348 = vmatmul.f32.gmra.mxu0 %v220
        %v349 = vpop.f32.mrf.mxu0
        %v350 = vadd.f32 %v288, %v349
        %351 = vmatmul.f32.gmra.mxu0 %v221
        %v352 = vpop.f32.mrf.mxu0
        %v353 = vadd.f32 %v288, %v352
        %354 = vmatmul.f32.gmra.mxu0 %v222
        %v355 = vpop.f32.mrf.mxu0
        %v356 = vadd.f32 %v288, %v355
        %357 = vmatmul.f32.gmra.mxu0 %v223
        %v358 = vpop.f32.mrf.mxu0
        %v359 = vadd.f32 %v288, %v358
        %360 = vmatmul.f32.gmra.mxu0 %v224
        %v361 = vpop.f32.mrf.mxu0
        %v362 = vadd.f32 %v288, %v361
        %363 = vmatmul.f32.gmra.mxu0 %v225
        %v364 = vpop.f32.mrf.mxu0
        %v365 = vadd.f32 %v288, %v364
        %366 = vmatmul.f32.gmra.mxu0 %v226
        %v367 = vpop.f32.mrf.mxu0
        %v368 = vadd.f32 %v288, %v367
        %369 = vmatmul.f32.gmra.mxu0 %v227
        %v370 = vpop.f32.mrf.mxu0
        %v371 = vadd.f32 %v288, %v370
        %372 = vmatmul.f32.gmra.mxu0 %v228
        %v373 = vpop.f32.mrf.mxu0
        %v374 = vadd.f32 %v288, %v373
        %375 = vmatmul.f32.gmra.mxu0 %v229
        %v376 = vpop.f32.mrf.mxu0
        %v377 = vadd.f32 %v288, %v376
        %378 = vmatmul.f32.gmra.mxu0 %v230
        %v379 = vpop.f32.mrf.mxu0
        %v380 = vadd.f32 %v288, %v379
        %381 = vmatmul.f32.gmra.mxu0 %v231
        %v382 = vpop.f32.mrf.mxu0
        %v383 = vadd.f32 %v288, %v382
        %384 = vmatmul.f32.gmra.mxu0 %v232
        %v385 = vpop.f32.mrf.mxu0
        %v386 = vadd.f32 %v288, %v385
        %387 = vmatmul.f32.gmra.mxu0 %v233
        %v388 = vpop.f32.mrf.mxu0
        %v389 = vadd.f32 %v288, %v388
        %390 = vmatmul.f32.gmra.mxu0 %v234
        %v391 = vpop.f32.mrf.mxu0
        %v392 = vadd.f32 %v288, %v391
        %393 = vmatmul.f32.gmra.mxu0 %v235
        %v394 = vpop.f32.mrf.mxu0
        %v395 = vadd.f32 %v288, %v394
        %396 = vmatmul.f32.gmra.mxu0 %v236
        %v397 = vpop.f32.mrf.mxu0
        %v398 = vadd.f32 %v288, %v397
        %399 = vmatmul.f32.gmra.mxu0 %v237
        %v400 = vpop.f32.mrf.mxu0
        %v401 = vadd.f32 %v288, %v400
        %402 = vmatmul.f32.gmra.mxu0 %v238
        %v403 = vpop.f32.mrf.mxu0
        %v404 = vadd.f32 %v288, %v403
        %405 = vmatmul.f32.gmra.mxu0 %v239
        %v406 = vpop.f32.mrf.mxu0
        %v407 = vadd.f32 %v288, %v406
        %408 = vmatmul.f32.gmra.mxu0 %v240
        %v409 = vpop.f32.mrf.mxu0
        %v410 = vadd.f32 %v288, %v409
        %411 = vmatmul.f32.gmra.mxu0 %v241
        %v412 = vpop.f32.mrf.mxu0
        %v413 = vadd.f32 %v288, %v412
        %414 = vmatmul.f32.gmra.mxu0 %v242
        %v415 = vpop.f32.mrf.mxu0
        %v416 = vadd.f32 %v288, %v415
        %417 = vmatmul.f32.gmra.mxu0 %v243
        %v418 = vpop.f32.mrf.mxu0
        %v419 = vadd.f32 %v288, %v418
        %420 = vmatmul.f32.gmra.mxu0 %v244
        %v421 = vpop.f32.mrf.mxu0
        %v422 = vadd.f32 %v288, %v421
        %423 = vmatmul.f32.gmra.mxu0 %v245
        %v424 = vpop.f32.mrf.mxu0
        %v425 = vadd.f32 %v288, %v424
        %426 = vmatmul.f32.gmra.mxu0 %v246
        %v427 = vpop.f32.mrf.mxu0
        %v428 = vadd.f32 %v288, %v427
        %429 = vmatmul.f32.gmra.mxu0 %v247
        %v430 = vpop.f32.mrf.mxu0
        %v431 = vadd.f32 %v288, %v430
        %432 = vmatmul.f32.gmra.mxu0 %v248
        %v433 = vpop.f32.mrf.mxu0
        %v434 = vadd.f32 %v288, %v433
        %435 = vmatmul.f32.gmra.mxu0 %v249
        %v436 = vpop.f32.mrf.mxu0
        %v437 = vadd.f32 %v288, %v436
        %438 = vmatmul.f32.gmra.mxu0 %v250
        %v439 = vpop.f32.mrf.mxu0
        %v440 = vadd.f32 %v288, %v439
        %441 = vmatmul.f32.gmra.mxu0 %v251
        %v442 = vpop.f32.mrf.mxu0
        %v443 = vadd.f32 %v288, %v442
        %444 = vmatmul.f32.gmra.mxu0 %v252
        %v445 = vpop.f32.mrf.mxu0
        %v446 = vadd.f32 %v288, %v445
        %447 = vmatmul.f32.gmra.mxu0 %v253
        %v448 = vpop.f32.mrf.mxu0
        %v449 = vadd.f32 %v288, %v448
        %450 = vmatmul.f32.gmra.mxu0 %v254
        %v451 = vpop.f32.mrf.mxu0
        %v452 = vadd.f32 %v288, %v451
        %453 = vmatmul.f32.gmra.mxu0 %v255
        %v454 = vpop.f32.mrf.mxu0
        %v455 = vadd.f32 %v288, %v454
        %456 = vmatmul.f32.gmra.mxu0 %v256
        %v457 = vpop.f32.mrf.mxu0
        %v458 = vadd.f32 %v288, %v457
        %459 = vmatmul.f32.gmra.mxu0 %v257
        %v460 = vpop.f32.mrf.mxu0
        %v461 = vadd.f32 %v288, %v460
        %462 = vmatmul.f32.gmra.mxu0 %v258
        %v463 = vpop.f32.mrf.mxu0
        %v464 = vadd.f32 %v288, %v463
        %465 = vmatmul.f32.gmra.mxu0 %v259
        %v466 = vpop.f32.mrf.mxu0
        %v467 = vadd.f32 %v288, %v466
        %468 = vmatmul.f32.gmra.mxu0 %v260
        %v469 = vpop.f32.mrf.mxu0
        %v470 = vadd.f32 %v288, %v469
        %471 = vmatmul.f32.gmra.mxu0 %v261
        %v472 = vpop.f32.mrf.mxu0
        %v473 = vadd.f32 %v288, %v472
        %474 = vmatmul.f32.gmra.mxu0 %v262
        %v475 = vpop.f32.mrf.mxu0
        %v476 = vadd.f32 %v288, %v475
        %477 = vmatmul.f32.gmra.mxu0 %v263
        %v478 = vpop.f32.mrf.mxu0
        %v479 = vadd.f32 %v288, %v478
        %480 = vmatmul.f32.gmra.mxu0 %v264
        %v481 = vpop.f32.mrf.mxu0
        %v482 = vadd.f32 %v288, %v481
        %483 = vmatmul.f32.gmra.mxu0 %v265
        %v484 = vpop.f32.mrf.mxu0
        %v485 = vadd.f32 %v288, %v484
        %486 = vmatmul.f32.gmra.mxu0 %v266
        %v487 = vpop.f32.mrf.mxu0
        %v488 = vadd.f32 %v288, %v487
        %489 = vmatmul.f32.gmra.mxu0 %v267
        %v490 = vpop.f32.mrf.mxu0
        %v491 = vadd.f32 %v288, %v490
        %492 = vmatmul.f32.gmra.mxu0 %v268
        %v493 = vpop.f32.mrf.mxu0
        %v494 = vadd.f32 %v288, %v493
        %495 = vmatmul.f32.gmra.mxu0 %v269
        %v496 = vpop.f32.mrf.mxu0
        %v497 = vadd.f32 %v288, %v496
        %498 = vdwg.mxu0
        %v499 = vmax.f32 %v308, 0.0
        %v500 = vmax.f32 %v311, 0.0
        %v501 = vmax.f32 %v314, 0.0
        %v502 = vmax.f32 %v317, 0.0
        %v503 = vmax.f32 %v320, 0.0
        %v504 = vmax.f32 %v323, 0.0
        %v505 = vmax.f32 %v326, 0.0
        %v506 = vmax.f32 %v329, 0.0
        %v507 = vmax.f32 %v332, 0.0
        %v508 = vmax.f32 %v335, 0.0
        %v509 = vmax.f32 %v338, 0.0
        %v510 = vmax.f32 %v341, 0.0
        %v511 = vmax.f32 %v344, 0.0
        %v512 = vmax.f32 %v347, 0.0
        %v513 = vmax.f32 %v350, 0.0
        %v514 = vmax.f32 %v353, 0.0
        %v515 = vmax.f32 %v356, 0.0
        %v516 = vmax.f32 %v359, 0.0
        %v517 = vmax.f32 %v362, 0.0
        %v518 = vmax.f32 %v365, 0.0
        %v519 = vmax.f32 %v368, 0.0
        %v520 = vmax.f32 %v371, 0.0
        %v521 = vmax.f32 %v374, 0.0
        %v522 = vmax.f32 %v377, 0.0
        %v523 = vmax.f32 %v380, 0.0
        %v524 = vmax.f32 %v383, 0.0
        %v525 = vmax.f32 %v386, 0.0
        %v526 = vmax.f32 %v389, 0.0
        %v527 = vmax.f32 %v392, 0.0
        %v528 = vmax.f32 %v395, 0.0
        %v529 = vmax.f32 %v398, 0.0
        %v530 = vmax.f32 %v401, 0.0
        %v531 = vmax.f32 %v404, 0.0
        %v532 = vmax.f32 %v407, 0.0
        %v533 = vmax.f32 %v410, 0.0
        %v534 = vmax.f32 %v413, 0.0
        %v535 = vmax.f32 %v416, 0.0
        %v536 = vmax.f32 %v419, 0.0
        %v537 = vmax.f32 %v422, 0.0
        %v538 = vmax.f32 %v425, 0.0
        %v539 = vmax.f32 %v428, 0.0
        %v540 = vmax.f32 %v431, 0.0
        %v541 = vmax.f32 %v434, 0.0
        %v542 = vmax.f32 %v437, 0.0
        %v543 = vmax.f32 %v440, 0.0
        %v544 = vmax.f32 %v443, 0.0
        %v545 = vmax.f32 %v446, 0.0
        %v546 = vmax.f32 %v449, 0.0
        %v547 = vmax.f32 %v452, 0.0
        %v548 = vmax.f32 %v455, 0.0
        %v549 = vmax.f32 %v458, 0.0
        %v550 = vmax.f32 %v461, 0.0
        %v551 = vmax.f32 %v464, 0.0
        %v552 = vmax.f32 %v467, 0.0
        %v553 = vmax.f32 %v470, 0.0
        %v554 = vmax.f32 %v473, 0.0
        %v555 = vmax.f32 %v476, 0.0
        %v556 = vmax.f32 %v479, 0.0
        %v557 = vmax.f32 %v482, 0.0
        %v558 = vmax.f32 %v485, 0.0
        %v559 = vmax.f32 %v488, 0.0
        %v560 = vmax.f32 %v491, 0.0
        %v561 = vmax.f32 %v494, 0.0
        %v562 = vmax.f32 %v497, 0.0
        %563 = vst [vmem:[%s204] sm:$0xff] %v499
        %564 = vst [vmem:[%s204 + $0x8] sm:$0xff] %v500
        %565 = vst [vmem:[%s204 + $0x10] sm:$0xff] %v501
        %566 = vst [vmem:[%s204 + $0x18] sm:$0xff] %v502
        %567 = vst [vmem:[%s204 + $0x20] sm:$0xff] %v503
        %568 = vst [vmem:[%s204 + $0x28] sm:$0xff] %v504
        %569 = vst [vmem:[%s204 + $0x30] sm:$0xff] %v505
        %570 = vst [vmem:[%s204 + $0x38] sm:$0xff] %v506
        %571 = vst [vmem:[%s204 + $0x40] sm:$0xff] %v507
        %572 = vst [vmem:[%s204 + $0x48] sm:$0xff] %v508
        %573 = vst [vmem:[%s204 + $0x50] sm:$0xff] %v509
        %574 = vst [vmem:[%s204 + $0x58] sm:$0xff] %v510
        %575 = vst [vmem:[%s204 + $0x60] sm:$0xff] %v511
        %576 = vst [vmem:[%s204 + $0x68] sm:$0xff] %v512
        %577 = vst [vmem:[%s204 + $0x70] sm:$0xff] %v513
        %578 = vst [vmem:[%s204 + $0x78] sm:$0xff] %v514
        %579 = vst [vmem:[%s204 + $0x80] sm:$0xff] %v515
        %580 = vst [vmem:[%s204 + $0x88] sm:$0xff] %v516
        %581 = vst [vmem:[%s204 + $0x90] sm:$0xff] %v517
        %582 = vst [vmem:[%s204 + $0x98] sm:$0xff] %v518
        %583 = vst [vmem:[%s204 + $0xa0] sm:$0xff] %v519
        %584 = vst [vmem:[%s204 + $0xa8] sm:$0xff] %v520
        %585 = vst [vmem:[%s204 + $0xb0] sm:$0xff] %v521
        %586 = vst [vmem:[%s204 + $0xb8] sm:$0xff] %v522
        %587 = vst [vmem:[%s204 + $0xc0] sm:$0xff] %v523
        %588 = vst [vmem:[%s204 + $0xc8] sm:$0xff] %v524
        %589 = vst [vmem:[%s204 + $0xd0] sm:$0xff] %v525
        %590 = vst [vmem:[%s204 + $0xd8] sm:$0xff] %v526
        %591 = vst [vmem:[%s204 + $0xe0] sm:$0xff] %v527
        %592 = vst [vmem:[%s204 + $0xe8] sm:$0xff] %v528
        %593 = vst [vmem:[%s204 + $0xf0] sm:$0xff] %v529
        %594 = vst [vmem:[%s204 + $0xf8] sm:$0xff] %v530
        %595 = vst [vmem:[%s204 + $0x100] sm:$0xff] %v531
        %596 = vst [vmem:[%s204 + $0x108] sm:$0xff] %v532
        %597 = vst [vmem:[%s204 + $0x110] sm:$0xff] %v533
        %598 = vst [vmem:[%s204 + $0x118] sm:$0xff] %v534
        %599 = vst [vmem:[%s204 + $0x120] sm:$0xff] %v535
        %600 = vst [vmem:[%s204 + $0x128] sm:$0xff] %v536
        %601 = vst [vmem:[%s204 + $0x130] sm:$0xff] %v537
        %602 = vst [vmem:[%s204 + $0x138] sm:$0xff] %v538
        %603 = vst [vmem:[%s204 + $0x140] sm:$0xff] %v539
        %604 = vst [vmem:[%s204 + $0x148] sm:$0xff] %v540
        %605 = vst [vmem:[%s204 + $0x150] sm:$0xff] %v541
        %606 = vst [vmem:[%s204 + $0x158] sm:$0xff] %v542
        %607 = vst [vmem:[%s204 + $0x160] sm:$0xff] %v543
        %608 = vst [vmem:[%s204 + $0x168] sm:$0xff] %v544
        %609 = vst [vmem:[%s204 + $0x170] sm:$0xff] %v545
        %610 = vst [vmem:[%s204 + $0x178] sm:$0xff] %v546
        %611 = vst [vmem:[%s204 + $0x180] sm:$0xff] %v547
        %612 = vst [vmem:[%s204 + $0x188] sm:$0xff] %v548
        %613 = vst [vmem:[%s204 + $0x190] sm:$0xff] %v549
        %614 = vst [vmem:[%s204 + $0x198] sm:$0xff] %v550
        %615 = vst [vmem:[%s204 + $0x1a0] sm:$0xff] %v551
        %616 = vst [vmem:[%s204 + $0x1a8] sm:$0xff] %v552
        %617 = vst [vmem:[%s204 + $0x1b0] sm:$0xff] %v553
        %618 = vst [vmem:[%s204 + $0x1b8] sm:$0xff] %v554
        %619 = vst [vmem:[%s204 + $0x1c0] sm:$0xff] %v555
        %620 = vst [vmem:[%s204 + $0x1c8] sm:$0xff] %v556
        %621 = vst [vmem:[%s204 + $0x1d0] sm:$0xff] %v557
        %622 = vst [vmem:[%s204 + $0x1d8] sm:$0xff] %v558
        %623 = vst [vmem:[%s204 + $0x1e0] sm:$0xff] %v559
        %624 = vst [vmem:[%s204 + $0x1e8] sm:$0xff] %v560
        %625 = vst [vmem:[%s204 + $0x1f0] sm:$0xff] %v561
        %626 = vst [vmem:[%s204 + $0x1f8] sm:$0xff] %v562
        %s627 = smul.u32 64, %s16
        %p628 = scmp.lt.s32.totalorder %s627, 255
        %s629 = scalar_select %p628, %s627, 255
        %s630 = smul.addr %s629, 8
        %s631 = scalar_lea.vmem %s3, %s630
        // Predicated region
        $region41: #{convnet_forward.7} parent=31 // pred_check
          %p632 = pneg %p102
        $region42: #{convnet_forward.7} parent=31 // pred_check_branch
          %634 = sbr.rel (%p632) target = $region44
        $region43: #{convnet_forward.7} parent=31 // pred_region
          %s635 = smul.u32 64, %s16
        $region44: #{convnet_forward.7} parent=31 // pred_fallthru
          _
      $region32: #{convnet_forward.7} parent=5 // pred_fallthru
        _
      %p636 = scmp.le.s32.totalorder 2, %s11
      // Predicated region
      $region45: #{convnet_forward.7} parent=5 // pred_check
        %p637 = pneg %p636
      $region46: #{convnet_forward.7} parent=5 // pred_check_branch
        %639 = sbr.rel (%p637) target = $region48
      $region47: #{convnet_forward.7} parent=5 // pred_region
        %s640 = ssub.s32 %s11, 2
        // Predicated region
        $region49: #{convnet_forward.7} parent=47 // pred_check
          %p641 = pneg %p108
        $region50: #{convnet_forward.7} parent=47 // pred_check_branch
          %643 = sbr.rel (%p641) target = $region52
        $region51: #{convnet_forward.7} parent=47 // pred_region
          %s644 = smul.u32 64, %s17
          %p645 = scmp.lt.s32.totalorder %s644, 255
          %s646 = scalar_select %p645, %s644, 255
          %s647 = smul.addr %s646, 8
          %s648 = scalar_lea.vmem %s3, %s647
        $region52: #{convnet_forward.7} parent=47 // pred_fallthru
          _
      $region48: #{convnet_forward.7} parent=5 // pred_fallthru
        _
    $region6: #{convnet_forward.7} parent=1 // loop_footer
      %s15 = sadd.s32 1, %s11
    $region7: #{convnet_forward.7} parent=1 // loop_footer_branch
      %10 = sbr.rel target = $region3
    $region8: #{convnet_forward.7} parent=1 // loop_exit
      _
    %649 = vsyncpa [#allocation3], 1
    %s650 = scalar_lea.sflag [#allocation3], 1
    %651 = vsyncpa %s650, 1
    %652 = vsyncpa [#allocation5], 1

// kernel: convnet_forward.8
$region0: #{convnet_forward.8}
  #allocation0 [shape = 'u32[]', space=smem, size = 0x4, offset = 0x4, fixed_abs, tag = 'smem constant byte address 0x4 - core index']
  #allocation1 [shape = 'u32[72,128]{1,0:T(1,128)}', space=vmem, size = 0x9000, scoped, tag = 'internal scratch']
  %s0 = inlined_call_operand.vmem [shape: f32[1024,256], index: 0, kind: input, shape index: {}]
  %s1 = inlined_call_operand.vmem [shape: f32[1024,128], index: 1, kind: output, shape index: {}]
  %s2 = sld [smem:[#allocation0]]
  $region37: #{convnet_forward.8} parent=0
    _
  %s4 = ssub.s32 1, %s2
  %s5 = scalar_select 0, %s4, %s2
  loop: start=0, step=1, limit=4
  $region2: #{convnet_forward.8} parent=0 // loop_pre_header
    _
  $region3: #{convnet_forward.8} parent=0 // loop_header
    %s7 = sphi 0, %s11
    %p8 = scmp.ge.s32.totalorder %s7, 4
    %s17 = sphi 0, %s19
    %s20 = sphi 0, %s17
    %s21 = sphi 0, %s20
    %s37 = sphi 0, %s21
    %s43 = sphi 0, %s45
    %s46 = sphi 0, %s43
    %s47 = sphi 0, %s46
    %s63 = sphi 0, %s47
  $region4: #{convnet_forward.8} parent=0 // loop_header_branch
    %10 = sbr.rel (%p8) target = $region8
  $region5: #{convnet_forward.8} parent=0 // loop_body
    %s12 = ssub.s32 %s7, 1
    %s13 = ssub.s32 %s7, 2
    %s14 = sadd.s32 %s7, 1
    %s15 = ssub.s32 %s7, %s14
    %p16 = scmp.eq.s32.totalorder %s15, 0
    %s18 = sadd.s32 %s17, 1
    %s19 = scalar_select %p16, %s17, %s18
    %p22 = pneg %p16
    %p23 = scmp.eq.s32.totalorder %s7, 1
    %p24 = por %p22, %p23
    %p25 = scmp.ne.s32.totalorder %s17, %s20
    %p26 = scmp.eq.s32.totalorder %s7, 0
    %p27 = por %p25, %p26
    %p28 = scmp.ne.s32.totalorder %s17, %s20
    %p29 = scmp.eq.s32.totalorder %s12, 1
    %p30 = por %p28, %p29
    %p31 = scmp.ne.s32.totalorder %s20, %s21
    %p32 = scmp.eq.s32.totalorder %s12, 0
    %p33 = por %p31, %p32
    %p34 = scmp.ne.s32.totalorder %s20, %s21
    %p35 = scmp.eq.s32.totalorder %s13, 1
    %p36 = por %p34, %p35
    %p38 = scmp.ne.s32.totalorder %s21, %s37
    %p39 = scmp.eq.s32.totalorder %s13, 0
    %p40 = por %p38, %p39
    %s41 = ssub.s32 %s7, %s14
    %p42 = scmp.eq.s32.totalorder %s41, 0
    %s44 = sadd.s32 %s43, 1
    %s45 = scalar_select %p42, %s43, %s44
    %p48 = pneg %p42
    %p49 = scmp.eq.s32.totalorder %s7, 1
    %p50 = por %p48, %p49
    %p51 = scmp.ne.s32.totalorder %s43, %s46
    %p52 = scmp.eq.s32.totalorder %s7, 0
    %p53 = por %p51, %p52
    %p54 = scmp.ne.s32.totalorder %s43, %s46
    %p55 = scmp.eq.s32.totalorder %s12, 1
    %p56 = por %p54, %p55
    %p57 = scmp.ne.s32.totalorder %s46, %s47
    %p58 = scmp.eq.s32.totalorder %s12, 0
    %p59 = por %p57, %p58
    %p60 = scmp.ne.s32.totalorder %s46, %s47
    %p61 = scmp.eq.s32.totalorder %s13, 1
    %p62 = por %p60, %p61
    %p64 = scmp.ne.s32.totalorder %s47, %s63
    %p65 = scmp.eq.s32.totalorder %s13, 0
    %p66 = por %p64, %p65
    %p67 = scmp.le.s32.totalorder 1, %s7
    %p68 = scmp.lt.s32.totalorder %s7, 3
    %p69 = pnand %p67, %p68
    %p70 = pneg %p69
    // Predicated region
    $region9: #{convnet_forward.8} parent=5 // pred_check
      _
    $region10: #{convnet_forward.8} parent=5 // pred_check_branch
      %72 = sbr.rel (%p69) target = $region12
    $region11: #{convnet_forward.8} parent=5 // pred_region
      %s73 = ssub.s32 %s7, 1
    $region12: #{convnet_forward.8} parent=5 // pred_fallthru
      _
    %p74 = scmp.lt.s32.totalorder %s7, 2
    // Predicated region
    $region13: #{convnet_forward.8} parent=5 // pred_check
      %p75 = pneg %p74
    $region14: #{convnet_forward.8} parent=5 // pred_check_branch
      %77 = sbr.rel (%p75) target = $region16
    $region15: #{convnet_forward.8} parent=5 // pred_region
      // Predicated region
      $region17: #{convnet_forward.8} parent=15 // pred_check
        %p78 = pneg %p27
      $region18: #{convnet_forward.8} parent=15 // pred_check_branch
        %80 = sbr.rel (%p78) target = $region20
      $region19: #{convnet_forward.8} parent=15 // pred_region
        %s81 = smul.u32 64, %s7
        %p82 = scmp.lt.s32.totalorder %s81, 127
        %s83 = scalar_select %p82, %s81, 127
        %s84 = smul.addr %s83, 2
        %s85 = smul.addr %s84, 8
        %s86 = scalar_lea.vmem %s0, %s85
        %s87 = smul.u32 64, %s7
      $region20: #{convnet_forward.8} parent=15 // pred_fallthru
        _
    $region16: #{convnet_forward.8} parent=5 // pred_fallthru
      _
    %p88 = scmp.le.s32.totalorder 1, %s7
    %p89 = scmp.lt.s32.totalorder %s7, 3
    %p90 = pnand %p88, %p89
    %p91 = pneg %p90
    // Predicated region
    $region21: #{convnet_forward.8} parent=5 // pred_check
      _
    $region22: #{convnet_forward.8} parent=5 // pred_check_branch
      %93 = sbr.rel (%p90) target = $region24
    $region23: #{convnet_forward.8} parent=5 // pred_region
      %s94 = ssub.s32 %s7, 1
      %s95 = smul.u32 64, %s12
      %p96 = scmp.lt.s32.totalorder %s95, 127
      %s97 = scalar_select %p96, %s95, 127
      %s98 = smul.addr %s97, 2
      %s99 = smul.addr %s98, 8
      %s100 = scalar_lea.vmem %s0, %s99
      %p101 = pneg %p33
      %p102 = pneg %p30
      %p103 = pneg %p59
      %p104 = pneg %p56
      %s105 = smul.u32 64, %s12
      %p106 = scmp.lt.s32.totalorder %s105, 127
      %s107 = scalar_select %p106, %s105, 127
      %s108 = smul.addr %s107, 8
      %s109 = scalar_lea.vmem %s1, %s108
      %s110 = smul.u32 64, %s12
      %p111 = scmp.lt.s32.totalorder %s110, 127
      %s112 = scalar_select %p111, %s110, 127
      %s113 = smul.addr %s112, 2
      %s114 = smul.addr %s113, 8
      %s115 = scalar_lea.vmem %s0, %s114
      %s116 = smul.u32 64, %s12
      %s117 = smul.u32 64, %s12
      %p118 = scmp.lt.s32.totalorder %s117, 127
      %s119 = scalar_select %p118, %s117, 127
      %s120 = smul.addr %s119, 8
      %s121 = scalar_lea.vmem %s1, %s120
      %s122 = smul.u32 64, %s12
      %v123 = vld [vmem:[%s115] sm:$0xff]
      %v124 = vld [vmem:[%s115 + $0x10] sm:$0xff]
      %v125 = vld [vmem:[%s115 + $0x20] sm:$0xff]
      %v126 = vld [vmem:[%s115 + $0x30] sm:$0xff]
      %v127 = vld [vmem:[%s115 + $0x40] sm:$0xff]
      %v128 = vld [vmem:[%s115 + $0x50] sm:$0xff]
      %v129 = vld [vmem:[%s115 + $0x60] sm:$0xff]
      %v130 = vld [vmem:[%s115 + $0x70] sm:$0xff]
      %v131 = vld [vmem:[%s115 + $0x80] sm:$0xff]
      %v132 = vld [vmem:[%s115 + $0x90] sm:$0xff]
      %v133 = vld [vmem:[%s115 + $0xa0] sm:$0xff]
      %v134 = vld [vmem:[%s115 + $0xb0] sm:$0xff]
      %v135 = vld [vmem:[%s115 + $0xc0] sm:$0xff]
      %v136 = vld [vmem:[%s115 + $0xd0] sm:$0xff]
      %v137 = vld [vmem:[%s115 + $0xe0] sm:$0xff]
      %v138 = vld [vmem:[%s115 + $0xf0] sm:$0xff]
      %v139 = vld [vmem:[%s115 + $0x100] sm:$0xff]
      %v140 = vld [vmem:[%s115 + $0x110] sm:$0xff]
      %v141 = vld [vmem:[%s115 + $0x120] sm:$0xff]
      %v142 = vld [vmem:[%s115 + $0x130] sm:$0xff]
      %v143 = vld [vmem:[%s115 + $0x140] sm:$0xff]
      %v144 = vld [vmem:[%s115 + $0x150] sm:$0xff]
      %v145 = vld [vmem:[%s115 + $0x160] sm:$0xff]
      %v146 = vld [vmem:[%s115 + $0x170] sm:$0xff]
      %v147 = vld [vmem:[%s115 + $0x180] sm:$0xff]
      %v148 = vld [vmem:[%s115 + $0x190] sm:$0xff]
      %v149 = vld [vmem:[%s115 + $0x1a0] sm:$0xff]
      %v150 = vld [vmem:[%s115 + $0x1b0] sm:$0xff]
      %v151 = vld [vmem:[%s115 + $0x1c0] sm:$0xff]
      %v152 = vld [vmem:[%s115 + $0x1d0] sm:$0xff]
      %v153 = vld [vmem:[%s115 + $0x1e0] sm:$0xff]
      %v154 = vld [vmem:[%s115 + $0x1f0] sm:$0xff]
      %v155 = vld [vmem:[%s115 + $0x200] sm:$0xff]
      %v156 = vld [vmem:[%s115 + $0x210] sm:$0xff]
      %v157 = vld [vmem:[%s115 + $0x220] sm:$0xff]
      %v158 = vld [vmem:[%s115 + $0x230] sm:$0xff]
      %v159 = vld [vmem:[%s115 + $0x240] sm:$0xff]
      %v160 = vld [vmem:[%s115 + $0x250] sm:$0xff]
      %v161 = vld [vmem:[%s115 + $0x260] sm:$0xff]
      %v162 = vld [vmem:[%s115 + $0x270] sm:$0xff]
      %v163 = vld [vmem:[%s115 + $0x280] sm:$0xff]
      %v164 = vld [vmem:[%s115 + $0x290] sm:$0xff]
      %v165 = vld [vmem:[%s115 + $0x2a0] sm:$0xff]
      %v166 = vld [vmem:[%s115 + $0x2b0] sm:$0xff]
      %v167 = vld [vmem:[%s115 + $0x2c0] sm:$0xff]
      %v168 = vld [vmem:[%s115 + $0x2d0] sm:$0xff]
      %v169 = vld [vmem:[%s115 + $0x2e0] sm:$0xff]
      %v170 = vld [vmem:[%s115 + $0x2f0] sm:$0xff]
      %v171 = vld [vmem:[%s115 + $0x300] sm:$0xff]
      %v172 = vld [vmem:[%s115 + $0x310] sm:$0xff]
      %v173 = vld [vmem:[%s115 + $0x320] sm:$0xff]
      %v174 = vld [vmem:[%s115 + $0x330] sm:$0xff]
      %v175 = vld [vmem:[%s115 + $0x340] sm:$0xff]
      %v176 = vld [vmem:[%s115 + $0x350] sm:$0xff]
      %v177 = vld [vmem:[%s115 + $0x360] sm:$0xff]
      %v178 = vld [vmem:[%s115 + $0x370] sm:$0xff]
      %v179 = vld [vmem:[%s115 + $0x380] sm:$0xff]
      %v180 = vld [vmem:[%s115 + $0x390] sm:$0xff]
      %v181 = vld [vmem:[%s115 + $0x3a0] sm:$0xff]
      %v182 = vld [vmem:[%s115 + $0x3b0] sm:$0xff]
      %v183 = vld [vmem:[%s115 + $0x3c0] sm:$0xff]
      %v184 = vld [vmem:[%s115 + $0x3d0] sm:$0xff]
      %v185 = vld [vmem:[%s115 + $0x3e0] sm:$0xff]
      %v186 = vld [vmem:[%s115 + $0x3f0] sm:$0xff]
      %v187 = vld [vmem:[%s115 + $0x8] sm:$0xff]
      %v188 = vld [vmem:[%s115 + $0x18] sm:$0xff]
      %v189 = vld [vmem:[%s115 + $0x28] sm:$0xff]
      %v190 = vld [vmem:[%s115 + $0x38] sm:$0xff]
      %v191 = vld [vmem:[%s115 + $0x48] sm:$0xff]
      %v192 = vld [vmem:[%s115 + $0x58] sm:$0xff]
      %v193 = vld [vmem:[%s115 + $0x68] sm:$0xff]
      %v194 = vld [vmem:[%s115 + $0x78] sm:$0xff]
      %v195 = vld [vmem:[%s115 + $0x88] sm:$0xff]
      %v196 = vld [vmem:[%s115 + $0x98] sm:$0xff]
      %v197 = vld [vmem:[%s115 + $0xa8] sm:$0xff]
      %v198 = vld [vmem:[%s115 + $0xb8] sm:$0xff]
      %v199 = vld [vmem:[%s115 + $0xc8] sm:$0xff]
      %v200 = vld [vmem:[%s115 + $0xd8] sm:$0xff]
      %v201 = vld [vmem:[%s115 + $0xe8] sm:$0xff]
      %v202 = vld [vmem:[%s115 + $0xf8] sm:$0xff]
      %v203 = vld [vmem:[%s115 + $0x108] sm:$0xff]
      %v204 = vld [vmem:[%s115 + $0x118] sm:$0xff]
      %v205 = vld [vmem:[%s115 + $0x128] sm:$0xff]
      %v206 = vld [vmem:[%s115 + $0x138] sm:$0xff]
      %v207 = vld [vmem:[%s115 + $0x148] sm:$0xff]
      %v208 = vld [vmem:[%s115 + $0x158] sm:$0xff]
      %v209 = vld [vmem:[%s115 + $0x168] sm:$0xff]
      %v210 = vld [vmem:[%s115 + $0x178] sm:$0xff]
      %v211 = vld [vmem:[%s115 + $0x188] sm:$0xff]
      %v212 = vld [vmem:[%s115 + $0x198] sm:$0xff]
      %v213 = vld [vmem:[%s115 + $0x1a8] sm:$0xff]
      %v214 = vld [vmem:[%s115 + $0x1b8] sm:$0xff]
      %v215 = vld [vmem:[%s115 + $0x1c8] sm:$0xff]
      %v216 = vld [vmem:[%s115 + $0x1d8] sm:$0xff]
      %v217 = vld [vmem:[%s115 + $0x1e8] sm:$0xff]
      %v218 = vld [vmem:[%s115 + $0x1f8] sm:$0xff]
      %v219 = vld [vmem:[%s115 + $0x208] sm:$0xff]
      %v220 = vld [vmem:[%s115 + $0x218] sm:$0xff]
      %v221 = vld [vmem:[%s115 + $0x228] sm:$0xff]
      %v222 = vld [vmem:[%s115 + $0x238] sm:$0xff]
      %v223 = vld [vmem:[%s115 + $0x248] sm:$0xff]
      %v224 = vld [vmem:[%s115 + $0x258] sm:$0xff]
      %v225 = vld [vmem:[%s115 + $0x268] sm:$0xff]
      %v226 = vld [vmem:[%s115 + $0x278] sm:$0xff]
      %v227 = vld [vmem:[%s115 + $0x288] sm:$0xff]
      %v228 = vld [vmem:[%s115 + $0x298] sm:$0xff]
      %v229 = vld [vmem:[%s115 + $0x2a8] sm:$0xff]
      %v230 = vld [vmem:[%s115 + $0x2b8] sm:$0xff]
      %v231 = vld [vmem:[%s115 + $0x2c8] sm:$0xff]
      %v232 = vld [vmem:[%s115 + $0x2d8] sm:$0xff]
      %v233 = vld [vmem:[%s115 + $0x2e8] sm:$0xff]
      %v234 = vld [vmem:[%s115 + $0x2f8] sm:$0xff]
      %v235 = vld [vmem:[%s115 + $0x308] sm:$0xff]
      %v236 = vld [vmem:[%s115 + $0x318] sm:$0xff]
      %v237 = vld [vmem:[%s115 + $0x328] sm:$0xff]
      %v238 = vld [vmem:[%s115 + $0x338] sm:$0xff]
      %v239 = vld [vmem:[%s115 + $0x348] sm:$0xff]
      %v240 = vld [vmem:[%s115 + $0x358] sm:$0xff]
      %v241 = vld [vmem:[%s115 + $0x368] sm:$0xff]
      %v242 = vld [vmem:[%s115 + $0x378] sm:$0xff]
      %v243 = vld [vmem:[%s115 + $0x388] sm:$0xff]
      %v244 = vld [vmem:[%s115 + $0x398] sm:$0xff]
      %v245 = vld [vmem:[%s115 + $0x3a8] sm:$0xff]
      %v246 = vld [vmem:[%s115 + $0x3b8] sm:$0xff]
      %v247 = vld [vmem:[%s115 + $0x3c8] sm:$0xff]
      %v248 = vld [vmem:[%s115 + $0x3d8] sm:$0xff]
      %v249 = vld [vmem:[%s115 + $0x3e8] sm:$0xff]
      %v250 = vld [vmem:[%s115 + $0x3f8] sm:$0xff]
      %v251 = vmax.f32 %v123, %v187
      %v252 = vmax.f32 %v124, %v188
      %v253 = vmax.f32 %v125, %v189
      %v254 = vmax.f32 %v126, %v190
      %v255 = vmax.f32 %v127, %v191
      %v256 = vmax.f32 %v128, %v192
      %v257 = vmax.f32 %v129, %v193
      %v258 = vmax.f32 %v130, %v194
      %v259 = vmax.f32 %v131, %v195
      %v260 = vmax.f32 %v132, %v196
      %v261 = vmax.f32 %v133, %v197
      %v262 = vmax.f32 %v134, %v198
      %v263 = vmax.f32 %v135, %v199
      %v264 = vmax.f32 %v136, %v200
      %v265 = vmax.f32 %v137, %v201
      %v266 = vmax.f32 %v138, %v202
      %v267 = vmax.f32 %v139, %v203
      %v268 = vmax.f32 %v140, %v204
      %v269 = vmax.f32 %v141, %v205
      %v270 = vmax.f32 %v142, %v206
      %v271 = vmax.f32 %v143, %v207
      %v272 = vmax.f32 %v144, %v208
      %v273 = vmax.f32 %v145, %v209
      %v274 = vmax.f32 %v146, %v210
      %v275 = vmax.f32 %v147, %v211
      %v276 = vmax.f32 %v148, %v212
      %v277 = vmax.f32 %v149, %v213
      %v278 = vmax.f32 %v150, %v214
      %v279 = vmax.f32 %v151, %v215
      %v280 = vmax.f32 %v152, %v216
      %v281 = vmax.f32 %v153, %v217
      %v282 = vmax.f32 %v154, %v218
      %v283 = vmax.f32 %v155, %v219
      %v284 = vmax.f32 %v156, %v220
      %v285 = vmax.f32 %v157, %v221
      %v286 = vmax.f32 %v158, %v222
      %v287 = vmax.f32 %v159, %v223
      %v288 = vmax.f32 %v160, %v224
      %v289 = vmax.f32 %v161, %v225
      %v290 = vmax.f32 %v162, %v226
      %v291 = vmax.f32 %v163, %v227
      %v292 = vmax.f32 %v164, %v228
      %v293 = vmax.f32 %v165, %v229
      %v294 = vmax.f32 %v166, %v230
      %v295 = vmax.f32 %v167, %v231
      %v296 = vmax.f32 %v168, %v232
      %v297 = vmax.f32 %v169, %v233
      %v298 = vmax.f32 %v170, %v234
      %v299 = vmax.f32 %v171, %v235
      %v300 = vmax.f32 %v172, %v236
      %v301 = vmax.f32 %v173, %v237
      %v302 = vmax.f32 %v174, %v238
      %v303 = vmax.f32 %v175, %v239
      %v304 = vmax.f32 %v176, %v240
      %v305 = vmax.f32 %v177, %v241
      %v306 = vmax.f32 %v178, %v242
      %v307 = vmax.f32 %v179, %v243
      %v308 = vmax.f32 %v180, %v244
      %v309 = vmax.f32 %v181, %v245
      %v310 = vmax.f32 %v182, %v246
      %v311 = vmax.f32 %v183, %v247
      %v312 = vmax.f32 %v184, %v248
      %v313 = vmax.f32 %v185, %v249
      %v314 = vmax.f32 %v186, %v250
      %315 = vst [vmem:[%s121] sm:$0xff] %v251
      %316 = vst [vmem:[%s121 + $0x8] sm:$0xff] %v252
      %317 = vst [vmem:[%s121 + $0x10] sm:$0xff] %v253
      %318 = vst [vmem:[%s121 + $0x18] sm:$0xff] %v254
      %319 = vst [vmem:[%s121 + $0x20] sm:$0xff] %v255
      %320 = vst [vmem:[%s121 + $0x28] sm:$0xff] %v256
      %321 = vst [vmem:[%s121 + $0x30] sm:$0xff] %v257
      %322 = vst [vmem:[%s121 + $0x38] sm:$0xff] %v258
      %323 = vst [vmem:[%s121 + $0x40] sm:$0xff] %v259
      %324 = vst [vmem:[%s121 + $0x48] sm:$0xff] %v260
      %325 = vst [vmem:[%s121 + $0x50] sm:$0xff] %v261
      %326 = vst [vmem:[%s121 + $0x58] sm:$0xff] %v262
      %327 = vst [vmem:[%s121 + $0x60] sm:$0xff] %v263
      %328 = vst [vmem:[%s121 + $0x68] sm:$0xff] %v264
      %329 = vst [vmem:[%s121 + $0x70] sm:$0xff] %v265
      %330 = vst [vmem:[%s121 + $0x78] sm:$0xff] %v266
      %331 = vst [vmem:[%s121 + $0x80] sm:$0xff] %v267
      %332 = vst [vmem:[%s121 + $0x88] sm:$0xff] %v268
      %333 = vst [vmem:[%s121 + $0x90] sm:$0xff] %v269
      %334 = vst [vmem:[%s121 + $0x98] sm:$0xff] %v270
      %335 = vst [vmem:[%s121 + $0xa0] sm:$0xff] %v271
      %336 = vst [vmem:[%s121 + $0xa8] sm:$0xff] %v272
      %337 = vst [vmem:[%s121 + $0xb0] sm:$0xff] %v273
      %338 = vst [vmem:[%s121 + $0xb8] sm:$0xff] %v274
      %339 = vst [vmem:[%s121 + $0xc0] sm:$0xff] %v275
      %340 = vst [vmem:[%s121 + $0xc8] sm:$0xff] %v276
      %341 = vst [vmem:[%s121 + $0xd0] sm:$0xff] %v277
      %342 = vst [vmem:[%s121 + $0xd8] sm:$0xff] %v278
      %343 = vst [vmem:[%s121 + $0xe0] sm:$0xff] %v279
      %344 = vst [vmem:[%s121 + $0xe8] sm:$0xff] %v280
      %345 = vst [vmem:[%s121 + $0xf0] sm:$0xff] %v281
      %346 = vst [vmem:[%s121 + $0xf8] sm:$0xff] %v282
      %347 = vst [vmem:[%s121 + $0x100] sm:$0xff] %v283
      %348 = vst [vmem:[%s121 + $0x108] sm:$0xff] %v284
      %349 = vst [vmem:[%s121 + $0x110] sm:$0xff] %v285
      %350 = vst [vmem:[%s121 + $0x118] sm:$0xff] %v286
      %351 = vst [vmem:[%s121 + $0x120] sm:$0xff] %v287
      %352 = vst [vmem:[%s121 + $0x128] sm:$0xff] %v288
      %353 = vst [vmem:[%s121 + $0x130] sm:$0xff] %v289
      %354 = vst [vmem:[%s121 + $0x138] sm:$0xff] %v290
      %355 = vst [vmem:[%s121 + $0x140] sm:$0xff] %v291
      %356 = vst [vmem:[%s121 + $0x148] sm:$0xff] %v292
      %357 = vst [vmem:[%s121 + $0x150] sm:$0xff] %v293
      %358 = vst [vmem:[%s121 + $0x158] sm:$0xff] %v294
      %359 = vst [vmem:[%s121 + $0x160] sm:$0xff] %v295
      %360 = vst [vmem:[%s121 + $0x168] sm:$0xff] %v296
      %361 = vst [vmem:[%s121 + $0x170] sm:$0xff] %v297
      %362 = vst [vmem:[%s121 + $0x178] sm:$0xff] %v298
      %363 = vst [vmem:[%s121 + $0x180] sm:$0xff] %v299
      %364 = vst [vmem:[%s121 + $0x188] sm:$0xff] %v300
      %365 = vst [vmem:[%s121 + $0x190] sm:$0xff] %v301
      %366 = vst [vmem:[%s121 + $0x198] sm:$0xff] %v302
      %367 = vst [vmem:[%s121 + $0x1a0] sm:$0xff] %v303
      %368 = vst [vmem:[%s121 + $0x1a8] sm:$0xff] %v304
      %369 = vst [vmem:[%s121 + $0x1b0] sm:$0xff] %v305
      %370 = vst [vmem:[%s121 + $0x1b8] sm:$0xff] %v306
      %371 = vst [vmem:[%s121 + $0x1c0] sm:$0xff] %v307
      %372 = vst [vmem:[%s121 + $0x1c8] sm:$0xff] %v308
      %373 = vst [vmem:[%s121 + $0x1d0] sm:$0xff] %v309
      %374 = vst [vmem:[%s121 + $0x1d8] sm:$0xff] %v310
      %375 = vst [vmem:[%s121 + $0x1e0] sm:$0xff] %v311
      %376 = vst [vmem:[%s121 + $0x1e8] sm:$0xff] %v312
      %377 = vst [vmem:[%s121 + $0x1f0] sm:$0xff] %v313
      %378 = vst [vmem:[%s121 + $0x1f8] sm:$0xff] %v314
      %s379 = smul.u32 64, %s12
      %p380 = scmp.lt.s32.totalorder %s379, 127
      %s381 = scalar_select %p380, %s379, 127
      %s382 = smul.addr %s381, 8
      %s383 = scalar_lea.vmem %s1, %s382
      // Predicated region
      $region25: #{convnet_forward.8} parent=23 // pred_check
        %p384 = pneg %p56
      $region26: #{convnet_forward.8} parent=23 // pred_check_branch
        %386 = sbr.rel (%p384) target = $region28
      $region27: #{convnet_forward.8} parent=23 // pred_region
        %s387 = smul.u32 64, %s12
      $region28: #{convnet_forward.8} parent=23 // pred_fallthru
        _
    $region24: #{convnet_forward.8} parent=5 // pred_fallthru
      _
    %p388 = scmp.le.s32.totalorder 2, %s7
    // Predicated region
    $region29: #{convnet_forward.8} parent=5 // pred_check
      %p389 = pneg %p388
    $region30: #{convnet_forward.8} parent=5 // pred_check_branch
      %391 = sbr.rel (%p389) target = $region32
    $region31: #{convnet_forward.8} parent=5 // pred_region
      %s392 = ssub.s32 %s7, 2
      // Predicated region
      $region33: #{convnet_forward.8} parent=31 // pred_check
        %p393 = pneg %p62
      $region34: #{convnet_forward.8} parent=31 // pred_check_branch
        %395 = sbr.rel (%p393) target = $region36
      $region35: #{convnet_forward.8} parent=31 // pred_region
        %s396 = smul.u32 64, %s13
        %p397 = scmp.lt.s32.totalorder %s396, 127
        %s398 = scalar_select %p397, %s396, 127
        %s399 = smul.addr %s398, 8
        %s400 = scalar_lea.vmem %s1, %s399
      $region36: #{convnet_forward.8} parent=31 // pred_fallthru
        _
    $region32: #{convnet_forward.8} parent=5 // pred_fallthru
      _
  $region6: #{convnet_forward.8} parent=0 // loop_footer
    %s11 = sadd.s32 1, %s7
  $region7: #{convnet_forward.8} parent=0 // loop_footer_branch
    %6 = sbr.rel target = $region3
  $region8: #{convnet_forward.8} parent=0 // loop_exit
    _

// kernel: convnet_forward.9
$region0: #{convnet_forward.9}
  #allocation0 [shape = 'u32[]', space=smem, size = 0x4, offset = 0x4, fixed_abs, tag = 'smem constant byte address 0x4 - core index']
  #allocation1 [shape = 'u32[72,128]{1,0:T(1,128)}', space=vmem, size = 0x9000, scoped, tag = 'internal scratch']
  %s0 = inlined_call_operand.vmem [shape: f32[32,3584], index: 0, kind: input, shape index: {}]
  %s1 = inlined_call_operand.vmem [shape: f32[32,1792], index: 1, kind: output, shape index: {}]
  %s2 = sld [smem:[#allocation0]]
  $region14: #{convnet_forward.9} parent=0
    _
  %s4 = ssub.s32 1, %s2
  %s5 = scalar_select 0, %s4, %s2
  // Predicated region
  $region2: #{convnet_forward.9} parent=0 // pred_check
    _
  $region3: #{convnet_forward.9} parent=0 // pred_check_branch
    %7 = sbr.rel (0) target = $region5
  $region4: #{convnet_forward.9} parent=0 // pred_region
    _
  $region5: #{convnet_forward.9} parent=0 // pred_fallthru
    _
  %v8 = vld [vmem:[%s0] sm:$0xff]
  %v9 = vld [vmem:[%s0 + $0x8] sm:$0xff]
  %v10 = vld [vmem:[%s0 + $0x10] sm:$0xff]
  %v11 = vld [vmem:[%s0 + $0x18] sm:$0xff]
  %v12 = vld [vmem:[%s0 + $0x20] sm:$0xff]
  %v13 = vld [vmem:[%s0 + $0x28] sm:$0xff]
  %v14 = vld [vmem:[%s0 + $0x30] sm:$0xff]
  %v15 = vld [vmem:[%s0 + $0x38] sm:$0xff]
  %v16 = vld [vmem:[%s0 + $0x40] sm:$0xff]
  %v17 = vld [vmem:[%s0 + $0x48] sm:$0xff]
  %v18 = vld [vmem:[%s0 + $0x50] sm:$0xff]
  %v19 = vld [vmem:[%s0 + $0x58] sm:$0xff]
  %v20 = vld [vmem:[%s0 + $0x60] sm:$0xff]
  %v21 = vld [vmem:[%s0 + $0x68] sm:$0xff]
  %v22 = vld [vmem:[%s0 + $0xe0] sm:$0xff]
  %v23 = vld [vmem:[%s0 + $0xe8] sm:$0xff]
  %v24 = vld [vmem:[%s0 + $0xf0] sm:$0xff]
  %v25 = vld [vmem:[%s0 + $0xf8] sm:$0xff]
  %v26 = vld [vmem:[%s0 + $0x100] sm:$0xff]
  %v27 = vld [vmem:[%s0 + $0x108] sm:$0xff]
  %v28 = vld [vmem:[%s0 + $0x110] sm:$0xff]
  %v29 = vld [vmem:[%s0 + $0x118] sm:$0xff]
  %v30 = vld [vmem:[%s0 + $0x120] sm:$0xff]
  %v31 = vld [vmem:[%s0 + $0x128] sm:$0xff]
  %v32 = vld [vmem:[%s0 + $0x130] sm:$0xff]
  %v33 = vld [vmem:[%s0 + $0x138] sm:$0xff]
  %v34 = vld [vmem:[%s0 + $0x140] sm:$0xff]
  %v35 = vld [vmem:[%s0 + $0x148] sm:$0xff]
  %v36 = vld [vmem:[%s0 + $0x1c0] sm:$0xff]
  %v37 = vld [vmem:[%s0 + $0x1c8] sm:$0xff]
  %v38 = vld [vmem:[%s0 + $0x1d0] sm:$0xff]
  %v39 = vld [vmem:[%s0 + $0x1d8] sm:$0xff]
  %v40 = vld [vmem:[%s0 + $0x1e0] sm:$0xff]
  %v41 = vld [vmem:[%s0 + $0x1e8] sm:$0xff]
  %v42 = vld [vmem:[%s0 + $0x1f0] sm:$0xff]
  %v43 = vld [vmem:[%s0 + $0x1f8] sm:$0xff]
  %v44 = vld [vmem:[%s0 + $0x200] sm:$0xff]
  %v45 = vld [vmem:[%s0 + $0x208] sm:$0xff]
  %v46 = vld [vmem:[%s0 + $0x210] sm:$0xff]
  %v47 = vld [vmem:[%s0 + $0x218] sm:$0xff]
  %v48 = vld [vmem:[%s0 + $0x220] sm:$0xff]
  %v49 = vld [vmem:[%s0 + $0x228] sm:$0xff]
  %v50 = vld [vmem:[%s0 + $0x2a0] sm:$0xff]
  %v51 = vld [vmem:[%s0 + $0x2a8] sm:$0xff]
  %v52 = vld [vmem:[%s0 + $0x2b0] sm:$0xff]
  %v53 = vld [vmem:[%s0 + $0x2b8] sm:$0xff]
  %v54 = vld [vmem:[%s0 + $0x2c0] sm:$0xff]
  %v55 = vld [vmem:[%s0 + $0x2c8] sm:$0xff]
  %v56 = vld [vmem:[%s0 + $0x2d0] sm:$0xff]
  %v57 = vld [vmem:[%s0 + $0x2d8] sm:$0xff]
  %v58 = vld [vmem:[%s0 + $0x2e0] sm:$0xff]
  %v59 = vld [vmem:[%s0 + $0x2e8] sm:$0xff]
  %v60 = vld [vmem:[%s0 + $0x2f0] sm:$0xff]
  %v61 = vld [vmem:[%s0 + $0x2f8] sm:$0xff]
  %v62 = vld [vmem:[%s0 + $0x300] sm:$0xff]
  %v63 = vld [vmem:[%s0 + $0x308] sm:$0xff]
  %v64 = vld [vmem:[%s0 + $0x70] sm:$0xff]
  %v65 = vld [vmem:[%s0 + $0x78] sm:$0xff]
  %v66 = vld [vmem:[%s0 + $0x80] sm:$0xff]
  %v67 = vld [vmem:[%s0 + $0x88] sm:$0xff]
  %v68 = vld [vmem:[%s0 + $0x90] sm:$0xff]
  %v69 = vld [vmem:[%s0 + $0x98] sm:$0xff]
  %v70 = vld [vmem:[%s0 + $0xa0] sm:$0xff]
  %v71 = vld [vmem:[%s0 + $0xa8] sm:$0xff]
  %v72 = vld [vmem:[%s0 + $0xb0] sm:$0xff]
  %v73 = vld [vmem:[%s0 + $0xb8] sm:$0xff]
  %v74 = vld [vmem:[%s0 + $0xc0] sm:$0xff]
  %v75 = vld [vmem:[%s0 + $0xc8] sm:$0xff]
  %v76 = vld [vmem:[%s0 + $0xd0] sm:$0xff]
  %v77 = vld [vmem:[%s0 + $0xd8] sm:$0xff]
  %v78 = vld [vmem:[%s0 + $0x150] sm:$0xff]
  %v79 = vld [vmem:[%s0 + $0x158] sm:$0xff]
  %v80 = vld [vmem:[%s0 + $0x160] sm:$0xff]
  %v81 = vld [vmem:[%s0 + $0x168] sm:$0xff]
  %v82 = vld [vmem:[%s0 + $0x170] sm:$0xff]
  %v83 = vld [vmem:[%s0 + $0x178] sm:$0xff]
  %v84 = vld [vmem:[%s0 + $0x180] sm:$0xff]
  %v85 = vld [vmem:[%s0 + $0x188] sm:$0xff]
  %v86 = vld [vmem:[%s0 + $0x190] sm:$0xff]
  %v87 = vld [vmem:[%s0 + $0x198] sm:$0xff]
  %v88 = vld [vmem:[%s0 + $0x1a0] sm:$0xff]
  %v89 = vld [vmem:[%s0 + $0x1a8] sm:$0xff]
  %v90 = vld [vmem:[%s0 + $0x1b0] sm:$0xff]
  %v91 = vld [vmem:[%s0 + $0x1b8] sm:$0xff]
  %v92 = vld [vmem:[%s0 + $0x230] sm:$0xff]
  %v93 = vld [vmem:[%s0 + $0x238] sm:$0xff]
  %v94 = vld [vmem:[%s0 + $0x240] sm:$0xff]
  %v95 = vld [vmem:[%s0 + $0x248] sm:$0xff]
  %v96 = vld [vmem:[%s0 + $0x250] sm:$0xff]
  %v97 = vld [vmem:[%s0 + $0x258] sm:$0xff]
  %v98 = vld [vmem:[%s0 + $0x260] sm:$0xff]
  %v99 = vld [vmem:[%s0 + $0x268] sm:$0xff]
  %v100 = vld [vmem:[%s0 + $0x270] sm:$0xff]
  %v101 = vld [vmem:[%s0 + $0x278] sm:$0xff]
  %v102 = vld [vmem:[%s0 + $0x280] sm:$0xff]
  %v103 = vld [vmem:[%s0 + $0x288] sm:$0xff]
  %v104 = vld [vmem:[%s0 + $0x290] sm:$0xff]
  %v105 = vld [vmem:[%s0 + $0x298] sm:$0xff]
  %v106 = vld [vmem:[%s0 + $0x310] sm:$0xff]
  %v107 = vld [vmem:[%s0 + $0x318] sm:$0xff]
  %v108 = vld [vmem:[%s0 + $0x320] sm:$0xff]
  %v109 = vld [vmem:[%s0 + $0x328] sm:$0xff]
  %v110 = vld [vmem:[%s0 + $0x330] sm:$0xff]
  %v111 = vld [vmem:[%s0 + $0x338] sm:$0xff]
  %v112 = vld [vmem:[%s0 + $0x340] sm:$0xff]
  %v113 = vld [vmem:[%s0 + $0x348] sm:$0xff]
  %v114 = vld [vmem:[%s0 + $0x350] sm:$0xff]
  %v115 = vld [vmem:[%s0 + $0x358] sm:$0xff]
  %v116 = vld [vmem:[%s0 + $0x360] sm:$0xff]
  %v117 = vld [vmem:[%s0 + $0x368] sm:$0xff]
  %v118 = vld [vmem:[%s0 + $0x370] sm:$0xff]
  %v119 = vld [vmem:[%s0 + $0x378] sm:$0xff]
  %v120 = vmax.f32 %v8, %v64
  %v121 = vmax.f32 %v9, %v65
  %v122 = vmax.f32 %v10, %v66
  %v123 = vmax.f32 %v11, %v67
  %v124 = vmax.f32 %v12, %v68
  %v125 = vmax.f32 %v13, %v69
  %v126 = vmax.f32 %v14, %v70
  %v127 = vmax.f32 %v15, %v71
  %v128 = vmax.f32 %v16, %v72
  %v129 = vmax.f32 %v17, %v73
  %v130 = vmax.f32 %v18, %v74
  %v131 = vmax.f32 %v19, %v75
  %v132 = vmax.f32 %v20, %v76
  %v133 = vmax.f32 %v21, %v77
  %v134 = vmax.f32 %v22, %v78
  %v135 = vmax.f32 %v23, %v79
  %v136 = vmax.f32 %v24, %v80
  %v137 = vmax.f32 %v25, %v81
  %v138 = vmax.f32 %v26, %v82
  %v139 = vmax.f32 %v27, %v83
  %v140 = vmax.f32 %v28, %v84
  %v141 = vmax.f32 %v29, %v85
  %v142 = vmax.f32 %v30, %v86
  %v143 = vmax.f32 %v31, %v87
  %v144 = vmax.f32 %v32, %v88
  %v145 = vmax.f32 %v33, %v89
  %v146 = vmax.f32 %v34, %v90
  %v147 = vmax.f32 %v35, %v91
  %v148 = vmax.f32 %v36, %v92
  %v149 = vmax.f32 %v37, %v93
  %v150 = vmax.f32 %v38, %v94
  %v151 = vmax.f32 %v39, %v95
  %v152 = vmax.f32 %v40, %v96
  %v153 = vmax.f32 %v41, %v97
  %v154 = vmax.f32 %v42, %v98
  %v155 = vmax.f32 %v43, %v99
  %v156 = vmax.f32 %v44, %v100
  %v157 = vmax.f32 %v45, %v101
  %v158 = vmax.f32 %v46, %v102
  %v159 = vmax.f32 %v47, %v103
  %v160 = vmax.f32 %v48, %v104
  %v161 = vmax.f32 %v49, %v105
  %v162 = vmax.f32 %v50, %v106
  %v163 = vmax.f32 %v51, %v107
  %v164 = vmax.f32 %v52, %v108
  %v165 = vmax.f32 %v53, %v109
  %v166 = vmax.f32 %v54, %v110
  %v167 = vmax.f32 %v55, %v111
  %v168 = vmax.f32 %v56, %v112
  %v169 = vmax.f32 %v57, %v113
  %v170 = vmax.f32 %v58, %v114
  %v171 = vmax.f32 %v59, %v115
  %v172 = vmax.f32 %v60, %v116
  %v173 = vmax.f32 %v61, %v117
  %v174 = vmax.f32 %v62, %v118
  %v175 = vmax.f32 %v63, %v119
  %176 = vst [vmem:[%s1] sm:$0xff] %v120
  %177 = vst [vmem:[%s1 + $0x8] sm:$0xff] %v121
  %178 = vst [vmem:[%s1 + $0x10] sm:$0xff] %v122
  %179 = vst [vmem:[%s1 + $0x18] sm:$0xff] %v123
  %180 = vst [vmem:[%s1 + $0x20] sm:$0xff] %v124
  %181 = vst [vmem:[%s1 + $0x28] sm:$0xff] %v125
  %182 = vst [vmem:[%s1 + $0x30] sm:$0xff] %v126
  %183 = vst [vmem:[%s1 + $0x38] sm:$0xff] %v127
  %184 = vst [vmem:[%s1 + $0x40] sm:$0xff] %v128
  %185 = vst [vmem:[%s1 + $0x48] sm:$0xff] %v129
  %186 = vst [vmem:[%s1 + $0x50] sm:$0xff] %v130
  %187 = vst [vmem:[%s1 + $0x58] sm:$0xff] %v131
  %188 = vst [vmem:[%s1 + $0x60] sm:$0xff] %v132
  %189 = vst [vmem:[%s1 + $0x68] sm:$0xff] %v133
  %190 = vst [vmem:[%s1 + $0x70] sm:$0xff] %v134
  %191 = vst [vmem:[%s1 + $0x78] sm:$0xff] %v135
  %192 = vst [vmem:[%s1 + $0x80] sm:$0xff] %v136
  %193 = vst [vmem:[%s1 + $0x88] sm:$0xff] %v137
  %194 = vst [vmem:[%s1 + $0x90] sm:$0xff] %v138
  %195 = vst [vmem:[%s1 + $0x98] sm:$0xff] %v139
  %196 = vst [vmem:[%s1 + $0xa0] sm:$0xff] %v140
  %197 = vst [vmem:[%s1 + $0xa8] sm:$0xff] %v141
  %198 = vst [vmem:[%s1 + $0xb0] sm:$0xff] %v142
  %199 = vst [vmem:[%s1 + $0xb8] sm:$0xff] %v143
  %200 = vst [vmem:[%s1 + $0xc0] sm:$0xff] %v144
  %201 = vst [vmem:[%s1 + $0xc8] sm:$0xff] %v145
  %202 = vst [vmem:[%s1 + $0xd0] sm:$0xff] %v146
  %203 = vst [vmem:[%s1 + $0xd8] sm:$0xff] %v147
  %204 = vst [vmem:[%s1 + $0xe0] sm:$0xff] %v148
  %205 = vst [vmem:[%s1 + $0xe8] sm:$0xff] %v149
  %206 = vst [vmem:[%s1 + $0xf0] sm:$0xff] %v150
  %207 = vst [vmem:[%s1 + $0xf8] sm:$0xff] %v151
  %208 = vst [vmem:[%s1 + $0x100] sm:$0xff] %v152
  %209 = vst [vmem:[%s1 + $0x108] sm:$0xff] %v153
  %210 = vst [vmem:[%s1 + $0x110] sm:$0xff] %v154
  %211 = vst [vmem:[%s1 + $0x118] sm:$0xff] %v155
  %212 = vst [vmem:[%s1 + $0x120] sm:$0xff] %v156
  %213 = vst [vmem:[%s1 + $0x128] sm:$0xff] %v157
  %214 = vst [vmem:[%s1 + $0x130] sm:$0xff] %v158
  %215 = vst [vmem:[%s1 + $0x138] sm:$0xff] %v159
  %216 = vst [vmem:[%s1 + $0x140] sm:$0xff] %v160
  %217 = vst [vmem:[%s1 + $0x148] sm:$0xff] %v161
  %218 = vst [vmem:[%s1 + $0x150] sm:$0xff] %v162
  %219 = vst [vmem:[%s1 + $0x158] sm:$0xff] %v163
  %220 = vst [vmem:[%s1 + $0x160] sm:$0xff] %v164
  %221 = vst [vmem:[%s1 + $0x168] sm:$0xff] %v165
  %222 = vst [vmem:[%s1 + $0x170] sm:$0xff] %v166
  %223 = vst [vmem:[%s1 + $0x178] sm:$0xff] %v167
  %224 = vst [vmem:[%s1 + $0x180] sm:$0xff] %v168
  %225 = vst [vmem:[%s1 + $0x188] sm:$0xff] %v169
  %226 = vst [vmem:[%s1 + $0x190] sm:$0xff] %v170
  %227 = vst [vmem:[%s1 + $0x198] sm:$0xff] %v171
  %228 = vst [vmem:[%s1 + $0x1a0] sm:$0xff] %v172
  %229 = vst [vmem:[%s1 + $0x1a8] sm:$0xff] %v173
  %230 = vst [vmem:[%s1 + $0x1b0] sm:$0xff] %v174
  %231 = vst [vmem:[%s1 + $0x1b8] sm:$0xff] %v175
  // Predicated region
  $region6: #{convnet_forward.9} parent=0 // pred_check
    _
  $region7: #{convnet_forward.9} parent=0 // pred_check_branch
    %233 = sbr.rel (0) target = $region9
  $region8: #{convnet_forward.9} parent=0 // pred_region
    _
  $region9: #{convnet_forward.9} parent=0 // pred_fallthru
    _
  // Predicated region
  $region10: #{convnet_forward.9} parent=0 // pred_check
    _
  $region11: #{convnet_forward.9} parent=0 // pred_check_branch
    %235 = sbr.rel (0) target = $region13
  $region12: #{convnet_forward.9} parent=0 // pred_region
    _
  $region13: #{convnet_forward.9} parent=0 // pred_fallthru
    _

// kernel: convnet_forward.10
$region0: #{convnet_forward.10}
  #allocation0 [shape = 'u32[]', space=smem, size = 0x4, offset = 0x4, fixed_abs, tag = 'smem constant byte address 0x4 - core index']
  #allocation1 [shape = 'u32[72,128]{1,0:T(1,128)}', space=vmem, size = 0x9000, scoped, tag = 'internal scratch']
  %s0 = inlined_call_operand.vmem [shape: f32[392,256], index: 0, kind: input, shape index: {}]
  %s1 = inlined_call_operand.vmem [shape: f32[256,128], index: 1, kind: input, shape index: {}]
  %s2 = inlined_call_operand.vmem [shape: f32[1,128], index: 2, kind: input, shape index: {}]
  %s3 = inlined_call_operand.vmem [shape: f32[392,128], index: 3, kind: output, shape index: {}]
  %s4 = sld [smem:[#allocation0]]
  $region22: #{convnet_forward.10} parent=0
    _
  %s6 = ssub.s32 1, %s4
  %s7 = scalar_select 0, %s6, %s4
  // Predicated region
  $region2: #{convnet_forward.10} parent=0 // pred_check
    _
  $region3: #{convnet_forward.10} parent=0 // pred_check_branch
    %9 = sbr.rel (0) target = $region5
  $region4: #{convnet_forward.10} parent=0 // pred_region
    _
  $region5: #{convnet_forward.10} parent=0 // pred_fallthru
    _
  // Predicated region
  $region6: #{convnet_forward.10} parent=0 // pred_check
    _
  $region7: #{convnet_forward.10} parent=0 // pred_check_branch
    %11 = sbr.rel (0) target = $region9
  $region8: #{convnet_forward.10} parent=0 // pred_region
    _
  $region9: #{convnet_forward.10} parent=0 // pred_fallthru
    _
  // Predicated region
  $region10: #{convnet_forward.10} parent=0 // pred_check
    _
  $region11: #{convnet_forward.10} parent=0 // pred_check_branch
    %13 = sbr.rel (0) target = $region13
  $region12: #{convnet_forward.10} parent=0 // pred_region
    _
  $region13: #{convnet_forward.10} parent=0 // pred_fallthru
    _
  %v14 = vld [vmem:[%s0] sm:$0xff]
  %v15 = vld [vmem:[%s0 + $0x8] sm:$0xff]
  %v16 = vld [vmem:[%s0 + $0x10] sm:$0xff]
  %v17 = vld [vmem:[%s0 + $0x18] sm:$0xff]
  %v18 = vld [vmem:[%s0 + $0x20] sm:$0xff]
  %v19 = vld [vmem:[%s0 + $0x28] sm:$0xff]
  %v20 = vld [vmem:[%s0 + $0x30] sm:$0xff]
  %v21 = vld [vmem:[%s0 + $0x38] sm:$0xff]
  %v22 = vld [vmem:[%s0 + $0x40] sm:$0xff]
  %v23 = vld [vmem:[%s0 + $0x48] sm:$0xff]
  %v24 = vld [vmem:[%s0 + $0x50] sm:$0xff]
  %v25 = vld [vmem:[%s0 + $0x58] sm:$0xff]
  %v26 = vld [vmem:[%s0 + $0x60] sm:$0xff]
  %v27 = vld [vmem:[%s0 + $0x68] sm:$0xff]
  %v28 = vld [vmem:[%s0 + $0x70] sm:$0xff]
  %v29 = vld [vmem:[%s0 + $0x78] sm:$0xff]
  %v30 = vld [vmem:[%s0 + $0x80] sm:$0xff]
  %v31 = vld [vmem:[%s0 + $0x88] sm:$0xff]
  %v32 = vld [vmem:[%s0 + $0x90] sm:$0xff]
  %v33 = vld [vmem:[%s0 + $0x98] sm:$0xff]
  %v34 = vld [vmem:[%s0 + $0xa0] sm:$0xff]
  %v35 = vld [vmem:[%s0 + $0xa8] sm:$0xff]
  %v36 = vld [vmem:[%s0 + $0xb0] sm:$0xff]
  %v37 = vld [vmem:[%s0 + $0xb8] sm:$0xff]
  %v38 = vld [vmem:[%s0 + $0xc0] sm:$0xff]
  %v39 = vld [vmem:[%s0 + $0xc8] sm:$0xff]
  %v40 = vld [vmem:[%s0 + $0xd0] sm:$0xff]
  %v41 = vld [vmem:[%s0 + $0xd8] sm:$0xff]
  %v42 = vld [vmem:[%s0 + $0xe0] sm:$0xff]
  %v43 = vld [vmem:[%s0 + $0xe8] sm:$0xff]
  %v44 = vld [vmem:[%s0 + $0xf0] sm:$0xff]
  %v45 = vld [vmem:[%s0 + $0xf8] sm:$0xff]
  %v46 = vld [vmem:[%s0 + $0x100] sm:$0xff]
  %v47 = vld [vmem:[%s0 + $0x108] sm:$0xff]
  %v48 = vld [vmem:[%s0 + $0x110] sm:$0xff]
  %v49 = vld [vmem:[%s0 + $0x118] sm:$0xff]
  %v50 = vld [vmem:[%s0 + $0x120] sm:$0xff]
  %v51 = vld [vmem:[%s0 + $0x128] sm:$0xff]
  %v52 = vld [vmem:[%s0 + $0x130] sm:$0xff]
  %v53 = vld [vmem:[%s0 + $0x138] sm:$0xff]
  %v54 = vld [vmem:[%s0 + $0x140] sm:$0xff]
  %v55 = vld [vmem:[%s0 + $0x148] sm:$0xff]
  %v56 = vld [vmem:[%s0 + $0x150] sm:$0xff]
  %v57 = vld [vmem:[%s0 + $0x158] sm:$0xff]
  %v58 = vld [vmem:[%s0 + $0x160] sm:$0xff]
  %v59 = vld [vmem:[%s0 + $0x168] sm:$0xff]
  %v60 = vld [vmem:[%s0 + $0x170] sm:$0xff]
  %v61 = vld [vmem:[%s0 + $0x178] sm:$0xff]
  %v62 = vld [vmem:[%s0 + $0x180] sm:$0xff]
  %v63 = vld [vmem:[%s0 + $0x188] sm:$0xff]
  %v64 = vld [vmem:[%s0 + $0x190] sm:$0xff]
  %v65 = vld [vmem:[%s0 + $0x198] sm:$0xff]
  %v66 = vld [vmem:[%s0 + $0x1a0] sm:$0xff]
  %v67 = vld [vmem:[%s0 + $0x1a8] sm:$0xff]
  %v68 = vld [vmem:[%s0 + $0x1b0] sm:$0xff]
  %v69 = vld [vmem:[%s0 + $0x1b8] sm:$0xff]
  %v70 = vld [vmem:[%s0 + $0x1c0] sm:$0xff]
  %v71 = vld [vmem:[%s0 + $0x1c8] sm:$0xff]
  %v72 = vld [vmem:[%s0 + $0x1d0] sm:$0xff]
  %v73 = vld [vmem:[%s0 + $0x1d8] sm:$0xff]
  %v74 = vld [vmem:[%s0 + $0x1e0] sm:$0xff]
  %v75 = vld [vmem:[%s0 + $0x1e8] sm:$0xff]
  %v76 = vld [vmem:[%s0 + $0x1f0] sm:$0xff]
  %v77 = vld [vmem:[%s0 + $0x1f8] sm:$0xff]
  %v78 = vld [vmem:[%s0 + $0x200] sm:$0xff]
  %v79 = vld [vmem:[%s0 + $0x208] sm:$0xff]
  %v80 = vld [vmem:[%s0 + $0x210] sm:$0xff]
  %v81 = vld [vmem:[%s0 + $0x218] sm:$0xff]
  %v82 = vld [vmem:[%s0 + $0x220] sm:$0xff]
  %v83 = vld [vmem:[%s0 + $0x228] sm:$0xff]
  %v84 = vld [vmem:[%s0 + $0x230] sm:$0xff]
  %v85 = vld [vmem:[%s0 + $0x238] sm:$0xff]
  %v86 = vld [vmem:[%s0 + $0x240] sm:$0xff]
  %v87 = vld [vmem:[%s0 + $0x248] sm:$0xff]
  %v88 = vld [vmem:[%s0 + $0x250] sm:$0xff]
  %v89 = vld [vmem:[%s0 + $0x258] sm:$0xff]
  %v90 = vld [vmem:[%s0 + $0x260] sm:$0xff]
  %v91 = vld [vmem:[%s0 + $0x268] sm:$0xff]
  %v92 = vld [vmem:[%s0 + $0x270] sm:$0xff]
  %v93 = vld [vmem:[%s0 + $0x278] sm:$0xff]
  %v94 = vld [vmem:[%s0 + $0x280] sm:$0xff]
  %v95 = vld [vmem:[%s0 + $0x288] sm:$0xff]
  %v96 = vld [vmem:[%s0 + $0x290] sm:$0xff]
  %v97 = vld [vmem:[%s0 + $0x298] sm:$0xff]
  %v98 = vld [vmem:[%s0 + $0x2a0] sm:$0xff]
  %v99 = vld [vmem:[%s0 + $0x2a8] sm:$0xff]
  %v100 = vld [vmem:[%s0 + $0x2b0] sm:$0xff]
  %v101 = vld [vmem:[%s0 + $0x2b8] sm:$0xff]
  %v102 = vld [vmem:[%s0 + $0x2c0] sm:$0xff]
  %v103 = vld [vmem:[%s0 + $0x2c8] sm:$0xff]
  %v104 = vld [vmem:[%s0 + $0x2d0] sm:$0xff]
  %v105 = vld [vmem:[%s0 + $0x2d8] sm:$0xff]
  %v106 = vld [vmem:[%s0 + $0x2e0] sm:$0xff]
  %v107 = vld [vmem:[%s0 + $0x2e8] sm:$0xff]
  %v108 = vld [vmem:[%s0 + $0x2f0] sm:$0xff]
  %v109 = vld [vmem:[%s0 + $0x2f8] sm:$0xff]
  %v110 = vld [vmem:[%s0 + $0x300] sm:$0xff]
  %v111 = vld [vmem:[%s0 + $0x308] sm:$0xff]
  %v112 = vld [vmem:[%s1] sm:$0xff]
  %v113 = vld [vmem:[%s1 + $0x8] sm:$0xff]
  %v114 = vld [vmem:[%s1 + $0x10] sm:$0xff]
  %v115 = vld [vmem:[%s1 + $0x18] sm:$0xff]
  %v116 = vld [vmem:[%s1 + $0x20] sm:$0xff]
  %v117 = vld [vmem:[%s1 + $0x28] sm:$0xff]
  %v118 = vld [vmem:[%s1 + $0x30] sm:$0xff]
  %v119 = vld [vmem:[%s1 + $0x38] sm:$0xff]
  %v120 = vld [vmem:[%s1 + $0x40] sm:$0xff]
  %v121 = vld [vmem:[%s1 + $0x48] sm:$0xff]
  %v122 = vld [vmem:[%s1 + $0x50] sm:$0xff]
  %v123 = vld [vmem:[%s1 + $0x58] sm:$0xff]
  %v124 = vld [vmem:[%s1 + $0x60] sm:$0xff]
  %v125 = vld [vmem:[%s1 + $0x68] sm:$0xff]
  %v126 = vld [vmem:[%s1 + $0x70] sm:$0xff]
  %v127 = vld [vmem:[%s1 + $0x78] sm:$0xff]
  %v128 = vld [vmem:[%s1 + $0x80] sm:$0xff]
  %v129 = vld [vmem:[%s1 + $0x88] sm:$0xff]
  %v130 = vld [vmem:[%s1 + $0x90] sm:$0xff]
  %v131 = vld [vmem:[%s1 + $0x98] sm:$0xff]
  %v132 = vld [vmem:[%s1 + $0xa0] sm:$0xff]
  %v133 = vld [vmem:[%s1 + $0xa8] sm:$0xff]
  %v134 = vld [vmem:[%s1 + $0xb0] sm:$0xff]
  %v135 = vld [vmem:[%s1 + $0xb8] sm:$0xff]
  %v136 = vld [vmem:[%s1 + $0xc0] sm:$0xff]
  %v137 = vld [vmem:[%s1 + $0xc8] sm:$0xff]
  %v138 = vld [vmem:[%s1 + $0xd0] sm:$0xff]
  %v139 = vld [vmem:[%s1 + $0xd8] sm:$0xff]
  %v140 = vld [vmem:[%s1 + $0xe0] sm:$0xff]
  %v141 = vld [vmem:[%s1 + $0xe8] sm:$0xff]
  %v142 = vld [vmem:[%s1 + $0xf0] sm:$0xff]
  %v143 = vld [vmem:[%s1 + $0xf8] sm:$0xff]
  %v144 = vld [vmem:[%s2] sm:$0x1]
  %v146 = vperm.slane %v144, 0
  %148 = vmatpush.msra.mxu0 %v127
  %149 = vmatpush.msra.mxu0 %v126
  %150 = vmatpush.msra.mxu0 %v125
  %151 = vmatpush.msra.mxu0 %v124
  %152 = vmatpush.msra.mxu0 %v123
  %153 = vmatpush.msra.mxu0 %v122
  %154 = vmatpush.msra.mxu0 %v121
  %155 = vmatpush.msra.mxu0 %v120
  %156 = vmatpush.msra.mxu0 %v119
  %157 = vmatpush.msra.mxu0 %v118
  %158 = vmatpush.msra.mxu0 %v117
  %159 = vmatpush.msra.mxu0 %v116
  %160 = vmatpush.msra.mxu0 %v115
  %161 = vmatpush.msra.mxu0 %v114
  %162 = vmatpush.msra.mxu0 %v113
  %163 = vmatpush.msra.mxu0 %v112
  %164 = vmatmul.f32.gmra.mxu0 %v14
  %v165 = vpop.f32.mrf.mxu0
  %v166 = vadd.f32 %v146, %v165
  %167 = vmatmul.f32.gmra.mxu0 %v16
  %v168 = vpop.f32.mrf.mxu0
  %v169 = vadd.f32 %v146, %v168
  %170 = vmatmul.f32.gmra.mxu0 %v18
  %v171 = vpop.f32.mrf.mxu0
  %v172 = vadd.f32 %v146, %v171
  %173 = vmatmul.f32.gmra.mxu0 %v20
  %v174 = vpop.f32.mrf.mxu0
  %v175 = vadd.f32 %v146, %v174
  %176 = vmatmul.f32.gmra.mxu0 %v22
  %v177 = vpop.f32.mrf.mxu0
  %v178 = vadd.f32 %v146, %v177
  %179 = vmatmul.f32.gmra.mxu0 %v24
  %v180 = vpop.f32.mrf.mxu0
  %v181 = vadd.f32 %v146, %v180
  %182 = vmatmul.f32.gmra.mxu0 %v26
  %v183 = vpop.f32.mrf.mxu0
  %v184 = vadd.f32 %v146, %v183
  %185 = vmatmul.f32.gmra.mxu0 %v28
  %v186 = vpop.f32.mrf.mxu0
  %v187 = vadd.f32 %v146, %v186
  %188 = vmatmul.f32.gmra.mxu0 %v30
  %v189 = vpop.f32.mrf.mxu0
  %v190 = vadd.f32 %v146, %v189
  %191 = vmatmul.f32.gmra.mxu0 %v32
  %v192 = vpop.f32.mrf.mxu0
  %v193 = vadd.f32 %v146, %v192
  %194 = vmatmul.f32.gmra.mxu0 %v34
  %v195 = vpop.f32.mrf.mxu0
  %v196 = vadd.f32 %v146, %v195
  %197 = vmatmul.f32.gmra.mxu0 %v36
  %v198 = vpop.f32.mrf.mxu0
  %v199 = vadd.f32 %v146, %v198
  %200 = vmatmul.f32.gmra.mxu0 %v38
  %v201 = vpop.f32.mrf.mxu0
  %v202 = vadd.f32 %v146, %v201
  %203 = vmatmul.f32.gmra.mxu0 %v40
  %v204 = vpop.f32.mrf.mxu0
  %v205 = vadd.f32 %v146, %v204
  %206 = vmatmul.f32.gmra.mxu0 %v42
  %v207 = vpop.f32.mrf.mxu0
  %v208 = vadd.f32 %v146, %v207
  %209 = vmatmul.f32.gmra.mxu0 %v44
  %v210 = vpop.f32.mrf.mxu0
  %v211 = vadd.f32 %v146, %v210
  %212 = vmatmul.f32.gmra.mxu0 %v46
  %v213 = vpop.f32.mrf.mxu0
  %v214 = vadd.f32 %v146, %v213
  %215 = vmatmul.f32.gmra.mxu0 %v48
  %v216 = vpop.f32.mrf.mxu0
  %v217 = vadd.f32 %v146, %v216
  %218 = vmatmul.f32.gmra.mxu0 %v50
  %v219 = vpop.f32.mrf.mxu0
  %v220 = vadd.f32 %v146, %v219
  %221 = vmatmul.f32.gmra.mxu0 %v52
  %v222 = vpop.f32.mrf.mxu0
  %v223 = vadd.f32 %v146, %v222
  %224 = vmatmul.f32.gmra.mxu0 %v54
  %v225 = vpop.f32.mrf.mxu0
  %v226 = vadd.f32 %v146, %v225
  %227 = vmatmul.f32.gmra.mxu0 %v56
  %v228 = vpop.f32.mrf.mxu0
  %v229 = vadd.f32 %v146, %v228
  %230 = vmatmul.f32.gmra.mxu0 %v58
  %v231 = vpop.f32.mrf.mxu0
  %v232 = vadd.f32 %v146, %v231
  %233 = vmatmul.f32.gmra.mxu0 %v60
  %v234 = vpop.f32.mrf.mxu0
  %v235 = vadd.f32 %v146, %v234
  %236 = vmatmul.f32.gmra.mxu0 %v62
  %v237 = vpop.f32.mrf.mxu0
  %v238 = vadd.f32 %v146, %v237
  %239 = vmatmul.f32.gmra.mxu0 %v64
  %v240 = vpop.f32.mrf.mxu0
  %v241 = vadd.f32 %v146, %v240
  %242 = vmatmul.f32.gmra.mxu0 %v66
  %v243 = vpop.f32.mrf.mxu0
  %v244 = vadd.f32 %v146, %v243
  %245 = vmatmul.f32.gmra.mxu0 %v68
  %v246 = vpop.f32.mrf.mxu0
  %v247 = vadd.f32 %v146, %v246
  %248 = vmatmul.f32.gmra.mxu0 %v70
  %v249 = vpop.f32.mrf.mxu0
  %v250 = vadd.f32 %v146, %v249
  %251 = vmatmul.f32.gmra.mxu0 %v72
  %v252 = vpop.f32.mrf.mxu0
  %v253 = vadd.f32 %v146, %v252
  %254 = vmatmul.f32.gmra.mxu0 %v74
  %v255 = vpop.f32.mrf.mxu0
  %v256 = vadd.f32 %v146, %v255
  %257 = vmatmul.f32.gmra.mxu0 %v76
  %v258 = vpop.f32.mrf.mxu0
  %v259 = vadd.f32 %v146, %v258
  %260 = vmatmul.f32.gmra.mxu0 %v78
  %v261 = vpop.f32.mrf.mxu0
  %v262 = vadd.f32 %v146, %v261
  %263 = vmatmul.f32.gmra.mxu0 %v80
  %v264 = vpop.f32.mrf.mxu0
  %v265 = vadd.f32 %v146, %v264
  %266 = vmatmul.f32.gmra.mxu0 %v82
  %v267 = vpop.f32.mrf.mxu0
  %v268 = vadd.f32 %v146, %v267
  %269 = vmatmul.f32.gmra.mxu0 %v84
  %v270 = vpop.f32.mrf.mxu0
  %v271 = vadd.f32 %v146, %v270
  %272 = vmatmul.f32.gmra.mxu0 %v86
  %v273 = vpop.f32.mrf.mxu0
  %v274 = vadd.f32 %v146, %v273
  %275 = vmatmul.f32.gmra.mxu0 %v88
  %v276 = vpop.f32.mrf.mxu0
  %v277 = vadd.f32 %v146, %v276
  %278 = vmatmul.f32.gmra.mxu0 %v90
  %v279 = vpop.f32.mrf.mxu0
  %v280 = vadd.f32 %v146, %v279
  %281 = vmatmul.f32.gmra.mxu0 %v92
  %v282 = vpop.f32.mrf.mxu0
  %v283 = vadd.f32 %v146, %v282
  %284 = vmatmul.f32.gmra.mxu0 %v94
  %v285 = vpop.f32.mrf.mxu0
  %v286 = vadd.f32 %v146, %v285
  %287 = vmatmul.f32.gmra.mxu0 %v96
  %v288 = vpop.f32.mrf.mxu0
  %v289 = vadd.f32 %v146, %v288
  %290 = vmatmul.f32.gmra.mxu0 %v98
  %v291 = vpop.f32.mrf.mxu0
  %v292 = vadd.f32 %v146, %v291
  %293 = vmatmul.f32.gmra.mxu0 %v100
  %v294 = vpop.f32.mrf.mxu0
  %v295 = vadd.f32 %v146, %v294
  %296 = vmatmul.f32.gmra.mxu0 %v102
  %v297 = vpop.f32.mrf.mxu0
  %v298 = vadd.f32 %v146, %v297
  %299 = vmatmul.f32.gmra.mxu0 %v104
  %v300 = vpop.f32.mrf.mxu0
  %v301 = vadd.f32 %v146, %v300
  %302 = vmatmul.f32.gmra.mxu0 %v106
  %v303 = vpop.f32.mrf.mxu0
  %v304 = vadd.f32 %v146, %v303
  %305 = vmatmul.f32.gmra.mxu0 %v108
  %v306 = vpop.f32.mrf.mxu0
  %v307 = vadd.f32 %v146, %v306
  %308 = vmatmul.f32.gmra.mxu0 %v110
  %v309 = vpop.f32.mrf.mxu0
  %v310 = vadd.f32 %v146, %v309
  %311 = vdwg.mxu0
  %312 = vmatpush.msra.mxu0 %v143
  %313 = vmatpush.msra.mxu0 %v142
  %314 = vmatpush.msra.mxu0 %v141
  %315 = vmatpush.msra.mxu0 %v140
  %316 = vmatpush.msra.mxu0 %v139
  %317 = vmatpush.msra.mxu0 %v138
  %318 = vmatpush.msra.mxu0 %v137
  %319 = vmatpush.msra.mxu0 %v136
  %320 = vmatpush.msra.mxu0 %v135
  %321 = vmatpush.msra.mxu0 %v134
  %322 = vmatpush.msra.mxu0 %v133
  %323 = vmatpush.msra.mxu0 %v132
  %324 = vmatpush.msra.mxu0 %v131
  %325 = vmatpush.msra.mxu0 %v130
  %326 = vmatpush.msra.mxu0 %v129
  %327 = vmatpush.msra.mxu0 %v128
  %328 = vmatmul.f32.gmra.mxu0 %v15
  %v329 = vpop.f32.mrf.mxu0
  %v330 = vadd.f32 %v166, %v329
  %331 = vmatmul.f32.gmra.mxu0 %v17
  %v332 = vpop.f32.mrf.mxu0
  %v333 = vadd.f32 %v169, %v332
  %334 = vmatmul.f32.gmra.mxu0 %v19
  %v335 = vpop.f32.mrf.mxu0
  %v336 = vadd.f32 %v172, %v335
  %337 = vmatmul.f32.gmra.mxu0 %v21
  %v338 = vpop.f32.mrf.mxu0
  %v339 = vadd.f32 %v175, %v338
  %340 = vmatmul.f32.gmra.mxu0 %v23
  %v341 = vpop.f32.mrf.mxu0
  %v342 = vadd.f32 %v178, %v341
  %343 = vmatmul.f32.gmra.mxu0 %v25
  %v344 = vpop.f32.mrf.mxu0
  %v345 = vadd.f32 %v181, %v344
  %346 = vmatmul.f32.gmra.mxu0 %v27
  %v347 = vpop.f32.mrf.mxu0
  %v348 = vadd.f32 %v184, %v347
  %349 = vmatmul.f32.gmra.mxu0 %v29
  %v350 = vpop.f32.mrf.mxu0
  %v351 = vadd.f32 %v187, %v350
  %352 = vmatmul.f32.gmra.mxu0 %v31
  %v353 = vpop.f32.mrf.mxu0
  %v354 = vadd.f32 %v190, %v353
  %355 = vmatmul.f32.gmra.mxu0 %v33
  %v356 = vpop.f32.mrf.mxu0
  %v357 = vadd.f32 %v193, %v356
  %358 = vmatmul.f32.gmra.mxu0 %v35
  %v359 = vpop.f32.mrf.mxu0
  %v360 = vadd.f32 %v196, %v359
  %361 = vmatmul.f32.gmra.mxu0 %v37
  %v362 = vpop.f32.mrf.mxu0
  %v363 = vadd.f32 %v199, %v362
  %364 = vmatmul.f32.gmra.mxu0 %v39
  %v365 = vpop.f32.mrf.mxu0
  %v366 = vadd.f32 %v202, %v365
  %367 = vmatmul.f32.gmra.mxu0 %v41
  %v368 = vpop.f32.mrf.mxu0
  %v369 = vadd.f32 %v205, %v368
  %370 = vmatmul.f32.gmra.mxu0 %v43
  %v371 = vpop.f32.mrf.mxu0
  %v372 = vadd.f32 %v208, %v371
  %373 = vmatmul.f32.gmra.mxu0 %v45
  %v374 = vpop.f32.mrf.mxu0
  %v375 = vadd.f32 %v211, %v374
  %376 = vmatmul.f32.gmra.mxu0 %v47
  %v377 = vpop.f32.mrf.mxu0
  %v378 = vadd.f32 %v214, %v377
  %379 = vmatmul.f32.gmra.mxu0 %v49
  %v380 = vpop.f32.mrf.mxu0
  %v381 = vadd.f32 %v217, %v380
  %382 = vmatmul.f32.gmra.mxu0 %v51
  %v383 = vpop.f32.mrf.mxu0
  %v384 = vadd.f32 %v220, %v383
  %385 = vmatmul.f32.gmra.mxu0 %v53
  %v386 = vpop.f32.mrf.mxu0
  %v387 = vadd.f32 %v223, %v386
  %388 = vmatmul.f32.gmra.mxu0 %v55
  %v389 = vpop.f32.mrf.mxu0
  %v390 = vadd.f32 %v226, %v389
  %391 = vmatmul.f32.gmra.mxu0 %v57
  %v392 = vpop.f32.mrf.mxu0
  %v393 = vadd.f32 %v229, %v392
  %394 = vmatmul.f32.gmra.mxu0 %v59
  %v395 = vpop.f32.mrf.mxu0
  %v396 = vadd.f32 %v232, %v395
  %397 = vmatmul.f32.gmra.mxu0 %v61
  %v398 = vpop.f32.mrf.mxu0
  %v399 = vadd.f32 %v235, %v398
  %400 = vmatmul.f32.gmra.mxu0 %v63
  %v401 = vpop.f32.mrf.mxu0
  %v402 = vadd.f32 %v238, %v401
  %403 = vmatmul.f32.gmra.mxu0 %v65
  %v404 = vpop.f32.mrf.mxu0
  %v405 = vadd.f32 %v241, %v404
  %406 = vmatmul.f32.gmra.mxu0 %v67
  %v407 = vpop.f32.mrf.mxu0
  %v408 = vadd.f32 %v244, %v407
  %409 = vmatmul.f32.gmra.mxu0 %v69
  %v410 = vpop.f32.mrf.mxu0
  %v411 = vadd.f32 %v247, %v410
  %412 = vmatmul.f32.gmra.mxu0 %v71
  %v413 = vpop.f32.mrf.mxu0
  %v414 = vadd.f32 %v250, %v413
  %415 = vmatmul.f32.gmra.mxu0 %v73
  %v416 = vpop.f32.mrf.mxu0
  %v417 = vadd.f32 %v253, %v416
  %418 = vmatmul.f32.gmra.mxu0 %v75
  %v419 = vpop.f32.mrf.mxu0
  %v420 = vadd.f32 %v256, %v419
  %421 = vmatmul.f32.gmra.mxu0 %v77
  %v422 = vpop.f32.mrf.mxu0
  %v423 = vadd.f32 %v259, %v422
  %424 = vmatmul.f32.gmra.mxu0 %v79
  %v425 = vpop.f32.mrf.mxu0
  %v426 = vadd.f32 %v262, %v425
  %427 = vmatmul.f32.gmra.mxu0 %v81
  %v428 = vpop.f32.mrf.mxu0
  %v429 = vadd.f32 %v265, %v428
  %430 = vmatmul.f32.gmra.mxu0 %v83
  %v431 = vpop.f32.mrf.mxu0
  %v432 = vadd.f32 %v268, %v431
  %433 = vmatmul.f32.gmra.mxu0 %v85
  %v434 = vpop.f32.mrf.mxu0
  %v435 = vadd.f32 %v271, %v434
  %436 = vmatmul.f32.gmra.mxu0 %v87
  %v437 = vpop.f32.mrf.mxu0
  %v438 = vadd.f32 %v274, %v437
  %439 = vmatmul.f32.gmra.mxu0 %v89
  %v440 = vpop.f32.mrf.mxu0
  %v441 = vadd.f32 %v277, %v440
  %442 = vmatmul.f32.gmra.mxu0 %v91
  %v443 = vpop.f32.mrf.mxu0
  %v444 = vadd.f32 %v280, %v443
  %445 = vmatmul.f32.gmra.mxu0 %v93
  %v446 = vpop.f32.mrf.mxu0
  %v447 = vadd.f32 %v283, %v446
  %448 = vmatmul.f32.gmra.mxu0 %v95
  %v449 = vpop.f32.mrf.mxu0
  %v450 = vadd.f32 %v286, %v449
  %451 = vmatmul.f32.gmra.mxu0 %v97
  %v452 = vpop.f32.mrf.mxu0
  %v453 = vadd.f32 %v289, %v452
  %454 = vmatmul.f32.gmra.mxu0 %v99
  %v455 = vpop.f32.mrf.mxu0
  %v456 = vadd.f32 %v292, %v455
  %457 = vmatmul.f32.gmra.mxu0 %v101
  %v458 = vpop.f32.mrf.mxu0
  %v459 = vadd.f32 %v295, %v458
  %460 = vmatmul.f32.gmra.mxu0 %v103
  %v461 = vpop.f32.mrf.mxu0
  %v462 = vadd.f32 %v298, %v461
  %463 = vmatmul.f32.gmra.mxu0 %v105
  %v464 = vpop.f32.mrf.mxu0
  %v465 = vadd.f32 %v301, %v464
  %466 = vmatmul.f32.gmra.mxu0 %v107
  %v467 = vpop.f32.mrf.mxu0
  %v468 = vadd.f32 %v304, %v467
  %469 = vmatmul.f32.gmra.mxu0 %v109
  %v470 = vpop.f32.mrf.mxu0
  %v471 = vadd.f32 %v307, %v470
  %472 = vmatmul.f32.gmra.mxu0 %v111
  %v473 = vpop.f32.mrf.mxu0
  %v474 = vadd.f32 %v310, %v473
  %475 = vdwg.mxu0
  %v476 = vmax.f32 %v330, 0.0
  %v477 = vmax.f32 %v333, 0.0
  %v478 = vmax.f32 %v336, 0.0
  %v479 = vmax.f32 %v339, 0.0
  %v480 = vmax.f32 %v342, 0.0
  %v481 = vmax.f32 %v345, 0.0
  %v482 = vmax.f32 %v348, 0.0
  %v483 = vmax.f32 %v351, 0.0
  %v484 = vmax.f32 %v354, 0.0
  %v485 = vmax.f32 %v357, 0.0
  %v486 = vmax.f32 %v360, 0.0
  %v487 = vmax.f32 %v363, 0.0
  %v488 = vmax.f32 %v366, 0.0
  %v489 = vmax.f32 %v369, 0.0
  %v490 = vmax.f32 %v372, 0.0
  %v491 = vmax.f32 %v375, 0.0
  %v492 = vmax.f32 %v378, 0.0
  %v493 = vmax.f32 %v381, 0.0
  %v494 = vmax.f32 %v384, 0.0
  %v495 = vmax.f32 %v387, 0.0
  %v496 = vmax.f32 %v390, 0.0
  %v497 = vmax.f32 %v393, 0.0
  %v498 = vmax.f32 %v396, 0.0
  %v499 = vmax.f32 %v399, 0.0
  %v500 = vmax.f32 %v402, 0.0
  %v501 = vmax.f32 %v405, 0.0
  %v502 = vmax.f32 %v408, 0.0
  %v503 = vmax.f32 %v411, 0.0
  %v504 = vmax.f32 %v414, 0.0
  %v505 = vmax.f32 %v417, 0.0
  %v506 = vmax.f32 %v420, 0.0
  %v507 = vmax.f32 %v423, 0.0
  %v508 = vmax.f32 %v426, 0.0
  %v509 = vmax.f32 %v429, 0.0
  %v510 = vmax.f32 %v432, 0.0
  %v511 = vmax.f32 %v435, 0.0
  %v512 = vmax.f32 %v438, 0.0
  %v513 = vmax.f32 %v441, 0.0
  %v514 = vmax.f32 %v444, 0.0
  %v515 = vmax.f32 %v447, 0.0
  %v516 = vmax.f32 %v450, 0.0
  %v517 = vmax.f32 %v453, 0.0
  %v518 = vmax.f32 %v456, 0.0
  %v519 = vmax.f32 %v459, 0.0
  %v520 = vmax.f32 %v462, 0.0
  %v521 = vmax.f32 %v465, 0.0
  %v522 = vmax.f32 %v468, 0.0
  %v523 = vmax.f32 %v471, 0.0
  %v524 = vmax.f32 %v474, 0.0
  %525 = vst [vmem:[%s3] sm:$0xff] %v476
  %526 = vst [vmem:[%s3 + $0x8] sm:$0xff] %v477
  %527 = vst [vmem:[%s3 + $0x10] sm:$0xff] %v478
  %528 = vst [vmem:[%s3 + $0x18] sm:$0xff] %v479
  %529 = vst [vmem:[%s3 + $0x20] sm:$0xff] %v480
  %530 = vst [vmem:[%s3 + $0x28] sm:$0xff] %v481
  %531 = vst [vmem:[%s3 + $0x30] sm:$0xff] %v482
  %532 = vst [vmem:[%s3 + $0x38] sm:$0xff] %v483
  %533 = vst [vmem:[%s3 + $0x40] sm:$0xff] %v484
  %534 = vst [vmem:[%s3 + $0x48] sm:$0xff] %v485
  %535 = vst [vmem:[%s3 + $0x50] sm:$0xff] %v486
  %536 = vst [vmem:[%s3 + $0x58] sm:$0xff] %v487
  %537 = vst [vmem:[%s3 + $0x60] sm:$0xff] %v488
  %538 = vst [vmem:[%s3 + $0x68] sm:$0xff] %v489
  %539 = vst [vmem:[%s3 + $0x70] sm:$0xff] %v490
  %540 = vst [vmem:[%s3 + $0x78] sm:$0xff] %v491
  %541 = vst [vmem:[%s3 + $0x80] sm:$0xff] %v492
  %542 = vst [vmem:[%s3 + $0x88] sm:$0xff] %v493
  %543 = vst [vmem:[%s3 + $0x90] sm:$0xff] %v494
  %544 = vst [vmem:[%s3 + $0x98] sm:$0xff] %v495
  %545 = vst [vmem:[%s3 + $0xa0] sm:$0xff] %v496
  %546 = vst [vmem:[%s3 + $0xa8] sm:$0xff] %v497
  %547 = vst [vmem:[%s3 + $0xb0] sm:$0xff] %v498
  %548 = vst [vmem:[%s3 + $0xb8] sm:$0xff] %v499
  %549 = vst [vmem:[%s3 + $0xc0] sm:$0xff] %v500
  %550 = vst [vmem:[%s3 + $0xc8] sm:$0xff] %v501
  %551 = vst [vmem:[%s3 + $0xd0] sm:$0xff] %v502
  %552 = vst [vmem:[%s3 + $0xd8] sm:$0xff] %v503
  %553 = vst [vmem:[%s3 + $0xe0] sm:$0xff] %v504
  %554 = vst [vmem:[%s3 + $0xe8] sm:$0xff] %v505
  %555 = vst [vmem:[%s3 + $0xf0] sm:$0xff] %v506
  %556 = vst [vmem:[%s3 + $0xf8] sm:$0xff] %v507
  %557 = vst [vmem:[%s3 + $0x100] sm:$0xff] %v508
  %558 = vst [vmem:[%s3 + $0x108] sm:$0xff] %v509
  %559 = vst [vmem:[%s3 + $0x110] sm:$0xff] %v510
  %560 = vst [vmem:[%s3 + $0x118] sm:$0xff] %v511
  %561 = vst [vmem:[%s3 + $0x120] sm:$0xff] %v512
  %562 = vst [vmem:[%s3 + $0x128] sm:$0xff] %v513
  %563 = vst [vmem:[%s3 + $0x130] sm:$0xff] %v514
  %564 = vst [vmem:[%s3 + $0x138] sm:$0xff] %v515
  %565 = vst [vmem:[%s3 + $0x140] sm:$0xff] %v516
  %566 = vst [vmem:[%s3 + $0x148] sm:$0xff] %v517
  %567 = vst [vmem:[%s3 + $0x150] sm:$0xff] %v518
  %568 = vst [vmem:[%s3 + $0x158] sm:$0xff] %v519
  %569 = vst [vmem:[%s3 + $0x160] sm:$0xff] %v520
  %570 = vst [vmem:[%s3 + $0x168] sm:$0xff] %v521
  %571 = vst [vmem:[%s3 + $0x170] sm:$0xff] %v522
  %572 = vst [vmem:[%s3 + $0x178] sm:$0xff] %v523
  %573 = vst [vmem:[%s3 + $0x180] sm:$0xff] %v524
  // Predicated region
  $region14: #{convnet_forward.10} parent=0 // pred_check
    _
  $region15: #{convnet_forward.10} parent=0 // pred_check_branch
    %575 = sbr.rel (0) target = $region17
  $region16: #{convnet_forward.10} parent=0 // pred_region
    _
  $region17: #{convnet_forward.10} parent=0 // pred_fallthru
    _
  // Predicated region
  $region18: #{convnet_forward.10} parent=0 // pred_check
    _
  $region19: #{convnet_forward.10} parent=0 // pred_check_branch
    %577 = sbr.rel (0) target = $region21
  $region20: #{convnet_forward.10} parent=0 // pred_region
    _
  $region21: #{convnet_forward.10} parent=0 // pred_fallthru
    _

// kernel: convnet_forward.11
$region0: #{convnet_forward.11}
  #allocation0 [shape = 'u32[]', space=smem, size = 0x4, offset = 0x4, fixed_abs, tag = 'smem constant byte address 0x4 - core index']
  #allocation1 [shape = 'u32[72,128]{1,0:T(1,128)}', space=vmem, size = 0x9000, scoped, tag = 'internal scratch']
  %s0 = inlined_call_operand.vmem [shape: f32[200,256], index: 0, kind: input, shape index: {}]
  %s1 = inlined_call_operand.vmem [shape: f32[200,128], index: 1, kind: output, shape index: {}]
  %s2 = sld [smem:[#allocation0]]
  $region14: #{convnet_forward.11} parent=0
    _
  %s4 = ssub.s32 1, %s2
  %s5 = scalar_select 0, %s4, %s2
  // Predicated region
  $region2: #{convnet_forward.11} parent=0 // pred_check
    _
  $region3: #{convnet_forward.11} parent=0 // pred_check_branch
    %7 = sbr.rel (0) target = $region5
  $region4: #{convnet_forward.11} parent=0 // pred_region
    _
  $region5: #{convnet_forward.11} parent=0 // pred_fallthru
    _
  %v8 = vld [vmem:[%s0] sm:$0xff]
  %v9 = vld [vmem:[%s0 + $0x10] sm:$0xff]
  %v10 = vld [vmem:[%s0 + $0x20] sm:$0xff]
  %v11 = vld [vmem:[%s0 + $0x30] sm:$0xff]
  %v12 = vld [vmem:[%s0 + $0x40] sm:$0xff]
  %v13 = vld [vmem:[%s0 + $0x50] sm:$0xff]
  %v14 = vld [vmem:[%s0 + $0x60] sm:$0xff]
  %v15 = vld [vmem:[%s0 + $0x70] sm:$0xff]
  %v16 = vld [vmem:[%s0 + $0x80] sm:$0xff]
  %v17 = vld [vmem:[%s0 + $0x90] sm:$0xff]
  %v18 = vld [vmem:[%s0 + $0xa0] sm:$0xff]
  %v19 = vld [vmem:[%s0 + $0xb0] sm:$0xff]
  %v20 = vld [vmem:[%s0 + $0xc0] sm:$0xff]
  %v21 = vld [vmem:[%s0 + $0xd0] sm:$0xff]
  %v22 = vld [vmem:[%s0 + $0xe0] sm:$0xff]
  %v23 = vld [vmem:[%s0 + $0xf0] sm:$0xff]
  %v24 = vld [vmem:[%s0 + $0x100] sm:$0xff]
  %v25 = vld [vmem:[%s0 + $0x110] sm:$0xff]
  %v26 = vld [vmem:[%s0 + $0x120] sm:$0xff]
  %v27 = vld [vmem:[%s0 + $0x130] sm:$0xff]
  %v28 = vld [vmem:[%s0 + $0x140] sm:$0xff]
  %v29 = vld [vmem:[%s0 + $0x150] sm:$0xff]
  %v30 = vld [vmem:[%s0 + $0x160] sm:$0xff]
  %v31 = vld [vmem:[%s0 + $0x170] sm:$0xff]
  %v32 = vld [vmem:[%s0 + $0x180] sm:$0xff]
  %v33 = vld [vmem:[%s0 + $0x8] sm:$0xff]
  %v34 = vld [vmem:[%s0 + $0x18] sm:$0xff]
  %v35 = vld [vmem:[%s0 + $0x28] sm:$0xff]
  %v36 = vld [vmem:[%s0 + $0x38] sm:$0xff]
  %v37 = vld [vmem:[%s0 + $0x48] sm:$0xff]
  %v38 = vld [vmem:[%s0 + $0x58] sm:$0xff]
  %v39 = vld [vmem:[%s0 + $0x68] sm:$0xff]
  %v40 = vld [vmem:[%s0 + $0x78] sm:$0xff]
  %v41 = vld [vmem:[%s0 + $0x88] sm:$0xff]
  %v42 = vld [vmem:[%s0 + $0x98] sm:$0xff]
  %v43 = vld [vmem:[%s0 + $0xa8] sm:$0xff]
  %v44 = vld [vmem:[%s0 + $0xb8] sm:$0xff]
  %v45 = vld [vmem:[%s0 + $0xc8] sm:$0xff]
  %v46 = vld [vmem:[%s0 + $0xd8] sm:$0xff]
  %v47 = vld [vmem:[%s0 + $0xe8] sm:$0xff]
  %v48 = vld [vmem:[%s0 + $0xf8] sm:$0xff]
  %v49 = vld [vmem:[%s0 + $0x108] sm:$0xff]
  %v50 = vld [vmem:[%s0 + $0x118] sm:$0xff]
  %v51 = vld [vmem:[%s0 + $0x128] sm:$0xff]
  %v52 = vld [vmem:[%s0 + $0x138] sm:$0xff]
  %v53 = vld [vmem:[%s0 + $0x148] sm:$0xff]
  %v54 = vld [vmem:[%s0 + $0x158] sm:$0xff]
  %v55 = vld [vmem:[%s0 + $0x168] sm:$0xff]
  %v56 = vld [vmem:[%s0 + $0x178] sm:$0xff]
  %v57 = vld [vmem:[%s0 + $0x188] sm:$0xff]
  %v58 = vmax.f32 %v8, %v33
  %v59 = vmax.f32 %v9, %v34
  %v60 = vmax.f32 %v10, %v35
  %v61 = vmax.f32 %v11, %v36
  %v62 = vmax.f32 %v12, %v37
  %v63 = vmax.f32 %v13, %v38
  %v64 = vmax.f32 %v14, %v39
  %v65 = vmax.f32 %v15, %v40
  %v66 = vmax.f32 %v16, %v41
  %v67 = vmax.f32 %v17, %v42
  %v68 = vmax.f32 %v18, %v43
  %v69 = vmax.f32 %v19, %v44
  %v70 = vmax.f32 %v20, %v45
  %v71 = vmax.f32 %v21, %v46
  %v72 = vmax.f32 %v22, %v47
  %v73 = vmax.f32 %v23, %v48
  %v74 = vmax.f32 %v24, %v49
  %v75 = vmax.f32 %v25, %v50
  %v76 = vmax.f32 %v26, %v51
  %v77 = vmax.f32 %v27, %v52
  %v78 = vmax.f32 %v28, %v53
  %v79 = vmax.f32 %v29, %v54
  %v80 = vmax.f32 %v30, %v55
  %v81 = vmax.f32 %v31, %v56
  %v82 = vmax.f32 %v32, %v57
  %83 = vst [vmem:[%s1] sm:$0xff] %v58
  %84 = vst [vmem:[%s1 + $0x8] sm:$0xff] %v59
  %85 = vst [vmem:[%s1 + $0x10] sm:$0xff] %v60
  %86 = vst [vmem:[%s1 + $0x18] sm:$0xff] %v61
  %87 = vst [vmem:[%s1 + $0x20] sm:$0xff] %v62
  %88 = vst [vmem:[%s1 + $0x28] sm:$0xff] %v63
  %89 = vst [vmem:[%s1 + $0x30] sm:$0xff] %v64
  %90 = vst [vmem:[%s1 + $0x38] sm:$0xff] %v65
  %91 = vst [vmem:[%s1 + $0x40] sm:$0xff] %v66
  %92 = vst [vmem:[%s1 + $0x48] sm:$0xff] %v67
  %93 = vst [vmem:[%s1 + $0x50] sm:$0xff] %v68
  %94 = vst [vmem:[%s1 + $0x58] sm:$0xff] %v69
  %95 = vst [vmem:[%s1 + $0x60] sm:$0xff] %v70
  %96 = vst [vmem:[%s1 + $0x68] sm:$0xff] %v71
  %97 = vst [vmem:[%s1 + $0x70] sm:$0xff] %v72
  %98 = vst [vmem:[%s1 + $0x78] sm:$0xff] %v73
  %99 = vst [vmem:[%s1 + $0x80] sm:$0xff] %v74
  %100 = vst [vmem:[%s1 + $0x88] sm:$0xff] %v75
  %101 = vst [vmem:[%s1 + $0x90] sm:$0xff] %v76
  %102 = vst [vmem:[%s1 + $0x98] sm:$0xff] %v77
  %103 = vst [vmem:[%s1 + $0xa0] sm:$0xff] %v78
  %104 = vst [vmem:[%s1 + $0xa8] sm:$0xff] %v79
  %105 = vst [vmem:[%s1 + $0xb0] sm:$0xff] %v80
  %106 = vst [vmem:[%s1 + $0xb8] sm:$0xff] %v81
  %107 = vst [vmem:[%s1 + $0xc0] sm:$0xff] %v82
  // Predicated region
  $region6: #{convnet_forward.11} parent=0 // pred_check
    _
  $region7: #{convnet_forward.11} parent=0 // pred_check_branch
    %109 = sbr.rel (0) target = $region9
  $region8: #{convnet_forward.11} parent=0 // pred_region
    _
  $region9: #{convnet_forward.11} parent=0 // pred_fallthru
    _
  // Predicated region
  $region10: #{convnet_forward.11} parent=0 // pred_check
    _
  $region11: #{convnet_forward.11} parent=0 // pred_check_branch
    %111 = sbr.rel (0) target = $region13
  $region12: #{convnet_forward.11} parent=0 // pred_region
    _
  $region13: #{convnet_forward.11} parent=0 // pred_fallthru
    _

// kernel: convnet_forward.12
$region0: #{convnet_forward.12}
  #allocation0 [shape = 'u32[]', space=smem, size = 0x4, offset = 0x4, fixed_abs, tag = 'smem constant byte address 0x4 - core index']
  #allocation1 [shape = 'u32[72,128]{1,0:T(1,128)}', space=vmem, size = 0x9000, scoped, tag = 'internal scratch']
  %s0 = inlined_call_operand.vmem [shape: f32[16,1792], index: 0, kind: input, shape index: {}]
  %s1 = inlined_call_operand.vmem [shape: f32[16,896], index: 1, kind: output, shape index: {}]
  %s2 = sld [smem:[#allocation0]]
  $region14: #{convnet_forward.12} parent=0
    _
  %s4 = ssub.s32 1, %s2
  %s5 = scalar_select 0, %s4, %s2
  // Predicated region
  $region2: #{convnet_forward.12} parent=0 // pred_check
    _
  $region3: #{convnet_forward.12} parent=0 // pred_check_branch
    %7 = sbr.rel (0) target = $region5
  $region4: #{convnet_forward.12} parent=0 // pred_region
    _
  $region5: #{convnet_forward.12} parent=0 // pred_fallthru
    _
  %v8 = vld [vmem:[%s0] sm:$0xff]
  %v9 = vld [vmem:[%s0 + $0x8] sm:$0xff]
  %v10 = vld [vmem:[%s0 + $0x10] sm:$0xff]
  %v11 = vld [vmem:[%s0 + $0x18] sm:$0xff]
  %v12 = vld [vmem:[%s0 + $0x20] sm:$0xff]
  %v13 = vld [vmem:[%s0 + $0x28] sm:$0xff]
  %v14 = vld [vmem:[%s0 + $0x30] sm:$0xff]
  %v15 = vld [vmem:[%s0 + $0x70] sm:$0xff]
  %v16 = vld [vmem:[%s0 + $0x78] sm:$0xff]
  %v17 = vld [vmem:[%s0 + $0x80] sm:$0xff]
  %v18 = vld [vmem:[%s0 + $0x88] sm:$0xff]
  %v19 = vld [vmem:[%s0 + $0x90] sm:$0xff]
  %v20 = vld [vmem:[%s0 + $0x98] sm:$0xff]
  %v21 = vld [vmem:[%s0 + $0xa0] sm:$0xff]
  %v22 = vld [vmem:[%s0 + $0x38] sm:$0xff]
  %v23 = vld [vmem:[%s0 + $0x40] sm:$0xff]
  %v24 = vld [vmem:[%s0 + $0x48] sm:$0xff]
  %v25 = vld [vmem:[%s0 + $0x50] sm:$0xff]
  %v26 = vld [vmem:[%s0 + $0x58] sm:$0xff]
  %v27 = vld [vmem:[%s0 + $0x60] sm:$0xff]
  %v28 = vld [vmem:[%s0 + $0x68] sm:$0xff]
  %v29 = vld [vmem:[%s0 + $0xa8] sm:$0xff]
  %v30 = vld [vmem:[%s0 + $0xb0] sm:$0xff]
  %v31 = vld [vmem:[%s0 + $0xb8] sm:$0xff]
  %v32 = vld [vmem:[%s0 + $0xc0] sm:$0xff]
  %v33 = vld [vmem:[%s0 + $0xc8] sm:$0xff]
  %v34 = vld [vmem:[%s0 + $0xd0] sm:$0xff]
  %v35 = vld [vmem:[%s0 + $0xd8] sm:$0xff]
  %v36 = vmax.f32 %v8, %v22
  %v37 = vmax.f32 %v9, %v23
  %v38 = vmax.f32 %v10, %v24
  %v39 = vmax.f32 %v11, %v25
  %v40 = vmax.f32 %v12, %v26
  %v41 = vmax.f32 %v13, %v27
  %v42 = vmax.f32 %v14, %v28
  %v43 = vmax.f32 %v15, %v29
  %v44 = vmax.f32 %v16, %v30
  %v45 = vmax.f32 %v17, %v31
  %v46 = vmax.f32 %v18, %v32
  %v47 = vmax.f32 %v19, %v33
  %v48 = vmax.f32 %v20, %v34
  %v49 = vmax.f32 %v21, %v35
  %50 = vst [vmem:[%s1] sm:$0xff] %v36
  %51 = vst [vmem:[%s1 + $0x8] sm:$0xff] %v37
  %52 = vst [vmem:[%s1 + $0x10] sm:$0xff] %v38
  %53 = vst [vmem:[%s1 + $0x18] sm:$0xff] %v39
  %54 = vst [vmem:[%s1 + $0x20] sm:$0xff] %v40
  %55 = vst [vmem:[%s1 + $0x28] sm:$0xff] %v41
  %56 = vst [vmem:[%s1 + $0x30] sm:$0xff] %v42
  %57 = vst [vmem:[%s1 + $0x38] sm:$0xff] %v43
  %58 = vst [vmem:[%s1 + $0x40] sm:$0xff] %v44
  %59 = vst [vmem:[%s1 + $0x48] sm:$0xff] %v45
  %60 = vst [vmem:[%s1 + $0x50] sm:$0xff] %v46
  %61 = vst [vmem:[%s1 + $0x58] sm:$0xff] %v47
  %62 = vst [vmem:[%s1 + $0x60] sm:$0xff] %v48
  %63 = vst [vmem:[%s1 + $0x68] sm:$0xff] %v49
  // Predicated region
  $region6: #{convnet_forward.12} parent=0 // pred_check
    _
  $region7: #{convnet_forward.12} parent=0 // pred_check_branch
    %65 = sbr.rel (0) target = $region9
  $region8: #{convnet_forward.12} parent=0 // pred_region
    _
  $region9: #{convnet_forward.12} parent=0 // pred_fallthru
    _
  // Predicated region
  $region10: #{convnet_forward.12} parent=0 // pred_check
    _
  $region11: #{convnet_forward.12} parent=0 // pred_check_branch
    %67 = sbr.rel (0) target = $region13
  $region12: #{convnet_forward.12} parent=0 // pred_region
    _
  $region13: #{convnet_forward.12} parent=0 // pred_fallthru
    _

// kernel: convnet_forward.13
$region0: #{convnet_forward.13}
  #allocation0 [shape = 'u32[]', space=smem, size = 0x4, offset = 0x4, fixed_abs, tag = 'smem constant byte address 0x4 - core index']
  #allocation1 [shape = 'u32[72,128]{1,0:T(1,128)}', space=vmem, size = 0x9000, scoped, tag = 'internal scratch']
  %s0 = inlined_call_operand.vmem [shape: f32[2,784], index: 0, kind: input, shape index: {}]
  %s1 = inlined_call_operand.vmem [shape: f32[784,512], index: 1, kind: input, shape index: {}]
  %s2 = inlined_call_operand.vmem [shape: f32[1,512], index: 2, kind: input, shape index: {}]
  %s3 = inlined_call_operand.vmem [shape: f32[512,10], index: 3, kind: input, shape index: {}]
  %s4 = inlined_call_operand.vmem [shape: f32[1,10], index: 4, kind: input, shape index: {}]
  %s5 = inlined_call_operand.hbm [shape: f32[2,10], index: 5, kind: output, shape index: {}]
  %s6 = sld [smem:[#allocation0]]
  $region30: #{convnet_forward.13} parent=0
    _
  %s8 = ssub.s32 1, %s6
  %s9 = scalar_select 0, %s8, %s6
  $region1: #{convnet_forward.13} parent=0
    #allocation2 [shape = 'u8[1024]{0}', space=vmem, size = 0x400, scoped, tag = 'output window, operand 0, single buffered']
    #allocation3 [shape = 's32[1]{0}', space=sflag, size = 0x4, scoped, tag = 'scoped memory for convnet_forward.13']
    %10 = vsyncpa [#allocation3], 0
    // Predicated region
    $region2: #{convnet_forward.13} parent=1 // pred_check
      _
    $region3: #{convnet_forward.13} parent=1 // pred_check_branch
      %12 = sbr.rel (0) target = $region5
    $region4: #{convnet_forward.13} parent=1 // pred_region
      _
    $region5: #{convnet_forward.13} parent=1 // pred_fallthru
      _
    // Predicated region
    $region6: #{convnet_forward.13} parent=1 // pred_check
      _
    $region7: #{convnet_forward.13} parent=1 // pred_check_branch
      %14 = sbr.rel (0) target = $region9
    $region8: #{convnet_forward.13} parent=1 // pred_region
      _
    $region9: #{convnet_forward.13} parent=1 // pred_fallthru
      _
    // Predicated region
    $region10: #{convnet_forward.13} parent=1 // pred_check
      _
    $region11: #{convnet_forward.13} parent=1 // pred_check_branch
      %16 = sbr.rel (0) target = $region13
    $region12: #{convnet_forward.13} parent=1 // pred_region
      _
    $region13: #{convnet_forward.13} parent=1 // pred_fallthru
      _
    // Predicated region
    $region14: #{convnet_forward.13} parent=1 // pred_check
      _
    $region15: #{convnet_forward.13} parent=1 // pred_check_branch
      %18 = sbr.rel (0) target = $region17
    $region16: #{convnet_forward.13} parent=1 // pred_region
      _
    $region17: #{convnet_forward.13} parent=1 // pred_fallthru
      _
    // Predicated region
    $region18: #{convnet_forward.13} parent=1 // pred_check
      _
    $region19: #{convnet_forward.13} parent=1 // pred_check_branch
      %20 = sbr.rel (0) target = $region21
    $region20: #{convnet_forward.13} parent=1 // pred_region
      _
    $region21: #{convnet_forward.13} parent=1 // pred_fallthru
      _
    %v21 = vld [vmem:[%s0] sm:$0xff]
    %v22 = vld [vmem:[%s0 + $0x8] sm:$0x3f]
    %v23 = vld [vmem:[%s1] sm:$0xff]
    %v24 = vld [vmem:[%s1 + $0x8] sm:$0xff]
    %v25 = vld [vmem:[%s1 + $0x10] sm:$0xff]
    %v26 = vld [vmem:[%s1 + $0x18] sm:$0xff]
    %v27 = vld [vmem:[%s1 + $0x20] sm:$0xff]
    %v28 = vld [vmem:[%s1 + $0x28] sm:$0xff]
    %v29 = vld [vmem:[%s1 + $0x30] sm:$0xff]
    %v30 = vld [vmem:[%s1 + $0x38] sm:$0xff]
    %v31 = vld [vmem:[%s1 + $0x40] sm:$0xff]
    %v32 = vld [vmem:[%s1 + $0x48] sm:$0xff]
    %v33 = vld [vmem:[%s1 + $0x50] sm:$0xff]
    %v34 = vld [vmem:[%s1 + $0x58] sm:$0xff]
    %v35 = vld [vmem:[%s1 + $0x60] sm:$0xff]
    %v36 = vld [vmem:[%s1 + $0x68] sm:$0xff]
    %v37 = vld [vmem:[%s1 + $0x70] sm:$0xff]
    %v38 = vld [vmem:[%s1 + $0x78] sm:$0xff]
    %v39 = vld [vmem:[%s1 + $0x80] sm:$0xff]
    %v40 = vld [vmem:[%s1 + $0x88] sm:$0xff]
    %v41 = vld [vmem:[%s1 + $0x90] sm:$0xff]
    %v42 = vld [vmem:[%s1 + $0x98] sm:$0xff]
    %v43 = vld [vmem:[%s1 + $0xa0] sm:$0xff]
    %v44 = vld [vmem:[%s1 + $0xa8] sm:$0xff]
    %v45 = vld [vmem:[%s1 + $0xb0] sm:$0xff]
    %v46 = vld [vmem:[%s1 + $0xb8] sm:$0xff]
    %v47 = vld [vmem:[%s1 + $0xc0] sm:$0xff]
    %v48 = vld [vmem:[%s1 + $0xc8] sm:$0xff]
    %v49 = vld [vmem:[%s1 + $0xd0] sm:$0xff]
    %v50 = vld [vmem:[%s1 + $0xd8] sm:$0xff]
    %v51 = vld [vmem:[%s1 + $0xe0] sm:$0xff]
    %v52 = vld [vmem:[%s1 + $0xe8] sm:$0xff]
    %v53 = vld [vmem:[%s1 + $0xf0] sm:$0xff]
    %v54 = vld [vmem:[%s1 + $0xf8] sm:$0xff]
    %v55 = vld [vmem:[%s1 + $0x100] sm:$0xff]
    %v56 = vld [vmem:[%s1 + $0x108] sm:$0xff]
    %v57 = vld [vmem:[%s1 + $0x110] sm:$0xff]
    %v58 = vld [vmem:[%s1 + $0x118] sm:$0xff]
    %v59 = vld [vmem:[%s1 + $0x120] sm:$0xff]
    %v60 = vld [vmem:[%s1 + $0x128] sm:$0xff]
    %v61 = vld [vmem:[%s1 + $0x130] sm:$0xff]
    %v62 = vld [vmem:[%s1 + $0x138] sm:$0xff]
    %v63 = vld [vmem:[%s1 + $0x140] sm:$0xff]
    %v64 = vld [vmem:[%s1 + $0x148] sm:$0xff]
    %v65 = vld [vmem:[%s1 + $0x150] sm:$0xff]
    %v66 = vld [vmem:[%s1 + $0x158] sm:$0xff]
    %v67 = vld [vmem:[%s1 + $0x160] sm:$0xff]
    %v68 = vld [vmem:[%s1 + $0x168] sm:$0xff]
    %v69 = vld [vmem:[%s1 + $0x170] sm:$0xff]
    %v70 = vld [vmem:[%s1 + $0x178] sm:$0xff]
    %v71 = vld [vmem:[%s1 + $0x180] sm:$0xff]
    %v72 = vld [vmem:[%s1 + $0x188] sm:$0xff]
    %v73 = vld [vmem:[%s1 + $0x190] sm:$0xff]
    %v74 = vld [vmem:[%s1 + $0x198] sm:$0xff]
    %v75 = vld [vmem:[%s1 + $0x1a0] sm:$0xff]
    %v76 = vld [vmem:[%s1 + $0x1a8] sm:$0xff]
    %v77 = vld [vmem:[%s1 + $0x1b0] sm:$0xff]
    %v78 = vld [vmem:[%s1 + $0x1b8] sm:$0xff]
    %v79 = vld [vmem:[%s1 + $0x1c0] sm:$0xff]
    %v80 = vld [vmem:[%s1 + $0x1c8] sm:$0xff]
    %v81 = vld [vmem:[%s1 + $0x1d0] sm:$0xff]
    %v82 = vld [vmem:[%s1 + $0x1d8] sm:$0xff]
    %v83 = vld [vmem:[%s1 + $0x1e0] sm:$0xff]
    %v84 = vld [vmem:[%s1 + $0x1e8] sm:$0xff]
    %v85 = vld [vmem:[%s1 + $0x1f0] sm:$0xff]
    %v86 = vld [vmem:[%s1 + $0x1f8] sm:$0xff]
    %v87 = vld [vmem:[%s1 + $0x200] sm:$0xff]
    %v88 = vld [vmem:[%s1 + $0x208] sm:$0xff]
    %v89 = vld [vmem:[%s1 + $0x210] sm:$0xff]
    %v90 = vld [vmem:[%s1 + $0x218] sm:$0xff]
    %v91 = vld [vmem:[%s1 + $0x220] sm:$0xff]
    %v92 = vld [vmem:[%s1 + $0x228] sm:$0xff]
    %v93 = vld [vmem:[%s1 + $0x230] sm:$0xff]
    %v94 = vld [vmem:[%s1 + $0x238] sm:$0xff]
    %v95 = vld [vmem:[%s1 + $0x240] sm:$0xff]
    %v96 = vld [vmem:[%s1 + $0x248] sm:$0xff]
    %v97 = vld [vmem:[%s1 + $0x250] sm:$0xff]
    %v98 = vld [vmem:[%s1 + $0x258] sm:$0xff]
    %v99 = vld [vmem:[%s1 + $0x260] sm:$0xff]
    %v100 = vld [vmem:[%s1 + $0x268] sm:$0xff]
    %v101 = vld [vmem:[%s1 + $0x270] sm:$0xff]
    %v102 = vld [vmem:[%s1 + $0x278] sm:$0xff]
    %v103 = vld [vmem:[%s1 + $0x280] sm:$0xff]
    %v104 = vld [vmem:[%s1 + $0x288] sm:$0xff]
    %v105 = vld [vmem:[%s1 + $0x290] sm:$0xff]
    %v106 = vld [vmem:[%s1 + $0x298] sm:$0xff]
    %v107 = vld [vmem:[%s1 + $0x2a0] sm:$0xff]
    %v108 = vld [vmem:[%s1 + $0x2a8] sm:$0xff]
    %v109 = vld [vmem:[%s1 + $0x2b0] sm:$0xff]
    %v110 = vld [vmem:[%s1 + $0x2b8] sm:$0xff]
    %v111 = vld [vmem:[%s1 + $0x2c0] sm:$0xff]
    %v112 = vld [vmem:[%s1 + $0x2c8] sm:$0xff]
    %v113 = vld [vmem:[%s1 + $0x2d0] sm:$0xff]
    %v114 = vld [vmem:[%s1 + $0x2d8] sm:$0xff]
    %v115 = vld [vmem:[%s1 + $0x2e0] sm:$0xff]
    %v116 = vld [vmem:[%s1 + $0x2e8] sm:$0xff]
    %v117 = vld [vmem:[%s1 + $0x2f0] sm:$0xff]
    %v118 = vld [vmem:[%s1 + $0x2f8] sm:$0xff]
    %v119 = vld [vmem:[%s1 + $0x300] sm:$0xff]
    %v120 = vld [vmem:[%s1 + $0x308] sm:$0xff]
    %v121 = vld [vmem:[%s1 + $0x310] sm:$0xff]
    %v122 = vld [vmem:[%s1 + $0x318] sm:$0xff]
    %v123 = vld [vmem:[%s1 + $0x320] sm:$0xff]
    %v124 = vld [vmem:[%s1 + $0x328] sm:$0xff]
    %v125 = vld [vmem:[%s1 + $0x330] sm:$0xff]
    %v126 = vld [vmem:[%s1 + $0x338] sm:$0xff]
    %v127 = vld [vmem:[%s1 + $0x340] sm:$0xff]
    %v128 = vld [vmem:[%s1 + $0x348] sm:$0xff]
    %v129 = vld [vmem:[%s1 + $0x350] sm:$0xff]
    %v130 = vld [vmem:[%s1 + $0x358] sm:$0xff]
    %v131 = vld [vmem:[%s1 + $0x360] sm:$0xff]
    %v132 = vld [vmem:[%s1 + $0x368] sm:$0xff]
    %v133 = vld [vmem:[%s1 + $0x370] sm:$0xff]
    %v134 = vld [vmem:[%s1 + $0x378] sm:$0xff]
    %v135 = vld [vmem:[%s1 + $0x380] sm:$0xff]
    %v136 = vld [vmem:[%s1 + $0x388] sm:$0xff]
    %v137 = vld [vmem:[%s1 + $0x390] sm:$0xff]
    %v138 = vld [vmem:[%s1 + $0x398] sm:$0xff]
    %v139 = vld [vmem:[%s1 + $0x3a0] sm:$0xff]
    %v140 = vld [vmem:[%s1 + $0x3a8] sm:$0xff]
    %v141 = vld [vmem:[%s1 + $0x3b0] sm:$0xff]
    %v142 = vld [vmem:[%s1 + $0x3b8] sm:$0xff]
    %v143 = vld [vmem:[%s1 + $0x3c0] sm:$0xff]
    %v144 = vld [vmem:[%s1 + $0x3c8] sm:$0xff]
    %v145 = vld [vmem:[%s1 + $0x3d0] sm:$0xff]
    %v146 = vld [vmem:[%s1 + $0x3d8] sm:$0xff]
    %v147 = vld [vmem:[%s1 + $0x3e0] sm:$0xff]
    %v148 = vld [vmem:[%s1 + $0x3e8] sm:$0xff]
    %v149 = vld [vmem:[%s1 + $0x3f0] sm:$0xff]
    %v150 = vld [vmem:[%s1 + $0x3f8] sm:$0xff]
    %v151 = vld [vmem:[%s1 + $0x400] sm:$0xff]
    %v152 = vld [vmem:[%s1 + $0x408] sm:$0xff]
    %v153 = vld [vmem:[%s1 + $0x410] sm:$0xff]
    %v154 = vld [vmem:[%s1 + $0x418] sm:$0xff]
    %v155 = vld [vmem:[%s1 + $0x420] sm:$0xff]
    %v156 = vld [vmem:[%s1 + $0x428] sm:$0xff]
    %v157 = vld [vmem:[%s1 + $0x430] sm:$0xff]
    %v158 = vld [vmem:[%s1 + $0x438] sm:$0xff]
    %v159 = vld [vmem:[%s1 + $0x440] sm:$0xff]
    %v160 = vld [vmem:[%s1 + $0x448] sm:$0xff]
    %v161 = vld [vmem:[%s1 + $0x450] sm:$0xff]
    %v162 = vld [vmem:[%s1 + $0x458] sm:$0xff]
    %v163 = vld [vmem:[%s1 + $0x460] sm:$0xff]
    %v164 = vld [vmem:[%s1 + $0x468] sm:$0xff]
    %v165 = vld [vmem:[%s1 + $0x470] sm:$0xff]
    %v166 = vld [vmem:[%s1 + $0x478] sm:$0xff]
    %v167 = vld [vmem:[%s1 + $0x480] sm:$0xff]
    %v168 = vld [vmem:[%s1 + $0x488] sm:$0xff]
    %v169 = vld [vmem:[%s1 + $0x490] sm:$0xff]
    %v170 = vld [vmem:[%s1 + $0x498] sm:$0xff]
    %v171 = vld [vmem:[%s1 + $0x4a0] sm:$0xff]
    %v172 = vld [vmem:[%s1 + $0x4a8] sm:$0xff]
    %v173 = vld [vmem:[%s1 + $0x4b0] sm:$0xff]
    %v174 = vld [vmem:[%s1 + $0x4b8] sm:$0xff]
    %v175 = vld [vmem:[%s1 + $0x4c0] sm:$0xff]
    %v176 = vld [vmem:[%s1 + $0x4c8] sm:$0xff]
    %v177 = vld [vmem:[%s1 + $0x4d0] sm:$0xff]
    %v178 = vld [vmem:[%s1 + $0x4d8] sm:$0xff]
    %v179 = vld [vmem:[%s1 + $0x4e0] sm:$0xff]
    %v180 = vld [vmem:[%s1 + $0x4e8] sm:$0xff]
    %v181 = vld [vmem:[%s1 + $0x4f0] sm:$0xff]
    %v182 = vld [vmem:[%s1 + $0x4f8] sm:$0xff]
    %v183 = vld [vmem:[%s1 + $0x500] sm:$0xff]
    %v184 = vld [vmem:[%s1 + $0x508] sm:$0xff]
    %v185 = vld [vmem:[%s1 + $0x510] sm:$0xff]
    %v186 = vld [vmem:[%s1 + $0x518] sm:$0xff]
    %v187 = vld [vmem:[%s1 + $0x520] sm:$0xff]
    %v188 = vld [vmem:[%s1 + $0x528] sm:$0xff]
    %v189 = vld [vmem:[%s1 + $0x530] sm:$0xff]
    %v190 = vld [vmem:[%s1 + $0x538] sm:$0xff]
    %v191 = vld [vmem:[%s1 + $0x540] sm:$0xff]
    %v192 = vld [vmem:[%s1 + $0x548] sm:$0xff]
    %v193 = vld [vmem:[%s1 + $0x550] sm:$0xff]
    %v194 = vld [vmem:[%s1 + $0x558] sm:$0xff]
    %v195 = vld [vmem:[%s1 + $0x560] sm:$0xff]
    %v196 = vld [vmem:[%s1 + $0x568] sm:$0xff]
    %v197 = vld [vmem:[%s1 + $0x570] sm:$0xff]
    %v198 = vld [vmem:[%s1 + $0x578] sm:$0xff]
    %v199 = vld [vmem:[%s1 + $0x580] sm:$0xff]
    %v200 = vld [vmem:[%s1 + $0x588] sm:$0xff]
    %v201 = vld [vmem:[%s1 + $0x590] sm:$0xff]
    %v202 = vld [vmem:[%s1 + $0x598] sm:$0xff]
    %v203 = vld [vmem:[%s1 + $0x5a0] sm:$0xff]
    %v204 = vld [vmem:[%s1 + $0x5a8] sm:$0xff]
    %v205 = vld [vmem:[%s1 + $0x5b0] sm:$0xff]
    %v206 = vld [vmem:[%s1 + $0x5b8] sm:$0xff]
    %v207 = vld [vmem:[%s1 + $0x5c0] sm:$0xff]
    %v208 = vld [vmem:[%s1 + $0x5c8] sm:$0xff]
    %v209 = vld [vmem:[%s1 + $0x5d0] sm:$0xff]
    %v210 = vld [vmem:[%s1 + $0x5d8] sm:$0xff]
    %v211 = vld [vmem:[%s1 + $0x5e0] sm:$0xff]
    %v212 = vld [vmem:[%s1 + $0x5e8] sm:$0xff]
    %v213 = vld [vmem:[%s1 + $0x5f0] sm:$0xff]
    %v214 = vld [vmem:[%s1 + $0x5f8] sm:$0xff]
    %v215 = vld [vmem:[%s1 + $0x600] sm:$0xff]
    %v216 = vld [vmem:[%s1 + $0x608] sm:$0xff]
    %v217 = vld [vmem:[%s1 + $0x610] sm:$0xff]
    %v218 = vld [vmem:[%s1 + $0x618] sm:$0xff]
    %v219 = vld [vmem:[%s1 + $0x620] sm:$0xff]
    %v220 = vld [vmem:[%s1 + $0x628] sm:$0xff]
    %v221 = vld [vmem:[%s1 + $0x630] sm:$0xff]
    %v222 = vld [vmem:[%s1 + $0x638] sm:$0xff]
    %v223 = vld [vmem:[%s1 + $0x640] sm:$0xff]
    %v224 = vld [vmem:[%s1 + $0x648] sm:$0xff]
    %v225 = vld [vmem:[%s1 + $0x650] sm:$0xff]
    %v226 = vld [vmem:[%s1 + $0x658] sm:$0xff]
    %v227 = vld [vmem:[%s1 + $0x660] sm:$0xff]
    %v228 = vld [vmem:[%s1 + $0x668] sm:$0xff]
    %v229 = vld [vmem:[%s1 + $0x670] sm:$0xff]
    %v230 = vld [vmem:[%s1 + $0x678] sm:$0xff]
    %v231 = vld [vmem:[%s1 + $0x680] sm:$0xff]
    %v232 = vld [vmem:[%s1 + $0x688] sm:$0xff]
    %v233 = vld [vmem:[%s1 + $0x690] sm:$0xff]
    %v234 = vld [vmem:[%s1 + $0x698] sm:$0xff]
    %v235 = vld [vmem:[%s1 + $0x6a0] sm:$0xff]
    %v236 = vld [vmem:[%s1 + $0x6a8] sm:$0xff]
    %v237 = vld [vmem:[%s1 + $0x6b0] sm:$0xff]
    %v238 = vld [vmem:[%s1 + $0x6b8] sm:$0xff]
    %v239 = vld [vmem:[%s1 + $0x6c0] sm:$0xff]
    %v240 = vld [vmem:[%s1 + $0x6c8] sm:$0xff]
    %v241 = vld [vmem:[%s1 + $0x6d0] sm:$0xff]
    %v242 = vld [vmem:[%s1 + $0x6d8] sm:$0xff]
    %v243 = vld [vmem:[%s1 + $0x6e0] sm:$0xff]
    %v244 = vld [vmem:[%s1 + $0x6e8] sm:$0xff]
    %v245 = vld [vmem:[%s1 + $0x6f0] sm:$0xff]
    %v246 = vld [vmem:[%s1 + $0x6f8] sm:$0xff]
    %v247 = vld [vmem:[%s1 + $0x700] sm:$0xff]
    %v248 = vld [vmem:[%s1 + $0x708] sm:$0xff]
    %v249 = vld [vmem:[%s1 + $0x710] sm:$0xff]
    %v250 = vld [vmem:[%s1 + $0x718] sm:$0xff]
    %v251 = vld [vmem:[%s1 + $0x720] sm:$0xff]
    %v252 = vld [vmem:[%s1 + $0x728] sm:$0xff]
    %v253 = vld [vmem:[%s1 + $0x730] sm:$0xff]
    %v254 = vld [vmem:[%s1 + $0x738] sm:$0xff]
    %v255 = vld [vmem:[%s1 + $0x740] sm:$0xff]
    %v256 = vld [vmem:[%s1 + $0x748] sm:$0xff]
    %v257 = vld [vmem:[%s1 + $0x750] sm:$0xff]
    %v258 = vld [vmem:[%s1 + $0x758] sm:$0xff]
    %v259 = vld [vmem:[%s1 + $0x760] sm:$0xff]
    %v260 = vld [vmem:[%s1 + $0x768] sm:$0xff]
    %v261 = vld [vmem:[%s1 + $0x770] sm:$0xff]
    %v262 = vld [vmem:[%s1 + $0x778] sm:$0xff]
    %v263 = vld [vmem:[%s1 + $0x780] sm:$0xff]
    %v264 = vld [vmem:[%s1 + $0x788] sm:$0xff]
    %v265 = vld [vmem:[%s1 + $0x790] sm:$0xff]
    %v266 = vld [vmem:[%s1 + $0x798] sm:$0xff]
    %v267 = vld [vmem:[%s1 + $0x7a0] sm:$0xff]
    %v268 = vld [vmem:[%s1 + $0x7a8] sm:$0xff]
    %v269 = vld [vmem:[%s1 + $0x7b0] sm:$0xff]
    %v270 = vld [vmem:[%s1 + $0x7b8] sm:$0xff]
    %v271 = vld [vmem:[%s1 + $0x7c0] sm:$0xff]
    %v272 = vld [vmem:[%s1 + $0x7c8] sm:$0xff]
    %v273 = vld [vmem:[%s1 + $0x7d0] sm:$0xff]
    %v274 = vld [vmem:[%s1 + $0x7d8] sm:$0xff]
    %v275 = vld [vmem:[%s1 + $0x7e0] sm:$0xff]
    %v276 = vld [vmem:[%s1 + $0x7e8] sm:$0xff]
    %v277 = vld [vmem:[%s1 + $0x7f0] sm:$0xff]
    %v278 = vld [vmem:[%s1 + $0x7f8] sm:$0xff]
    %v279 = vld [vmem:[%s1 + $0x800] sm:$0xff]
    %v280 = vld [vmem:[%s1 + $0x808] sm:$0xff]
    %v281 = vld [vmem:[%s1 + $0x810] sm:$0xff]
    %v282 = vld [vmem:[%s1 + $0x818] sm:$0xff]
    %v283 = vld [vmem:[%s1 + $0x820] sm:$0xff]
    %v284 = vld [vmem:[%s1 + $0x828] sm:$0xff]
    %v285 = vld [vmem:[%s1 + $0x830] sm:$0xff]
    %v286 = vld [vmem:[%s1 + $0x838] sm:$0xff]
    %v287 = vld [vmem:[%s1 + $0x840] sm:$0xff]
    %v288 = vld [vmem:[%s1 + $0x848] sm:$0xff]
    %v289 = vld [vmem:[%s1 + $0x850] sm:$0xff]
    %v290 = vld [vmem:[%s1 + $0x858] sm:$0xff]
    %v291 = vld [vmem:[%s1 + $0x860] sm:$0xff]
    %v292 = vld [vmem:[%s1 + $0x868] sm:$0xff]
    %v293 = vld [vmem:[%s1 + $0x870] sm:$0xff]
    %v294 = vld [vmem:[%s1 + $0x878] sm:$0xff]
    %v295 = vld [vmem:[%s1 + $0x880] sm:$0xff]
    %v296 = vld [vmem:[%s1 + $0x888] sm:$0xff]
    %v297 = vld [vmem:[%s1 + $0x890] sm:$0xff]
    %v298 = vld [vmem:[%s1 + $0x898] sm:$0xff]
    %v299 = vld [vmem:[%s1 + $0x8a0] sm:$0xff]
    %v300 = vld [vmem:[%s1 + $0x8a8] sm:$0xff]
    %v301 = vld [vmem:[%s1 + $0x8b0] sm:$0xff]
    %v302 = vld [vmem:[%s1 + $0x8b8] sm:$0xff]
    %v303 = vld [vmem:[%s1 + $0x8c0] sm:$0xff]
    %v304 = vld [vmem:[%s1 + $0x8c8] sm:$0xff]
    %v305 = vld [vmem:[%s1 + $0x8d0] sm:$0xff]
    %v306 = vld [vmem:[%s1 + $0x8d8] sm:$0xff]
    %v307 = vld [vmem:[%s1 + $0x8e0] sm:$0xff]
    %v308 = vld [vmem:[%s1 + $0x8e8] sm:$0xff]
    %v309 = vld [vmem:[%s1 + $0x8f0] sm:$0xff]
    %v310 = vld [vmem:[%s1 + $0x8f8] sm:$0xff]
    %v311 = vld [vmem:[%s1 + $0x900] sm:$0xff]
    %v312 = vld [vmem:[%s1 + $0x908] sm:$0xff]
    %v313 = vld [vmem:[%s1 + $0x910] sm:$0xff]
    %v314 = vld [vmem:[%s1 + $0x918] sm:$0xff]
    %v315 = vld [vmem:[%s1 + $0x920] sm:$0xff]
    %v316 = vld [vmem:[%s1 + $0x928] sm:$0xff]
    %v317 = vld [vmem:[%s1 + $0x930] sm:$0xff]
    %v318 = vld [vmem:[%s1 + $0x938] sm:$0xff]
    %v319 = vld [vmem:[%s1 + $0x940] sm:$0xff]
    %v320 = vld [vmem:[%s1 + $0x948] sm:$0xff]
    %v321 = vld [vmem:[%s1 + $0x950] sm:$0xff]
    %v322 = vld [vmem:[%s1 + $0x958] sm:$0xff]
    %v323 = vld [vmem:[%s1 + $0x960] sm:$0xff]
    %v324 = vld [vmem:[%s1 + $0x968] sm:$0xff]
    %v325 = vld [vmem:[%s1 + $0x970] sm:$0xff]
    %v326 = vld [vmem:[%s1 + $0x978] sm:$0xff]
    %v327 = vld [vmem:[%s1 + $0x980] sm:$0xff]
    %v328 = vld [vmem:[%s1 + $0x988] sm:$0xff]
    %v329 = vld [vmem:[%s1 + $0x990] sm:$0xff]
    %v330 = vld [vmem:[%s1 + $0x998] sm:$0xff]
    %v331 = vld [vmem:[%s1 + $0x9a0] sm:$0xff]
    %v332 = vld [vmem:[%s1 + $0x9a8] sm:$0xff]
    %v333 = vld [vmem:[%s1 + $0x9b0] sm:$0xff]
    %v334 = vld [vmem:[%s1 + $0x9b8] sm:$0xff]
    %v335 = vld [vmem:[%s1 + $0x9c0] sm:$0xff]
    %v336 = vld [vmem:[%s1 + $0x9c8] sm:$0xff]
    %v337 = vld [vmem:[%s1 + $0x9d0] sm:$0xff]
    %v338 = vld [vmem:[%s1 + $0x9d8] sm:$0xff]
    %v339 = vld [vmem:[%s1 + $0x9e0] sm:$0xff]
    %v340 = vld [vmem:[%s1 + $0x9e8] sm:$0xff]
    %v341 = vld [vmem:[%s1 + $0x9f0] sm:$0xff]
    %v342 = vld [vmem:[%s1 + $0x9f8] sm:$0xff]
    %v343 = vld [vmem:[%s1 + $0xa00] sm:$0xff]
    %v344 = vld [vmem:[%s1 + $0xa08] sm:$0xff]
    %v345 = vld [vmem:[%s1 + $0xa10] sm:$0xff]
    %v346 = vld [vmem:[%s1 + $0xa18] sm:$0xff]
    %v347 = vld [vmem:[%s1 + $0xa20] sm:$0xff]
    %v348 = vld [vmem:[%s1 + $0xa28] sm:$0xff]
    %v349 = vld [vmem:[%s1 + $0xa30] sm:$0xff]
    %v350 = vld [vmem:[%s1 + $0xa38] sm:$0xff]
    %v351 = vld [vmem:[%s1 + $0xa40] sm:$0xff]
    %v352 = vld [vmem:[%s1 + $0xa48] sm:$0xff]
    %v353 = vld [vmem:[%s1 + $0xa50] sm:$0xff]
    %v354 = vld [vmem:[%s1 + $0xa58] sm:$0xff]
    %v355 = vld [vmem:[%s1 + $0xa60] sm:$0xff]
    %v356 = vld [vmem:[%s1 + $0xa68] sm:$0xff]
    %v357 = vld [vmem:[%s1 + $0xa70] sm:$0xff]
    %v358 = vld [vmem:[%s1 + $0xa78] sm:$0xff]
    %v359 = vld [vmem:[%s1 + $0xa80] sm:$0xff]
    %v360 = vld [vmem:[%s1 + $0xa88] sm:$0xff]
    %v361 = vld [vmem:[%s1 + $0xa90] sm:$0xff]
    %v362 = vld [vmem:[%s1 + $0xa98] sm:$0xff]
    %v363 = vld [vmem:[%s1 + $0xaa0] sm:$0xff]
    %v364 = vld [vmem:[%s1 + $0xaa8] sm:$0xff]
    %v365 = vld [vmem:[%s1 + $0xab0] sm:$0xff]
    %v366 = vld [vmem:[%s1 + $0xab8] sm:$0xff]
    %v367 = vld [vmem:[%s1 + $0xac0] sm:$0xff]
    %v368 = vld [vmem:[%s1 + $0xac8] sm:$0xff]
    %v369 = vld [vmem:[%s1 + $0xad0] sm:$0xff]
    %v370 = vld [vmem:[%s1 + $0xad8] sm:$0xff]
    %v371 = vld [vmem:[%s1 + $0xae0] sm:$0xff]
    %v372 = vld [vmem:[%s1 + $0xae8] sm:$0xff]
    %v373 = vld [vmem:[%s1 + $0xaf0] sm:$0xff]
    %v374 = vld [vmem:[%s1 + $0xaf8] sm:$0xff]
    %v375 = vld [vmem:[%s1 + $0xb00] sm:$0xff]
    %v376 = vld [vmem:[%s1 + $0xb08] sm:$0xff]
    %v377 = vld [vmem:[%s1 + $0xb10] sm:$0xff]
    %v378 = vld [vmem:[%s1 + $0xb18] sm:$0xff]
    %v379 = vld [vmem:[%s1 + $0xb20] sm:$0xff]
    %v380 = vld [vmem:[%s1 + $0xb28] sm:$0xff]
    %v381 = vld [vmem:[%s1 + $0xb30] sm:$0xff]
    %v382 = vld [vmem:[%s1 + $0xb38] sm:$0xff]
    %v383 = vld [vmem:[%s1 + $0xb40] sm:$0xff]
    %v384 = vld [vmem:[%s1 + $0xb48] sm:$0xff]
    %v385 = vld [vmem:[%s1 + $0xb50] sm:$0xff]
    %v386 = vld [vmem:[%s1 + $0xb58] sm:$0xff]
    %v387 = vld [vmem:[%s1 + $0xb60] sm:$0xff]
    %v388 = vld [vmem:[%s1 + $0xb68] sm:$0xff]
    %v389 = vld [vmem:[%s1 + $0xb70] sm:$0xff]
    %v390 = vld [vmem:[%s1 + $0xb78] sm:$0xff]
    %v391 = vld [vmem:[%s1 + $0xb80] sm:$0xff]
    %v392 = vld [vmem:[%s1 + $0xb88] sm:$0xff]
    %v393 = vld [vmem:[%s1 + $0xb90] sm:$0xff]
    %v394 = vld [vmem:[%s1 + $0xb98] sm:$0xff]
    %v395 = vld [vmem:[%s1 + $0xba0] sm:$0xff]
    %v396 = vld [vmem:[%s1 + $0xba8] sm:$0xff]
    %v397 = vld [vmem:[%s1 + $0xbb0] sm:$0xff]
    %v398 = vld [vmem:[%s1 + $0xbb8] sm:$0xff]
    %v399 = vld [vmem:[%s1 + $0xbc0] sm:$0xff]
    %v400 = vld [vmem:[%s1 + $0xbc8] sm:$0xff]
    %v401 = vld [vmem:[%s1 + $0xbd0] sm:$0xff]
    %v402 = vld [vmem:[%s1 + $0xbd8] sm:$0xff]
    %v403 = vld [vmem:[%s1 + $0xbe0] sm:$0xff]
    %v404 = vld [vmem:[%s1 + $0xbe8] sm:$0xff]
    %v405 = vld [vmem:[%s1 + $0xbf0] sm:$0xff]
    %v406 = vld [vmem:[%s1 + $0xbf8] sm:$0xff]
    %v407 = vld [vmem:[%s1 + $0xc00] sm:$0xff]
    %v408 = vld [vmem:[%s1 + $0xc08] sm:$0xff]
    %v409 = vld [vmem:[%s1 + $0xc10] sm:$0xff]
    %v410 = vld [vmem:[%s1 + $0xc18] sm:$0xff]
    %v411 = vld [vmem:[%s1 + $0xc20] sm:$0xff]
    %v412 = vld [vmem:[%s1 + $0xc28] sm:$0xff]
    %v413 = vld [vmem:[%s1 + $0xc30] sm:$0xff]
    %v414 = vld [vmem:[%s1 + $0xc38] sm:$0xff]
    %v415 = vld [vmem:[%s2] sm:$0xf]
    %v417 = vperm.slane %v415, 0
    %v418 = vperm.slane %v415, 1
    %v419 = vperm.slane %v415, 2
    %v420 = vperm.slane %v415, 3
    %427 = vst [vmem:[#allocation1] ss:$4 sm:$0xff] %v21
    %s428 = scalar_lea.vmem [#allocation1], 32
    %429 = vst [vmem:[%s428] ss:$4 sm:$0xff] %v22
    %v430 = vld.sshfl [vmem:[#allocation1] sm:$0xff pattern:$0x73625140]
    %v431 = vld.sshfl [vmem:[#allocation1 + $0x8] sm:$0xff pattern:$0x73625140]
    %v432 = vld.sshfl [vmem:[#allocation1 + $0x10] sm:$0xff pattern:$0x73625140]
    %v433 = vld.sshfl [vmem:[#allocation1 + $0x18] sm:$0xff pattern:$0x73625140]
    %v434 = vld.sshfl [vmem:[#allocation1 + $0x20] sm:$0xff pattern:$0x73625140]
    %v435 = vld.sshfl [vmem:[#allocation1 + $0x28] sm:$0xff pattern:$0x73625140]
    %v436 = vld.sshfl [vmem:[#allocation1 + $0x30] sm:$0xff pattern:$0x73625140]
    %vm443 = vcmask 130048
    %v444 = vsel %vm443, %v436, 0
    %446 = vmatpush.msra.mxu0 %v83
    %447 = vmatpush.msra.mxu0 %v79
    %448 = vmatpush.msra.mxu0 %v75
    %449 = vmatpush.msra.mxu0 %v71
    %450 = vmatpush.msra.mxu0 %v67
    %451 = vmatpush.msra.mxu0 %v63
    %452 = vmatpush.msra.mxu0 %v59
    %453 = vmatpush.msra.mxu0 %v55
    %454 = vmatpush.msra.mxu0 %v51
    %455 = vmatpush.msra.mxu0 %v47
    %456 = vmatpush.msra.mxu0 %v43
    %457 = vmatpush.msra.mxu0 %v39
    %458 = vmatpush.msra.mxu0 %v35
    %459 = vmatpush.msra.mxu0 %v31
    %460 = vmatpush.msra.mxu0 %v27
    %461 = vmatpush.msra.mxu0 %v23
    %462 = vmatmul.f32.gmra.mxu0 %v430
    %v463 = vpop.f32.mrf.mxu0
    %v464 = vadd.f32 %v417, %v463
    %465 = vdwg.mxu0
    %466 = vmatpush.msra.mxu0 %v147
    %467 = vmatpush.msra.mxu0 %v143
    %468 = vmatpush.msra.mxu0 %v139
    %469 = vmatpush.msra.mxu0 %v135
    %470 = vmatpush.msra.mxu0 %v131
    %471 = vmatpush.msra.mxu0 %v127
    %472 = vmatpush.msra.mxu0 %v123
    %473 = vmatpush.msra.mxu0 %v119
    %474 = vmatpush.msra.mxu0 %v115
    %475 = vmatpush.msra.mxu0 %v111
    %476 = vmatpush.msra.mxu0 %v107
    %477 = vmatpush.msra.mxu0 %v103
    %478 = vmatpush.msra.mxu0 %v99
    %479 = vmatpush.msra.mxu0 %v95
    %480 = vmatpush.msra.mxu0 %v91
    %481 = vmatpush.msra.mxu0 %v87
    %482 = vmatmul.f32.gmra.mxu0 %v431
    %v483 = vpop.f32.mrf.mxu0
    %v484 = vadd.f32 %v464, %v483
    %485 = vdwg.mxu0
    %486 = vmatpush.msra.mxu0 %v211
    %487 = vmatpush.msra.mxu0 %v207
    %488 = vmatpush.msra.mxu0 %v203
    %489 = vmatpush.msra.mxu0 %v199
    %490 = vmatpush.msra.mxu0 %v195
    %491 = vmatpush.msra.mxu0 %v191
    %492 = vmatpush.msra.mxu0 %v187
    %493 = vmatpush.msra.mxu0 %v183
    %494 = vmatpush.msra.mxu0 %v179
    %495 = vmatpush.msra.mxu0 %v175
    %496 = vmatpush.msra.mxu0 %v171
    %497 = vmatpush.msra.mxu0 %v167
    %498 = vmatpush.msra.mxu0 %v163
    %499 = vmatpush.msra.mxu0 %v159
    %500 = vmatpush.msra.mxu0 %v155
    %501 = vmatpush.msra.mxu0 %v151
    %502 = vmatmul.f32.gmra.mxu0 %v432
    %v503 = vpop.f32.mrf.mxu0
    %v504 = vadd.f32 %v484, %v503
    %505 = vdwg.mxu0
    %506 = vmatpush.msra.mxu0 %v275
    %507 = vmatpush.msra.mxu0 %v271
    %508 = vmatpush.msra.mxu0 %v267
    %509 = vmatpush.msra.mxu0 %v263
    %510 = vmatpush.msra.mxu0 %v259
    %511 = vmatpush.msra.mxu0 %v255
    %512 = vmatpush.msra.mxu0 %v251
    %513 = vmatpush.msra.mxu0 %v247
    %514 = vmatpush.msra.mxu0 %v243
    %515 = vmatpush.msra.mxu0 %v239
    %516 = vmatpush.msra.mxu0 %v235
    %517 = vmatpush.msra.mxu0 %v231
    %518 = vmatpush.msra.mxu0 %v227
    %519 = vmatpush.msra.mxu0 %v223
    %520 = vmatpush.msra.mxu0 %v219
    %521 = vmatpush.msra.mxu0 %v215
    %522 = vmatmul.f32.gmra.mxu0 %v433
    %v523 = vpop.f32.mrf.mxu0
    %v524 = vadd.f32 %v504, %v523
    %525 = vdwg.mxu0
    %526 = vmatpush.msra.mxu0 %v339
    %527 = vmatpush.msra.mxu0 %v335
    %528 = vmatpush.msra.mxu0 %v331
    %529 = vmatpush.msra.mxu0 %v327
    %530 = vmatpush.msra.mxu0 %v323
    %531 = vmatpush.msra.mxu0 %v319
    %532 = vmatpush.msra.mxu0 %v315
    %533 = vmatpush.msra.mxu0 %v311
    %534 = vmatpush.msra.mxu0 %v307
    %535 = vmatpush.msra.mxu0 %v303
    %536 = vmatpush.msra.mxu0 %v299
    %537 = vmatpush.msra.mxu0 %v295
    %538 = vmatpush.msra.mxu0 %v291
    %539 = vmatpush.msra.mxu0 %v287
    %540 = vmatpush.msra.mxu0 %v283
    %541 = vmatpush.msra.mxu0 %v279
    %542 = vmatmul.f32.gmra.mxu0 %v434
    %v543 = vpop.f32.mrf.mxu0
    %v544 = vadd.f32 %v524, %v543
    %545 = vdwg.mxu0
    %546 = vmatpush.msra.mxu0 %v403
    %547 = vmatpush.msra.mxu0 %v399
    %548 = vmatpush.msra.mxu0 %v395
    %549 = vmatpush.msra.mxu0 %v391
    %550 = vmatpush.msra.mxu0 %v387
    %551 = vmatpush.msra.mxu0 %v383
    %552 = vmatpush.msra.mxu0 %v379
    %553 = vmatpush.msra.mxu0 %v375
    %554 = vmatpush.msra.mxu0 %v371
    %555 = vmatpush.msra.mxu0 %v367
    %556 = vmatpush.msra.mxu0 %v363
    %557 = vmatpush.msra.mxu0 %v359
    %558 = vmatpush.msra.mxu0 %v355
    %559 = vmatpush.msra.mxu0 %v351
    %560 = vmatpush.msra.mxu0 %v347
    %561 = vmatpush.msra.mxu0 %v343
    %562 = vmatmul.f32.gmra.mxu0 %v435
    %v563 = vpop.f32.mrf.mxu0
    %v564 = vadd.f32 %v544, %v563
    %565 = vdwg.mxu0
    %566 = vmatpush.msra.mxu0 0.0
    %567 = vmatpush.msra.mxu0 0.0
    %568 = vmatpush.msra.mxu0 0.0
    %569 = vmatpush.msra.mxu0 0.0
    %570 = vmatpush.msra.mxu0 0.0
    %571 = vmatpush.msra.mxu0 0.0
    %572 = vmatpush.msra.mxu0 0.0
    %573 = vmatpush.msra.mxu0 0.0
    %574 = vmatpush.msra.mxu0 0.0
    %575 = vmatpush.msra.mxu0 0.0
    %576 = vmatpush.msra.mxu0 0.0
    %577 = vmatpush.msra.mxu0 0.0
    %578 = vmatpush.msra.mxu0 0.0
    %579 = vmatpush.msra.mxu0 0.0
    %580 = vmatpush.msra.mxu0 %v411
    %581 = vmatpush.msra.mxu0 %v407
    %582 = vmatmul.f32.gmra.mxu0 %v444
    %v583 = vpop.f32.mrf.mxu0
    %v584 = vadd.f32 %v564, %v583
    %585 = vdwg.mxu0
    %586 = vmatpush.msra.mxu0 %v84
    %587 = vmatpush.msra.mxu0 %v80
    %588 = vmatpush.msra.mxu0 %v76
    %589 = vmatpush.msra.mxu0 %v72
    %590 = vmatpush.msra.mxu0 %v68
    %591 = vmatpush.msra.mxu0 %v64
    %592 = vmatpush.msra.mxu0 %v60
    %593 = vmatpush.msra.mxu0 %v56
    %594 = vmatpush.msra.mxu0 %v52
    %595 = vmatpush.msra.mxu0 %v48
    %596 = vmatpush.msra.mxu0 %v44
    %597 = vmatpush.msra.mxu0 %v40
    %598 = vmatpush.msra.mxu0 %v36
    %599 = vmatpush.msra.mxu0 %v32
    %600 = vmatpush.msra.mxu0 %v28
    %601 = vmatpush.msra.mxu0 %v24
    %602 = vmatmul.f32.gmra.mxu0 %v430
    %v603 = vpop.f32.mrf.mxu0
    %v604 = vadd.f32 %v418, %v603
    %605 = vdwg.mxu0
    %606 = vmatpush.msra.mxu0 %v148
    %607 = vmatpush.msra.mxu0 %v144
    %608 = vmatpush.msra.mxu0 %v140
    %609 = vmatpush.msra.mxu0 %v136
    %610 = vmatpush.msra.mxu0 %v132
    %611 = vmatpush.msra.mxu0 %v128
    %612 = vmatpush.msra.mxu0 %v124
    %613 = vmatpush.msra.mxu0 %v120
    %614 = vmatpush.msra.mxu0 %v116
    %615 = vmatpush.msra.mxu0 %v112
    %616 = vmatpush.msra.mxu0 %v108
    %617 = vmatpush.msra.mxu0 %v104
    %618 = vmatpush.msra.mxu0 %v100
    %619 = vmatpush.msra.mxu0 %v96
    %620 = vmatpush.msra.mxu0 %v92
    %621 = vmatpush.msra.mxu0 %v88
    %622 = vmatmul.f32.gmra.mxu0 %v431
    %v623 = vpop.f32.mrf.mxu0
    %v624 = vadd.f32 %v604, %v623
    %625 = vdwg.mxu0
    %626 = vmatpush.msra.mxu0 %v212
    %627 = vmatpush.msra.mxu0 %v208
    %628 = vmatpush.msra.mxu0 %v204
    %629 = vmatpush.msra.mxu0 %v200
    %630 = vmatpush.msra.mxu0 %v196
    %631 = vmatpush.msra.mxu0 %v192
    %632 = vmatpush.msra.mxu0 %v188
    %633 = vmatpush.msra.mxu0 %v184
    %634 = vmatpush.msra.mxu0 %v180
    %635 = vmatpush.msra.mxu0 %v176
    %636 = vmatpush.msra.mxu0 %v172
    %637 = vmatpush.msra.mxu0 %v168
    %638 = vmatpush.msra.mxu0 %v164
    %639 = vmatpush.msra.mxu0 %v160
    %640 = vmatpush.msra.mxu0 %v156
    %641 = vmatpush.msra.mxu0 %v152
    %642 = vmatmul.f32.gmra.mxu0 %v432
    %v643 = vpop.f32.mrf.mxu0
    %v644 = vadd.f32 %v624, %v643
    %645 = vdwg.mxu0
    %646 = vmatpush.msra.mxu0 %v276
    %647 = vmatpush.msra.mxu0 %v272
    %648 = vmatpush.msra.mxu0 %v268
    %649 = vmatpush.msra.mxu0 %v264
    %650 = vmatpush.msra.mxu0 %v260
    %651 = vmatpush.msra.mxu0 %v256
    %652 = vmatpush.msra.mxu0 %v252
    %653 = vmatpush.msra.mxu0 %v248
    %654 = vmatpush.msra.mxu0 %v244
    %655 = vmatpush.msra.mxu0 %v240
    %656 = vmatpush.msra.mxu0 %v236
    %657 = vmatpush.msra.mxu0 %v232
    %658 = vmatpush.msra.mxu0 %v228
    %659 = vmatpush.msra.mxu0 %v224
    %660 = vmatpush.msra.mxu0 %v220
    %661 = vmatpush.msra.mxu0 %v216
    %662 = vmatmul.f32.gmra.mxu0 %v433
    %v663 = vpop.f32.mrf.mxu0
    %v664 = vadd.f32 %v644, %v663
    %665 = vdwg.mxu0
    %666 = vmatpush.msra.mxu0 %v340
    %667 = vmatpush.msra.mxu0 %v336
    %668 = vmatpush.msra.mxu0 %v332
    %669 = vmatpush.msra.mxu0 %v328
    %670 = vmatpush.msra.mxu0 %v324
    %671 = vmatpush.msra.mxu0 %v320
    %672 = vmatpush.msra.mxu0 %v316
    %673 = vmatpush.msra.mxu0 %v312
    %674 = vmatpush.msra.mxu0 %v308
    %675 = vmatpush.msra.mxu0 %v304
    %676 = vmatpush.msra.mxu0 %v300
    %677 = vmatpush.msra.mxu0 %v296
    %678 = vmatpush.msra.mxu0 %v292
    %679 = vmatpush.msra.mxu0 %v288
    %680 = vmatpush.msra.mxu0 %v284
    %681 = vmatpush.msra.mxu0 %v280
    %682 = vmatmul.f32.gmra.mxu0 %v434
    %v683 = vpop.f32.mrf.mxu0
    %v684 = vadd.f32 %v664, %v683
    %685 = vdwg.mxu0
    %686 = vmatpush.msra.mxu0 %v404
    %687 = vmatpush.msra.mxu0 %v400
    %688 = vmatpush.msra.mxu0 %v396
    %689 = vmatpush.msra.mxu0 %v392
    %690 = vmatpush.msra.mxu0 %v388
    %691 = vmatpush.msra.mxu0 %v384
    %692 = vmatpush.msra.mxu0 %v380
    %693 = vmatpush.msra.mxu0 %v376
    %694 = vmatpush.msra.mxu0 %v372
    %695 = vmatpush.msra.mxu0 %v368
    %696 = vmatpush.msra.mxu0 %v364
    %697 = vmatpush.msra.mxu0 %v360
    %698 = vmatpush.msra.mxu0 %v356
    %699 = vmatpush.msra.mxu0 %v352
    %700 = vmatpush.msra.mxu0 %v348
    %701 = vmatpush.msra.mxu0 %v344
    %702 = vmatmul.f32.gmra.mxu0 %v435
    %v703 = vpop.f32.mrf.mxu0
    %v704 = vadd.f32 %v684, %v703
    %705 = vdwg.mxu0
    %706 = vmatpush.msra.mxu0 0.0
    %707 = vmatpush.msra.mxu0 0.0
    %708 = vmatpush.msra.mxu0 0.0
    %709 = vmatpush.msra.mxu0 0.0
    %710 = vmatpush.msra.mxu0 0.0
    %711 = vmatpush.msra.mxu0 0.0
    %712 = vmatpush.msra.mxu0 0.0
    %713 = vmatpush.msra.mxu0 0.0
    %714 = vmatpush.msra.mxu0 0.0
    %715 = vmatpush.msra.mxu0 0.0
    %716 = vmatpush.msra.mxu0 0.0
    %717 = vmatpush.msra.mxu0 0.0
    %718 = vmatpush.msra.mxu0 0.0
    %719 = vmatpush.msra.mxu0 0.0
    %720 = vmatpush.msra.mxu0 %v412
    %721 = vmatpush.msra.mxu0 %v408
    %722 = vmatmul.f32.gmra.mxu0 %v444
    %v723 = vpop.f32.mrf.mxu0
    %v724 = vadd.f32 %v704, %v723
    %725 = vdwg.mxu0
    %726 = vmatpush.msra.mxu0 %v85
    %727 = vmatpush.msra.mxu0 %v81
    %728 = vmatpush.msra.mxu0 %v77
    %729 = vmatpush.msra.mxu0 %v73
    %730 = vmatpush.msra.mxu0 %v69
    %731 = vmatpush.msra.mxu0 %v65
    %732 = vmatpush.msra.mxu0 %v61
    %733 = vmatpush.msra.mxu0 %v57
    %734 = vmatpush.msra.mxu0 %v53
    %735 = vmatpush.msra.mxu0 %v49
    %736 = vmatpush.msra.mxu0 %v45
    %737 = vmatpush.msra.mxu0 %v41
    %738 = vmatpush.msra.mxu0 %v37
    %739 = vmatpush.msra.mxu0 %v33
    %740 = vmatpush.msra.mxu0 %v29
    %741 = vmatpush.msra.mxu0 %v25
    %742 = vmatmul.f32.gmra.mxu0 %v430
    %v743 = vpop.f32.mrf.mxu0
    %v744 = vadd.f32 %v419, %v743
    %745 = vdwg.mxu0
    %746 = vmatpush.msra.mxu0 %v149
    %747 = vmatpush.msra.mxu0 %v145
    %748 = vmatpush.msra.mxu0 %v141
    %749 = vmatpush.msra.mxu0 %v137
    %750 = vmatpush.msra.mxu0 %v133
    %751 = vmatpush.msra.mxu0 %v129
    %752 = vmatpush.msra.mxu0 %v125
    %753 = vmatpush.msra.mxu0 %v121
    %754 = vmatpush.msra.mxu0 %v117
    %755 = vmatpush.msra.mxu0 %v113
    %756 = vmatpush.msra.mxu0 %v109
    %757 = vmatpush.msra.mxu0 %v105
    %758 = vmatpush.msra.mxu0 %v101
    %759 = vmatpush.msra.mxu0 %v97
    %760 = vmatpush.msra.mxu0 %v93
    %761 = vmatpush.msra.mxu0 %v89
    %762 = vmatmul.f32.gmra.mxu0 %v431
    %v763 = vpop.f32.mrf.mxu0
    %v764 = vadd.f32 %v744, %v763
    %765 = vdwg.mxu0
    %766 = vmatpush.msra.mxu0 %v213
    %767 = vmatpush.msra.mxu0 %v209
    %768 = vmatpush.msra.mxu0 %v205
    %769 = vmatpush.msra.mxu0 %v201
    %770 = vmatpush.msra.mxu0 %v197
    %771 = vmatpush.msra.mxu0 %v193
    %772 = vmatpush.msra.mxu0 %v189
    %773 = vmatpush.msra.mxu0 %v185
    %774 = vmatpush.msra.mxu0 %v181
    %775 = vmatpush.msra.mxu0 %v177
    %776 = vmatpush.msra.mxu0 %v173
    %777 = vmatpush.msra.mxu0 %v169
    %778 = vmatpush.msra.mxu0 %v165
    %779 = vmatpush.msra.mxu0 %v161
    %780 = vmatpush.msra.mxu0 %v157
    %781 = vmatpush.msra.mxu0 %v153
    %782 = vmatmul.f32.gmra.mxu0 %v432
    %v783 = vpop.f32.mrf.mxu0
    %v784 = vadd.f32 %v764, %v783
    %785 = vdwg.mxu0
    %786 = vmatpush.msra.mxu0 %v277
    %787 = vmatpush.msra.mxu0 %v273
    %788 = vmatpush.msra.mxu0 %v269
    %789 = vmatpush.msra.mxu0 %v265
    %790 = vmatpush.msra.mxu0 %v261
    %791 = vmatpush.msra.mxu0 %v257
    %792 = vmatpush.msra.mxu0 %v253
    %793 = vmatpush.msra.mxu0 %v249
    %794 = vmatpush.msra.mxu0 %v245
    %795 = vmatpush.msra.mxu0 %v241
    %796 = vmatpush.msra.mxu0 %v237
    %797 = vmatpush.msra.mxu0 %v233
    %798 = vmatpush.msra.mxu0 %v229
    %799 = vmatpush.msra.mxu0 %v225
    %800 = vmatpush.msra.mxu0 %v221
    %801 = vmatpush.msra.mxu0 %v217
    %802 = vmatmul.f32.gmra.mxu0 %v433
    %v803 = vpop.f32.mrf.mxu0
    %v804 = vadd.f32 %v784, %v803
    %805 = vdwg.mxu0
    %806 = vmatpush.msra.mxu0 %v341
    %807 = vmatpush.msra.mxu0 %v337
    %808 = vmatpush.msra.mxu0 %v333
    %809 = vmatpush.msra.mxu0 %v329
    %810 = vmatpush.msra.mxu0 %v325
    %811 = vmatpush.msra.mxu0 %v321
    %812 = vmatpush.msra.mxu0 %v317
    %813 = vmatpush.msra.mxu0 %v313
    %814 = vmatpush.msra.mxu0 %v309
    %815 = vmatpush.msra.mxu0 %v305
    %816 = vmatpush.msra.mxu0 %v301
    %817 = vmatpush.msra.mxu0 %v297
    %818 = vmatpush.msra.mxu0 %v293
    %819 = vmatpush.msra.mxu0 %v289
    %820 = vmatpush.msra.mxu0 %v285
    %821 = vmatpush.msra.mxu0 %v281
    %822 = vmatmul.f32.gmra.mxu0 %v434
    %v823 = vpop.f32.mrf.mxu0
    %v824 = vadd.f32 %v804, %v823
    %825 = vdwg.mxu0
    %826 = vmatpush.msra.mxu0 %v405
    %827 = vmatpush.msra.mxu0 %v401
    %828 = vmatpush.msra.mxu0 %v397
    %829 = vmatpush.msra.mxu0 %v393
    %830 = vmatpush.msra.mxu0 %v389
    %831 = vmatpush.msra.mxu0 %v385
    %832 = vmatpush.msra.mxu0 %v381
    %833 = vmatpush.msra.mxu0 %v377
    %834 = vmatpush.msra.mxu0 %v373
    %835 = vmatpush.msra.mxu0 %v369
    %836 = vmatpush.msra.mxu0 %v365
    %837 = vmatpush.msra.mxu0 %v361
    %838 = vmatpush.msra.mxu0 %v357
    %839 = vmatpush.msra.mxu0 %v353
    %840 = vmatpush.msra.mxu0 %v349
    %841 = vmatpush.msra.mxu0 %v345
    %842 = vmatmul.f32.gmra.mxu0 %v435
    %v843 = vpop.f32.mrf.mxu0
    %v844 = vadd.f32 %v824, %v843
    %845 = vdwg.mxu0
    %846 = vmatpush.msra.mxu0 0.0
    %847 = vmatpush.msra.mxu0 0.0
    %848 = vmatpush.msra.mxu0 0.0
    %849 = vmatpush.msra.mxu0 0.0
    %850 = vmatpush.msra.mxu0 0.0
    %851 = vmatpush.msra.mxu0 0.0
    %852 = vmatpush.msra.mxu0 0.0
    %853 = vmatpush.msra.mxu0 0.0
    %854 = vmatpush.msra.mxu0 0.0
    %855 = vmatpush.msra.mxu0 0.0
    %856 = vmatpush.msra.mxu0 0.0
    %857 = vmatpush.msra.mxu0 0.0
    %858 = vmatpush.msra.mxu0 0.0
    %859 = vmatpush.msra.mxu0 0.0
    %860 = vmatpush.msra.mxu0 %v413
    %861 = vmatpush.msra.mxu0 %v409
    %862 = vmatmul.f32.gmra.mxu0 %v444
    %v863 = vpop.f32.mrf.mxu0
    %v864 = vadd.f32 %v844, %v863
    %865 = vdwg.mxu0
    %866 = vmatpush.msra.mxu0 %v86
    %867 = vmatpush.msra.mxu0 %v82
    %868 = vmatpush.msra.mxu0 %v78
    %869 = vmatpush.msra.mxu0 %v74
    %870 = vmatpush.msra.mxu0 %v70
    %871 = vmatpush.msra.mxu0 %v66
    %872 = vmatpush.msra.mxu0 %v62
    %873 = vmatpush.msra.mxu0 %v58
    %874 = vmatpush.msra.mxu0 %v54
    %875 = vmatpush.msra.mxu0 %v50
    %876 = vmatpush.msra.mxu0 %v46
    %877 = vmatpush.msra.mxu0 %v42
    %878 = vmatpush.msra.mxu0 %v38
    %879 = vmatpush.msra.mxu0 %v34
    %880 = vmatpush.msra.mxu0 %v30
    %881 = vmatpush.msra.mxu0 %v26
    %882 = vmatmul.f32.gmra.mxu0 %v430
    %v883 = vpop.f32.mrf.mxu0
    %v884 = vadd.f32 %v420, %v883
    %885 = vdwg.mxu0
    %886 = vmatpush.msra.mxu0 %v150
    %887 = vmatpush.msra.mxu0 %v146
    %888 = vmatpush.msra.mxu0 %v142
    %889 = vmatpush.msra.mxu0 %v138
    %890 = vmatpush.msra.mxu0 %v134
    %891 = vmatpush.msra.mxu0 %v130
    %892 = vmatpush.msra.mxu0 %v126
    %893 = vmatpush.msra.mxu0 %v122
    %894 = vmatpush.msra.mxu0 %v118
    %895 = vmatpush.msra.mxu0 %v114
    %896 = vmatpush.msra.mxu0 %v110
    %897 = vmatpush.msra.mxu0 %v106
    %898 = vmatpush.msra.mxu0 %v102
    %899 = vmatpush.msra.mxu0 %v98
    %900 = vmatpush.msra.mxu0 %v94
    %901 = vmatpush.msra.mxu0 %v90
    %902 = vmatmul.f32.gmra.mxu0 %v431
    %v903 = vpop.f32.mrf.mxu0
    %v904 = vadd.f32 %v884, %v903
    %905 = vdwg.mxu0
    %906 = vmatpush.msra.mxu0 %v214
    %907 = vmatpush.msra.mxu0 %v210
    %908 = vmatpush.msra.mxu0 %v206
    %909 = vmatpush.msra.mxu0 %v202
    %910 = vmatpush.msra.mxu0 %v198
    %911 = vmatpush.msra.mxu0 %v194
    %912 = vmatpush.msra.mxu0 %v190
    %913 = vmatpush.msra.mxu0 %v186
    %914 = vmatpush.msra.mxu0 %v182
    %915 = vmatpush.msra.mxu0 %v178
    %916 = vmatpush.msra.mxu0 %v174
    %917 = vmatpush.msra.mxu0 %v170
    %918 = vmatpush.msra.mxu0 %v166
    %919 = vmatpush.msra.mxu0 %v162
    %920 = vmatpush.msra.mxu0 %v158
    %921 = vmatpush.msra.mxu0 %v154
    %922 = vmatmul.f32.gmra.mxu0 %v432
    %v923 = vpop.f32.mrf.mxu0
    %v924 = vadd.f32 %v904, %v923
    %925 = vdwg.mxu0
    %926 = vmatpush.msra.mxu0 %v278
    %927 = vmatpush.msra.mxu0 %v274
    %928 = vmatpush.msra.mxu0 %v270
    %929 = vmatpush.msra.mxu0 %v266
    %930 = vmatpush.msra.mxu0 %v262
    %931 = vmatpush.msra.mxu0 %v258
    %932 = vmatpush.msra.mxu0 %v254
    %933 = vmatpush.msra.mxu0 %v250
    %934 = vmatpush.msra.mxu0 %v246
    %935 = vmatpush.msra.mxu0 %v242
    %936 = vmatpush.msra.mxu0 %v238
    %937 = vmatpush.msra.mxu0 %v234
    %938 = vmatpush.msra.mxu0 %v230
    %939 = vmatpush.msra.mxu0 %v226
    %940 = vmatpush.msra.mxu0 %v222
    %941 = vmatpush.msra.mxu0 %v218
    %942 = vmatmul.f32.gmra.mxu0 %v433
    %v943 = vpop.f32.mrf.mxu0
    %v944 = vadd.f32 %v924, %v943
    %945 = vdwg.mxu0
    %946 = vmatpush.msra.mxu0 %v342
    %947 = vmatpush.msra.mxu0 %v338
    %948 = vmatpush.msra.mxu0 %v334
    %949 = vmatpush.msra.mxu0 %v330
    %950 = vmatpush.msra.mxu0 %v326
    %951 = vmatpush.msra.mxu0 %v322
    %952 = vmatpush.msra.mxu0 %v318
    %953 = vmatpush.msra.mxu0 %v314
    %954 = vmatpush.msra.mxu0 %v310
    %955 = vmatpush.msra.mxu0 %v306
    %956 = vmatpush.msra.mxu0 %v302
    %957 = vmatpush.msra.mxu0 %v298
    %958 = vmatpush.msra.mxu0 %v294
    %959 = vmatpush.msra.mxu0 %v290
    %960 = vmatpush.msra.mxu0 %v286
    %961 = vmatpush.msra.mxu0 %v282
    %962 = vmatmul.f32.gmra.mxu0 %v434
    %v963 = vpop.f32.mrf.mxu0
    %v964 = vadd.f32 %v944, %v963
    %965 = vdwg.mxu0
    %966 = vmatpush.msra.mxu0 %v406
    %967 = vmatpush.msra.mxu0 %v402
    %968 = vmatpush.msra.mxu0 %v398
    %969 = vmatpush.msra.mxu0 %v394
    %970 = vmatpush.msra.mxu0 %v390
    %971 = vmatpush.msra.mxu0 %v386
    %972 = vmatpush.msra.mxu0 %v382
    %973 = vmatpush.msra.mxu0 %v378
    %974 = vmatpush.msra.mxu0 %v374
    %975 = vmatpush.msra.mxu0 %v370
    %976 = vmatpush.msra.mxu0 %v366
    %977 = vmatpush.msra.mxu0 %v362
    %978 = vmatpush.msra.mxu0 %v358
    %979 = vmatpush.msra.mxu0 %v354
    %980 = vmatpush.msra.mxu0 %v350
    %981 = vmatpush.msra.mxu0 %v346
    %982 = vmatmul.f32.gmra.mxu0 %v435
    %v983 = vpop.f32.mrf.mxu0
    %v984 = vadd.f32 %v964, %v983
    %985 = vdwg.mxu0
    %986 = vmatpush.msra.mxu0 0.0
    %987 = vmatpush.msra.mxu0 0.0
    %988 = vmatpush.msra.mxu0 0.0
    %989 = vmatpush.msra.mxu0 0.0
    %990 = vmatpush.msra.mxu0 0.0
    %991 = vmatpush.msra.mxu0 0.0
    %992 = vmatpush.msra.mxu0 0.0
    %993 = vmatpush.msra.mxu0 0.0
    %994 = vmatpush.msra.mxu0 0.0
    %995 = vmatpush.msra.mxu0 0.0
    %996 = vmatpush.msra.mxu0 0.0
    %997 = vmatpush.msra.mxu0 0.0
    %998 = vmatpush.msra.mxu0 0.0
    %999 = vmatpush.msra.mxu0 0.0
    %1000 = vmatpush.msra.mxu0 %v414
    %1001 = vmatpush.msra.mxu0 %v410
    %1002 = vmatmul.f32.gmra.mxu0 %v444
    %v1003 = vpop.f32.mrf.mxu0
    %v1004 = vadd.f32 %v984, %v1003
    %1005 = vdwg.mxu0
    %v1006 = vmax.f32 %v584, 0.0
    %v1007 = vmax.f32 %v724, 0.0
    %v1008 = vmax.f32 %v864, 0.0
    %v1009 = vmax.f32 %v1004, 0.0
    %v1010 = vld [vmem:[%s3] sm:$0xff]
    %v1011 = vld [vmem:[%s3 + $0x8] sm:$0xff]
    %v1012 = vld [vmem:[%s3 + $0x10] sm:$0xff]
    %v1013 = vld [vmem:[%s3 + $0x18] sm:$0xff]
    %v1014 = vld [vmem:[%s3 + $0x20] sm:$0xff]
    %v1015 = vld [vmem:[%s3 + $0x28] sm:$0xff]
    %v1016 = vld [vmem:[%s3 + $0x30] sm:$0xff]
    %v1017 = vld [vmem:[%s3 + $0x38] sm:$0xff]
    %v1018 = vld [vmem:[%s3 + $0x40] sm:$0xff]
    %v1019 = vld [vmem:[%s3 + $0x48] sm:$0xff]
    %v1020 = vld [vmem:[%s3 + $0x50] sm:$0xff]
    %v1021 = vld [vmem:[%s3 + $0x58] sm:$0xff]
    %v1022 = vld [vmem:[%s3 + $0x60] sm:$0xff]
    %v1023 = vld [vmem:[%s3 + $0x68] sm:$0xff]
    %v1024 = vld [vmem:[%s3 + $0x70] sm:$0xff]
    %v1025 = vld [vmem:[%s3 + $0x78] sm:$0xff]
    %v1026 = vld [vmem:[%s3 + $0x80] sm:$0xff]
    %v1027 = vld [vmem:[%s3 + $0x88] sm:$0xff]
    %v1028 = vld [vmem:[%s3 + $0x90] sm:$0xff]
    %v1029 = vld [vmem:[%s3 + $0x98] sm:$0xff]
    %v1030 = vld [vmem:[%s3 + $0xa0] sm:$0xff]
    %v1031 = vld [vmem:[%s3 + $0xa8] sm:$0xff]
    %v1032 = vld [vmem:[%s3 + $0xb0] sm:$0xff]
    %v1033 = vld [vmem:[%s3 + $0xb8] sm:$0xff]
    %v1034 = vld [vmem:[%s3 + $0xc0] sm:$0xff]
    %v1035 = vld [vmem:[%s3 + $0xc8] sm:$0xff]
    %v1036 = vld [vmem:[%s3 + $0xd0] sm:$0xff]
    %v1037 = vld [vmem:[%s3 + $0xd8] sm:$0xff]
    %v1038 = vld [vmem:[%s3 + $0xe0] sm:$0xff]
    %v1039 = vld [vmem:[%s3 + $0xe8] sm:$0xff]
    %v1040 = vld [vmem:[%s3 + $0xf0] sm:$0xff]
    %v1041 = vld [vmem:[%s3 + $0xf8] sm:$0xff]
    %v1042 = vld [vmem:[%s3 + $0x100] sm:$0xff]
    %v1043 = vld [vmem:[%s3 + $0x108] sm:$0xff]
    %v1044 = vld [vmem:[%s3 + $0x110] sm:$0xff]
    %v1045 = vld [vmem:[%s3 + $0x118] sm:$0xff]
    %v1046 = vld [vmem:[%s3 + $0x120] sm:$0xff]
    %v1047 = vld [vmem:[%s3 + $0x128] sm:$0xff]
    %v1048 = vld [vmem:[%s3 + $0x130] sm:$0xff]
    %v1049 = vld [vmem:[%s3 + $0x138] sm:$0xff]
    %v1050 = vld [vmem:[%s3 + $0x140] sm:$0xff]
    %v1051 = vld [vmem:[%s3 + $0x148] sm:$0xff]
    %v1052 = vld [vmem:[%s3 + $0x150] sm:$0xff]
    %v1053 = vld [vmem:[%s3 + $0x158] sm:$0xff]
    %v1054 = vld [vmem:[%s3 + $0x160] sm:$0xff]
    %v1055 = vld [vmem:[%s3 + $0x168] sm:$0xff]
    %v1056 = vld [vmem:[%s3 + $0x170] sm:$0xff]
    %v1057 = vld [vmem:[%s3 + $0x178] sm:$0xff]
    %v1058 = vld [vmem:[%s3 + $0x180] sm:$0xff]
    %v1059 = vld [vmem:[%s3 + $0x188] sm:$0xff]
    %v1060 = vld [vmem:[%s3 + $0x190] sm:$0xff]
    %v1061 = vld [vmem:[%s3 + $0x198] sm:$0xff]
    %v1062 = vld [vmem:[%s3 + $0x1a0] sm:$0xff]
    %v1063 = vld [vmem:[%s3 + $0x1a8] sm:$0xff]
    %v1064 = vld [vmem:[%s3 + $0x1b0] sm:$0xff]
    %v1065 = vld [vmem:[%s3 + $0x1b8] sm:$0xff]
    %v1066 = vld [vmem:[%s3 + $0x1c0] sm:$0xff]
    %v1067 = vld [vmem:[%s3 + $0x1c8] sm:$0xff]
    %v1068 = vld [vmem:[%s3 + $0x1d0] sm:$0xff]
    %v1069 = vld [vmem:[%s3 + $0x1d8] sm:$0xff]
    %v1070 = vld [vmem:[%s3 + $0x1e0] sm:$0xff]
    %v1071 = vld [vmem:[%s3 + $0x1e8] sm:$0xff]
    %v1072 = vld [vmem:[%s3 + $0x1f0] sm:$0xff]
    %v1073 = vld [vmem:[%s3 + $0x1f8] sm:$0xff]
    %v1074 = vld [vmem:[%s4] sm:$0x1]
    %v1076 = vperm.slane %v1074, 0
    %1078 = vmatpush.msra.mxu0 %v1025
    %1079 = vmatpush.msra.mxu0 %v1024
    %1080 = vmatpush.msra.mxu0 %v1023
    %1081 = vmatpush.msra.mxu0 %v1022
    %1082 = vmatpush.msra.mxu0 %v1021
    %1083 = vmatpush.msra.mxu0 %v1020
    %1084 = vmatpush.msra.mxu0 %v1019
    %1085 = vmatpush.msra.mxu0 %v1018
    %1086 = vmatpush.msra.mxu0 %v1017
    %1087 = vmatpush.msra.mxu0 %v1016
    %1088 = vmatpush.msra.mxu0 %v1015
    %1089 = vmatpush.msra.mxu0 %v1014
    %1090 = vmatpush.msra.mxu0 %v1013
    %1091 = vmatpush.msra.mxu0 %v1012
    %1092 = vmatpush.msra.mxu0 %v1011
    %1093 = vmatpush.msra.mxu0 %v1010
    %1094 = vmatmul.f32.gmra.mxu0 %v1006
    %v1095 = vpop.f32.mrf.mxu0
    %v1096 = vadd.f32 %v1076, %v1095
    %1097 = vdwg.mxu0
    %1098 = vmatpush.msra.mxu0 %v1041
    %1099 = vmatpush.msra.mxu0 %v1040
    %1100 = vmatpush.msra.mxu0 %v1039
    %1101 = vmatpush.msra.mxu0 %v1038
    %1102 = vmatpush.msra.mxu0 %v1037
    %1103 = vmatpush.msra.mxu0 %v1036
    %1104 = vmatpush.msra.mxu0 %v1035
    %1105 = vmatpush.msra.mxu0 %v1034
    %1106 = vmatpush.msra.mxu0 %v1033
    %1107 = vmatpush.msra.mxu0 %v1032
    %1108 = vmatpush.msra.mxu0 %v1031
    %1109 = vmatpush.msra.mxu0 %v1030
    %1110 = vmatpush.msra.mxu0 %v1029
    %1111 = vmatpush.msra.mxu0 %v1028
    %1112 = vmatpush.msra.mxu0 %v1027
    %1113 = vmatpush.msra.mxu0 %v1026
    %1114 = vmatmul.f32.gmra.mxu0 %v1007
    %v1115 = vpop.f32.mrf.mxu0
    %v1116 = vadd.f32 %v1096, %v1115
    %1117 = vdwg.mxu0
    %1118 = vmatpush.msra.mxu0 %v1057
    %1119 = vmatpush.msra.mxu0 %v1056
    %1120 = vmatpush.msra.mxu0 %v1055
    %1121 = vmatpush.msra.mxu0 %v1054
    %1122 = vmatpush.msra.mxu0 %v1053
    %1123 = vmatpush.msra.mxu0 %v1052
    %1124 = vmatpush.msra.mxu0 %v1051
    %1125 = vmatpush.msra.mxu0 %v1050
    %1126 = vmatpush.msra.mxu0 %v1049
    %1127 = vmatpush.msra.mxu0 %v1048
    %1128 = vmatpush.msra.mxu0 %v1047
    %1129 = vmatpush.msra.mxu0 %v1046
    %1130 = vmatpush.msra.mxu0 %v1045
    %1131 = vmatpush.msra.mxu0 %v1044
    %1132 = vmatpush.msra.mxu0 %v1043
    %1133 = vmatpush.msra.mxu0 %v1042
    %1134 = vmatmul.f32.gmra.mxu0 %v1008
    %v1135 = vpop.f32.mrf.mxu0
    %v1136 = vadd.f32 %v1116, %v1135
    %1137 = vdwg.mxu0
    %1138 = vmatpush.msra.mxu0 %v1073
    %1139 = vmatpush.msra.mxu0 %v1072
    %1140 = vmatpush.msra.mxu0 %v1071
    %1141 = vmatpush.msra.mxu0 %v1070
    %1142 = vmatpush.msra.mxu0 %v1069
    %1143 = vmatpush.msra.mxu0 %v1068
    %1144 = vmatpush.msra.mxu0 %v1067
    %1145 = vmatpush.msra.mxu0 %v1066
    %1146 = vmatpush.msra.mxu0 %v1065
    %1147 = vmatpush.msra.mxu0 %v1064
    %1148 = vmatpush.msra.mxu0 %v1063
    %1149 = vmatpush.msra.mxu0 %v1062
    %1150 = vmatpush.msra.mxu0 %v1061
    %1151 = vmatpush.msra.mxu0 %v1060
    %1152 = vmatpush.msra.mxu0 %v1059
    %1153 = vmatpush.msra.mxu0 %v1058
    %1154 = vmatmul.f32.gmra.mxu0 %v1009
    %v1155 = vpop.f32.mrf.mxu0
    %v1156 = vadd.f32 %v1136, %v1155
    %1157 = vdwg.mxu0
    %vm1158 = vcmask 74752
    %v1159 = vsel %vm1158, %v1156, -inf
    %1160 = vmax.xlane.f32.xlu0 %v1159
    %v1161 = vpop.xlane.xlu0 %1160
    %v1162 = vsub.f32 %v1156, %v1161
    %v1163 = vmul.f32 %v1162, 1.442695
    %v1164 = vpow.pop %v1163
    %v1165 = vsel %vm1158, %v1164, 0.0
    %1166 = vadd.xlane.f32.xlu0 %v1165
    %v1167 = vpop.xlane.xlu0 %1166
    %v1168 = vlog2.pop %v1167
    %v1169 = vmul.f32 %v1168, 0.6931472
    %v1170 = vsub.f32 %v1162, %v1169
    %1171 = vst.msk [vmem:[#allocation2] sm:$0x3] %vm1158, %v1170
    // Predicated region
    $region22: #{convnet_forward.13} parent=1 // pred_check
      _
    $region23: #{convnet_forward.13} parent=1 // pred_check_branch
      %1173 = sbr.rel (0) target = $region25
    $region24: #{convnet_forward.13} parent=1 // pred_region
      %1175 = vsyncadd [#allocation3], 0
      %s1177 = sshll.u32 [#allocation2], 4
      %s1178 = int_to_ptr.vmem [resolvable:$true] %s1177
      %s1179 = sshll.u32 %s5, 4
      %s1180 = int_to_ptr.hbm [resolvable:$true] %s1179
      %1182 = dma.vmem_to_hbm [thread:$0]  %s1178, 32, %s1180, [#allocation3]
    $region25: #{convnet_forward.13} parent=1 // pred_fallthru
      _
    // Predicated region
    $region26: #{convnet_forward.13} parent=1 // pred_check
      _
    $region27: #{convnet_forward.13} parent=1 // pred_check_branch
      %1184 = sbr.rel (0) target = $region29
    $region28: #{convnet_forward.13} parent=1 // pred_region
      %1186 = dma.done [#allocation3], 32
    $region29: #{convnet_forward.13} parent=1 // pred_fallthru
      _
    %1187 = vsyncpa [#allocation3], 1

</llo_original>
